<compile_context>
chip_gen: v7x
topology: tpu7x:2x2x1
jax: 0.10.0
libtpu: 0.0.40
codegen_flags: <defaults>
</compile_context>

<pallas_src>
import functools

import jax
import jax.numpy as jnp
from jax import lax
from jax.experimental import pallas as pl
from jax.experimental.pallas import tpu as pltpu

LANE = 128


def _vmem_limit_bytes():
    """~75% of physical VMEM: 96 MiB on v5e/v6e (128 MiB), 48 MiB on v7x (64 MiB)."""
    try:
        cap = int(pltpu.get_tpu_info().vmem_capacity_bytes)
    except Exception:
        cap = 64 * 1024 * 1024
    return min(cap * 3 // 4, 96 * 1024 * 1024)


VMEM_LIMIT = _vmem_limit_bytes()


def _round_up(x, m):
    return (x + m - 1) // m * m


def _pick_tile(dim, cap, quantum=LANE):
    """Largest lane-multiple tile <= cap that divides dim (raises if none)."""
    if dim <= cap:
        return dim
    t = (cap // quantum) * quantum
    while t >= quantum:
        if dim % t == 0:
            return t
        t -= quantum
    raise ValueError(
        f"no {quantum}-multiple tile <= {cap} divides {dim}; "
        "pad the dimension or add a ragged last block")


def _row_tile(ho, cap):
    """Largest output-row tile <= cap that divides ho."""
    if ho <= cap:
        return ho
    for t in range(cap, 0, -1):
        if ho % t == 0:
            return t
    return ho


# ----------------------------------------------------------------------------
# Conv2d(k=3, stride=1, padding=0) + ReLU.
# Grid = (batch, output-row tiles).  Weight is pre-packed (kh*kw*Cin, Cout_pad)
# bf16; each tap is one bf16 matmul accumulated in f32 (no im2col patch).
# ----------------------------------------------------------------------------
def _conv_relu_kernel(x_ref, w_ref, b_ref, o_ref, *, kh, kw):
    rt, wo, cout_p = o_ref.shape     # output rows in this tile, output width, Cout_pad
    cin = x_ref.shape[-1]            # input channels (unpadded for conv1)
    r = pl.program_id(1)
    row0 = r * rt                    # first output row of this tile

    acc = jnp.zeros((rt * wo, cout_p), jnp.float32)
    for i in range(kh):                                   # static: leading-axis H slice
        rows = x_ref[pl.ds(row0 + i, rt), :, :]           # (rt, W, Cin) bf16
        for j in range(kw):                               # static: small W shift
            # TODO(synk): a pltpu.roll-based shift would keep this slice
            # sublane-aligned on the real (W=106) net; static slice kept for
            # guaranteed lowering.
            tap = rows[:, j:j + wo, :].reshape(rt * wo, cin)          # bf16
            w_tap = w_ref[pl.ds((i * kw + j) * cin, cin), :]          # (Cin, Cout_pad) bf16
            acc = acc + jnp.dot(tap, w_tap, preferred_element_type=jnp.float32)

    y = jnp.maximum(acc + b_ref[...], 0.0)                # f32 epilogue
    o_ref[...] = y.astype(o_ref.dtype).reshape(rt, wo, cout_p)   # lane-dense bf16 store


def conv2d_relu(x, w_packed, b, *, kh=3, kw=3, row_cap=16):
    n, h, wd, cin = x.shape
    k_dim, cout_p = w_packed.shape
    assert k_dim == kh * kw * cin, (k_dim, kh, kw, cin)
    ho, wo = h - kh + 1, wd - kw + 1
    rt = _row_tile(ho, row_cap)
    n_rt = ho // rt

    flops = 2 * n * ho * wo * k_dim * cout_p
    bytes_accessed = (x.size * x.dtype.itemsize
                      + w_packed.size * w_packed.dtype.itemsize
                      + b.size * b.dtype.itemsize
                      + n * ho * wo * cout_p * 2)
    cost = pl.CostEstimate(flops=flops, transcendentals=0,
                           bytes_accessed=bytes_accessed)

    kernel = functools.partial(_conv_relu_kernel, kh=kh, kw=kw)
    return pl.pallas_call(
        kernel,
        out_shape=jax.ShapeDtypeStruct((n, ho, wo, cout_p), jnp.bfloat16),
        grid=(n, n_rt),
        in_specs=[
            # full image stays resident across the row-tile axis (index ignores r)
            pl.BlockSpec((None, h, wd, cin), lambda i, r: (i, 0, 0, 0)),
            pl.BlockSpec((k_dim, cout_p), lambda i, r: (0, 0)),
            pl.BlockSpec((1, cout_p), lambda i, r: (0, 0)),
        ],
        out_specs=pl.BlockSpec((None, rt, wo, cout_p), lambda i, r: (i, r, 0, 0)),
        compiler_params=pltpu.CompilerParams(
            dimension_semantics=("parallel", "parallel"),
            vmem_limit_bytes=VMEM_LIMIT),
        cost_estimate=cost,
    )(x, w_packed, b)


# ----------------------------------------------------------------------------
# Linear + ReLU, tiled (M, N, K); accumulate directly into the resident f32
# output block (no scratch).  Weights bf16 (HBM-streaming bound), f32 acc.
# ----------------------------------------------------------------------------
def _linear_relu_kernel(x_ref, w_ref, b_ref, o_ref):
    k = pl.program_id(2)

    @pl.when(k == 0)
    def _():
        o_ref[...] = jnp.zeros_like(o_ref)

    o_ref[...] += jnp.dot(x_ref[...].astype(jnp.bfloat16), w_ref[...],
                          preferred_element_type=jnp.float32)

    @pl.when(k == pl.num_programs(2) - 1)
    def _():
        o_ref[...] = jnp.maximum(o_ref[...] + b_ref[...], 0.0)


def linear_relu(x, w, b, *, tk_cap=5120, tn_cap=256):
    n, k_dim = x.shape
    _, out_p = w.shape
    tm = n
    tk = _pick_tile(k_dim, tk_cap)
    tn = _pick_tile(out_p, tn_cap)
    grid = (n // tm, out_p // tn, k_dim // tk)

    bytes_accessed = (x.size * x.dtype.itemsize + w.size * w.dtype.itemsize
                      + b.size * b.dtype.itemsize + n * out_p * 4)
    cost = pl.CostEstimate(flops=2 * n * k_dim * out_p, transcendentals=0,
                           bytes_accessed=bytes_accessed)

    return pl.pallas_call(
        _linear_relu_kernel,
        out_shape=jax.ShapeDtypeStruct((n, out_p), jnp.float32),
        grid=grid,
        in_specs=[
            pl.BlockSpec((tm, tk), lambda i, j, kk: (i, kk)),
            pl.BlockSpec((tk, tn), lambda i, j, kk: (kk, j)),
            pl.BlockSpec((1, tn), lambda i, j, kk: (0, j)),
        ],
        out_specs=pl.BlockSpec((tm, tn), lambda i, j, kk: (i, j)),
        compiler_params=pltpu.CompilerParams(
            dimension_semantics=("parallel", "parallel", "arbitrary"),
            vmem_limit_bytes=VMEM_LIMIT),
        cost_estimate=cost,
    )(x, w, b)


# ----------------------------------------------------------------------------
# One-time parameter preparation (layout plumbing, zero runtime cost).
#   conv weights : HWIO -> (kh*kw*Cin, Cout_pad) bf16.  conv1 Cin is NOT
#                  padded; conv2 Cin is padded to conv1's padded Cout.
#   linear1      : rows permuted NCHW->NHWC (folds PyTorch's view()), channel
#                  rows padded to the conv lane padding, bf16
#   linear2      : padded to (HIDDEN_pad, CLASSES_pad), bf16
# ----------------------------------------------------------------------------
def prepare_params(raw, h_out, w_out, *, lane=LANE):
    cw1, cb1 = raw["w1"], raw["b1"]
    cw2, cb2 = raw["w2"], raw["b2"]
    lw1, lb1 = raw["wl1"], raw["bl1"]
    lw2, lb2 = raw["wl2"], raw["bl2"]

    _, _, cin1, cmid = cw1.shape
    cfin = cw2.shape[3]
    hid = lw1.shape[1]
    cls = lw2.shape[1]

    cmid_p = _round_up(cmid, lane)
    cfin_p = _round_up(cfin, lane)
    hid_p = _round_up(hid, lane)
    cls_p = _round_up(cls, lane)

    def pack_conv(w, b, cin_pad, cout_pad):
        kh, kw, ci, co = w.shape
        w = jnp.pad(w, ((0, 0), (0, 0), (0, cin_pad - ci), (0, cout_pad - co)))
        b = jnp.pad(b, ((0, 0), (0, cout_pad - co)))
        return (w.reshape(kh * kw * cin_pad, cout_pad).astype(jnp.bfloat16),
                b.astype(jnp.float32))

    w1p, b1p = pack_conv(cw1, cb1, cin1, cmid_p)     # conv1: Cin unpadded
    w2p, b2p = pack_conv(cw2, cb2, cmid_p, cfin_p)   # conv2: Cin = padded conv1 out

    # linear1: raw rows are in NCHW flatten order (matches x.view(-1, C*H*W)).
    w = lw1.reshape(cfin, h_out, w_out, hid)
    w = jnp.transpose(w, (1, 2, 0, 3))                               # NCHW -> NHWC rows
    w = jnp.pad(w, ((0, 0), (0, 0), (0, cfin_p - cfin), (0, hid_p - hid)))
    wl1p = w.reshape(h_out * w_out * cfin_p, hid_p).astype(jnp.bfloat16)
    bl1p = jnp.pad(lb1, ((0, 0), (0, hid_p - hid))).astype(jnp.float32)

    wl2p = jnp.pad(lw2, ((0, hid_p - hid), (0, cls_p - cls))).astype(jnp.bfloat16)
    bl2p = jnp.pad(lb2, ((0, 0), (0, cls_p - cls))).astype(jnp.float32)

    return {"w1": w1p, "b1": b1p, "w2": w2p, "b2": b2p,
            "wl1": wl1p, "bl1": bl1p, "wl2": wl2p, "bl2": bl2p,
            "classes": cls}


# ----------------------------------------------------------------------------
# Full TCNN forward.
# ----------------------------------------------------------------------------
def tcnn_forward(x, p):
    n = x.shape[0]
    x = x.astype(jnp.bfloat16)                          # bf16 activations throughout
    h = conv2d_relu(x, p["w1"], p["b1"])                # relu(conv1(x))
    h = conv2d_relu(h, p["w2"], p["b2"])                # relu(conv2(x))
    # NHWC flatten; the PyTorch NCHW ordering is folded into wl1's row permutation.
    h = h.reshape(n, -1)
    h = linear_relu(h, p["wl1"], p["bl1"])              # relu(linear1(x))
    h = linear_relu(h, p["wl2"], p["bl2"])              # relu(linear2(x))
    # Dropout(p=0.5) is identity at inference time.
    # TODO(synk): training-mode stochastic dropout (pltpu.prng_random_bits) not implemented.
    return h[:, :p["classes"]]                          # strip lane padding of classes


# Pure-JAX f32 reference (matches the PyTorch forward, NCHW flatten included).
def reference_forward(x, raw):
    y = lax.conv_general_dilated(x, raw["w1"], (1, 1), "VALID",
                                 dimension_numbers=("NHWC", "HWIO", "NHWC"))
    y = jnp.maximum(y + raw["b1"].reshape(1, 1, 1, -1), 0.0)
    y = lax.conv_general_dilated(y, raw["w2"], (1, 1), "VALID",
                                 dimension_numbers=("NHWC", "HWIO", "NHWC"))
    y = jnp.maximum(y + raw["b2"].reshape(1, 1, 1, -1), 0.0)
    y = jnp.transpose(y, (0, 3, 1, 2)).reshape(y.shape[0], -1)   # NCHW flatten
    y = jnp.maximum(y @ raw["wl1"] + raw["bl1"], 0.0)
    y = jnp.maximum(y @ raw["wl2"] + raw["bl2"], 0.0)
    return y


if __name__ == "__main__":
    key = jax.random.PRNGKey(0)
    ks = jax.random.split(key, 9)

    # Small, architecture-consistent stand-ins for the 256/256/128-channel,
    # 665600x500 original module.
    N, H, W = 2, 12, 12
    C_IN, C_MID, C_OUT = 8, 8, 8
    HIDDEN, CLASSES = 32, 3
    H1, W1 = H - 2, W - 2                    # after conv1 (3x3 valid)
    H2, W2 = H1 - 2, W1 - 2                  # after conv2 (3x3 valid)
    FEAT = C_OUT * H2 * W2                   # NCHW flatten size (PyTorch view order)

    def uinit(k, shape, fan_in):
        bound = 1.0 / jnp.sqrt(jnp.float32(fan_in))
        return jax.random.uniform(k, shape, jnp.float32, -bound, bound)

    raw = {
        "w1": uinit(ks[0], (3, 3, C_IN, C_MID), 3 * 3 * C_IN),      # HWIO
        "b1": uinit(ks[1], (1, C_MID), 3 * 3 * C_IN),
        "w2": uinit(ks[2], (3, 3, C_MID, C_OUT), 3 * 3 * C_MID),
        "b2": uinit(ks[3], (1, C_OUT), 3 * 3 * C_MID),
        "wl1": uinit(ks[4], (FEAT, HIDDEN), FEAT),                  # rows in NCHW order
        "bl1": uinit(ks[5], (1, HIDDEN), FEAT),
        "wl2": uinit(ks[6], (HIDDEN, CLASSES), HIDDEN),
        "bl2": uinit(ks[7], (1, CLASSES), HIDDEN),
    }
    params = prepare_params(raw, H2, W2)

    x = jax.random.normal(ks[8], (N, H, W, C_IN), jnp.float32)

    out = jax.block_until_ready(tcnn_forward(x, params))
    assert out.shape == (N, CLASSES), out.shape
    assert bool(jnp.all(out >= 0.0))                     # final ReLU

    ref = reference_forward(x, raw)                      # f32 reference (bf16 tolerance)
    assert bool(jnp.allclose(out.astype(jnp.float32), ref, rtol=5e-2, atol=5e-2)), (
        float(jnp.max(jnp.abs(out.astype(jnp.float32) - ref))))

    print("KERNEL_OK")
</pallas_src>

<mosaic_0001>
module attributes {stable_mosaic.version = 11 : i64} {
  func.func @_conv_relu_kernel(%arg0: i32, %arg1: i32, %arg2: memref<1x12x12x8xbf16, #tpu.memory_space<vmem>>, %arg3: memref<72x128xbf16, #tpu.memory_space<vmem>>, %arg4: memref<1x128xf32, #tpu.memory_space<vmem>>, %arg5: memref<1x10x10x128xbf16, #tpu.memory_space<vmem>>) attributes {dimension_semantics = [#tpu.dimension_semantics<parallel>, #tpu.dimension_semantics<parallel>], iteration_bounds = array<i64: 2, 1>, scalar_prefetch = 0 : i64, scratch_operands = 0 : i64, tpu.core_type = #tpu.core_type<tc>, window_params = [{transform_indices = @transform_0, window_bounds = array<i64: 1, 12, 12, 8>}, {pipeline_mode = #tpu.pipeline_mode<synchronous>, transform_indices = @transform_1, window_bounds = array<i64: 72, 128>}, {pipeline_mode = #tpu.pipeline_mode<synchronous>, transform_indices = @transform_2, window_bounds = array<i64: 1, 128>}, {transform_indices = @transform_3, window_bounds = array<i64: 1, 10, 10, 128>}]} {
    %c10_i32 = arith.constant 10 : i32
    %0 = arith.muli %arg1, %c10_i32 : i32
    %cst = arith.constant 0.000000e+00 : f32
    %1 = vector.broadcast %cst : f32 to vector<100x128xf32>
    %c0_i32 = arith.constant 0 : i32
    %2 = arith.addi %0, %c0_i32 : i32
    %c0 = arith.constant 0 : index
    %3 = arith.index_cast %2 : i32 to index
    %c0_0 = arith.constant 0 : index
    %c0_1 = arith.constant 0 : index
    %4 = vector.load %arg2[%c0, %3, %c0_0, %c0_1] : memref<1x12x12x8xbf16, #tpu.memory_space<vmem>>, vector<1x10x12x8xbf16>
    %5 = vector.shape_cast %4 : vector<1x10x12x8xbf16> to vector<10x12x8xbf16>
    %6 = vector.extract_strided_slice %5 {offsets = [0, 0, 0], sizes = [10, 10, 8], strides = [1, 1, 1]} : vector<10x12x8xbf16> to vector<10x10x8xbf16>
    %7 = vector.shape_cast %6 : vector<10x10x8xbf16> to vector<100x8xbf16>
    %c0_2 = arith.constant 0 : index
    %c0_3 = arith.constant 0 : index
    %8 = vector.load %arg3[%c0_2, %c0_3] : memref<72x128xbf16, #tpu.memory_space<vmem>>, vector<8x128xbf16>
    %cst_4 = arith.constant dense<0.000000e+00> : vector<100x128xf32>
    %9 = tpu.matmul %7, %8, %cst_4 {dimension_numbers = #tpu.dot_dimension_numbers<[1], [0], [0], [1], [0, 0, 1, 1], [], []>} : vector<100x8xbf16>, vector<8x128xbf16>, vector<100x128xf32> -> vector<100x128xf32>
    %10 = arith.addf %1, %9 : vector<100x128xf32>
    %11 = vector.extract_strided_slice %5 {offsets = [0, 1, 0], sizes = [10, 10, 8], strides = [1, 1, 1]} : vector<10x12x8xbf16> to vector<10x10x8xbf16>
    %12 = vector.shape_cast %11 : vector<10x10x8xbf16> to vector<100x8xbf16>
    %c8 = arith.constant 8 : index
    %c0_5 = arith.constant 0 : index
    %13 = vector.load %arg3[%c8, %c0_5] : memref<72x128xbf16, #tpu.memory_space<vmem>>, vector<8x128xbf16>
    %cst_6 = arith.constant dense<0.000000e+00> : vector<100x128xf32>
    %14 = tpu.matmul %12, %13, %cst_6 {dimension_numbers = #tpu.dot_dimension_numbers<[1], [0], [0], [1], [0, 0, 1, 1], [], []>} : vector<100x8xbf16>, vector<8x128xbf16>, vector<100x128xf32> -> vector<100x128xf32>
    %15 = arith.addf %10, %14 : vector<100x128xf32>
    %16 = vector.extract_strided_slice %5 {offsets = [0, 2, 0], sizes = [10, 10, 8], strides = [1, 1, 1]} : vector<10x12x8xbf16> to vector<10x10x8xbf16>
    %17 = vector.shape_cast %16 : vector<10x10x8xbf16> to vector<100x8xbf16>
    %c16 = arith.constant 16 : index
    %c0_7 = arith.constant 0 : index
    %18 = vector.load %arg3[%c16, %c0_7] : memref<72x128xbf16, #tpu.memory_space<vmem>>, vector<8x128xbf16>
    %cst_8 = arith.constant dense<0.000000e+00> : vector<100x128xf32>
    %19 = tpu.matmul %17, %18, %cst_8 {dimension_numbers = #tpu.dot_dimension_numbers<[1], [0], [0], [1], [0, 0, 1, 1], [], []>} : vector<100x8xbf16>, vector<8x128xbf16>, vector<100x128xf32> -> vector<100x128xf32>
    %20 = arith.addf %15, %19 : vector<100x128xf32>
    %c1_i32 = arith.constant 1 : i32
    %21 = arith.addi %0, %c1_i32 : i32
    %c0_9 = arith.constant 0 : index
    %22 = arith.index_cast %21 : i32 to index
    %c0_10 = arith.constant 0 : index
    %c0_11 = arith.constant 0 : index
    %23 = vector.load %arg2[%c0_9, %22, %c0_10, %c0_11] : memref<1x12x12x8xbf16, #tpu.memory_space<vmem>>, vector<1x10x12x8xbf16>
    %24 = vector.shape_cast %23 : vector<1x10x12x8xbf16> to vector<10x12x8xbf16>
    %25 = vector.extract_strided_slice %24 {offsets = [0, 0, 0], sizes = [10, 10, 8], strides = [1, 1, 1]} : vector<10x12x8xbf16> to vector<10x10x8xbf16>
    %26 = vector.shape_cast %25 : vector<10x10x8xbf16> to vector<100x8xbf16>
    %c24 = arith.constant 24 : index
    %c0_12 = arith.constant 0 : index
    %27 = vector.load %arg3[%c24, %c0_12] : memref<72x128xbf16, #tpu.memory_space<vmem>>, vector<8x128xbf16>
    %cst_13 = arith.constant dense<0.000000e+00> : vector<100x128xf32>
    %28 = tpu.matmul %26, %27, %cst_13 {dimension_numbers = #tpu.dot_dimension_numbers<[1], [0], [0], [1], [0, 0, 1, 1], [], []>} : vector<100x8xbf16>, vector<8x128xbf16>, vector<100x128xf32> -> vector<100x128xf32>
    %29 = arith.addf %20, %28 : vector<100x128xf32>
    %30 = vector.extract_strided_slice %24 {offsets = [0, 1, 0], sizes = [10, 10, 8], strides = [1, 1, 1]} : vector<10x12x8xbf16> to vector<10x10x8xbf16>
    %31 = vector.shape_cast %30 : vector<10x10x8xbf16> to vector<100x8xbf16>
    %c32 = arith.constant 32 : index
    %c0_14 = arith.constant 0 : index
    %32 = vector.load %arg3[%c32, %c0_14] : memref<72x128xbf16, #tpu.memory_space<vmem>>, vector<8x128xbf16>
    %cst_15 = arith.constant dense<0.000000e+00> : vector<100x128xf32>
    %33 = tpu.matmul %31, %32, %cst_15 {dimension_numbers = #tpu.dot_dimension_numbers<[1], [0], [0], [1], [0, 0, 1, 1], [], []>} : vector<100x8xbf16>, vector<8x128xbf16>, vector<100x128xf32> -> vector<100x128xf32>
    %34 = arith.addf %29, %33 : vector<100x128xf32>
    %35 = vector.extract_strided_slice %24 {offsets = [0, 2, 0], sizes = [10, 10, 8], strides = [1, 1, 1]} : vector<10x12x8xbf16> to vector<10x10x8xbf16>
    %36 = vector.shape_cast %35 : vector<10x10x8xbf16> to vector<100x8xbf16>
    %c40 = arith.constant 40 : index
    %c0_16 = arith.constant 0 : index
    %37 = vector.load %arg3[%c40, %c0_16] : memref<72x128xbf16, #tpu.memory_space<vmem>>, vector<8x128xbf16>
    %cst_17 = arith.constant dense<0.000000e+00> : vector<100x128xf32>
    %38 = tpu.matmul %36, %37, %cst_17 {dimension_numbers = #tpu.dot_dimension_numbers<[1], [0], [0], [1], [0, 0, 1, 1], [], []>} : vector<100x8xbf16>, vector<8x128xbf16>, vector<100x128xf32> -> vector<100x128xf32>
    %39 = arith.addf %34, %38 : vector<100x128xf32>
    %c2_i32 = arith.constant 2 : i32
    %40 = arith.addi %0, %c2_i32 : i32
    %c0_18 = arith.constant 0 : index
    %41 = arith.index_cast %40 : i32 to index
    %c0_19 = arith.constant 0 : index
    %c0_20 = arith.constant 0 : index
    %42 = vector.load %arg2[%c0_18, %41, %c0_19, %c0_20] : memref<1x12x12x8xbf16, #tpu.memory_space<vmem>>, vector<1x10x12x8xbf16>
    %43 = vector.shape_cast %42 : vector<1x10x12x8xbf16> to vector<10x12x8xbf16>
    %44 = vector.extract_strided_slice %43 {offsets = [0, 0, 0], sizes = [10, 10, 8], strides = [1, 1, 1]} : vector<10x12x8xbf16> to vector<10x10x8xbf16>
    %45 = vector.shape_cast %44 : vector<10x10x8xbf16> to vector<100x8xbf16>
    %c48 = arith.constant 48 : index
    %c0_21 = arith.constant 0 : index
    %46 = vector.load %arg3[%c48, %c0_21] : memref<72x128xbf16, #tpu.memory_space<vmem>>, vector<8x128xbf16>
    %cst_22 = arith.constant dense<0.000000e+00> : vector<100x128xf32>
    %47 = tpu.matmul %45, %46, %cst_22 {dimension_numbers = #tpu.dot_dimension_numbers<[1], [0], [0], [1], [0, 0, 1, 1], [], []>} : vector<100x8xbf16>, vector<8x128xbf16>, vector<100x128xf32> -> vector<100x128xf32>
    %48 = arith.addf %39, %47 : vector<100x128xf32>
    %49 = vector.extract_strided_slice %43 {offsets = [0, 1, 0], sizes = [10, 10, 8], strides = [1, 1, 1]} : vector<10x12x8xbf16> to vector<10x10x8xbf16>
    %50 = vector.shape_cast %49 : vector<10x10x8xbf16> to vector<100x8xbf16>
    %c56 = arith.constant 56 : index
    %c0_23 = arith.constant 0 : index
    %51 = vector.load %arg3[%c56, %c0_23] : memref<72x128xbf16, #tpu.memory_space<vmem>>, vector<8x128xbf16>
    %cst_24 = arith.constant dense<0.000000e+00> : vector<100x128xf32>
    %52 = tpu.matmul %50, %51, %cst_24 {dimension_numbers = #tpu.dot_dimension_numbers<[1], [0], [0], [1], [0, 0, 1, 1], [], []>} : vector<100x8xbf16>, vector<8x128xbf16>, vector<100x128xf32> -> vector<100x128xf32>
    %53 = arith.addf %48, %52 : vector<100x128xf32>
    %54 = vector.extract_strided_slice %43 {offsets = [0, 2, 0], sizes = [10, 10, 8], strides = [1, 1, 1]} : vector<10x12x8xbf16> to vector<10x10x8xbf16>
    %55 = vector.shape_cast %54 : vector<10x10x8xbf16> to vector<100x8xbf16>
    %c64 = arith.constant 64 : index
    %c0_25 = arith.constant 0 : index
    %56 = vector.load %arg3[%c64, %c0_25] : memref<72x128xbf16, #tpu.memory_space<vmem>>, vector<8x128xbf16>
    %cst_26 = arith.constant dense<0.000000e+00> : vector<100x128xf32>
    %57 = tpu.matmul %55, %56, %cst_26 {dimension_numbers = #tpu.dot_dimension_numbers<[1], [0], [0], [1], [0, 0, 1, 1], [], []>} : vector<100x8xbf16>, vector<8x128xbf16>, vector<100x128xf32> -> vector<100x128xf32>
    %58 = arith.addf %53, %57 : vector<100x128xf32>
    %c0_27 = arith.constant 0 : index
    %c0_28 = arith.constant 0 : index
    %59 = vector.load %arg4[%c0_27, %c0_28] : memref<1x128xf32, #tpu.memory_space<vmem>>, vector<1x128xf32>
    %60 = vector.broadcast %59 : vector<1x128xf32> to vector<100x128xf32>
    %61 = arith.addf %58, %60 : vector<100x128xf32>
    %cst_29 = arith.constant 0.000000e+00 : f32
    %62 = vector.broadcast %cst_29 : f32 to vector<100x128xf32>
    %63 = arith.maximumf %61, %62 : vector<100x128xf32>
    %64 = arith.truncf %63 : vector<100x128xf32> to vector<100x128xbf16>
    %65 = vector.shape_cast %64 : vector<100x128xbf16> to vector<10x10x128xbf16>
    %c0_30 = arith.constant 0 : index
    %c0_31 = arith.constant 0 : index
    %c0_32 = arith.constant 0 : index
    %c0_33 = arith.constant 0 : index
    %66 = vector.load %arg5[%c0_30, %c0_31, %c0_32, %c0_33] : memref<1x10x10x128xbf16, #tpu.memory_space<vmem>>, vector<1x10x10x128xbf16>
    %67 = vector.shape_cast %66 : vector<1x10x10x128xbf16> to vector<10x10x128xbf16>
    %68 = vector.shape_cast %65 : vector<10x10x128xbf16> to vector<1x10x10x128xbf16>
    tpu.vector_store %arg5[%c0_30, %c0_31, %c0_32, %c0_33], %68 {strides = array<i32>} : memref<1x10x10x128xbf16, #tpu.memory_space<vmem>>, vector<1x10x10x128xbf16>,
    return
  }
  func.func @transform_0(%arg0: i32, %arg1: i32) -> (i32, i32, i32, i32) {
    %c0_i32 = arith.constant 0 : i32
    %c0_i32_0 = arith.constant 0 : i32
    %c0_i32_1 = arith.constant 0 : i32
    %c0_i32_2 = arith.constant 0 : i32
    return %arg0, %c0_i32, %c0_i32_0, %c0_i32_1 : i32, i32, i32, i32
  }
  func.func @transform_1(%arg0: i32, %arg1: i32) -> (i32, i32) {
    %c0_i32 = arith.constant 0 : i32
    %c0_i32_0 = arith.constant 0 : i32
    %c0_i32_1 = arith.constant 0 : i32
    return %c0_i32, %c0_i32_0 : i32, i32
  }
  func.func @transform_2(%arg0: i32, %arg1: i32) -> (i32, i32) {
    %c0_i32 = arith.constant 0 : i32
    %c0_i32_0 = arith.constant 0 : i32
    %c0_i32_1 = arith.constant 0 : i32
    return %c0_i32, %c0_i32_0 : i32, i32
  }
  func.func @transform_3(%arg0: i32, %arg1: i32) -> (i32, i32, i32, i32) {
    %c0_i32 = arith.constant 0 : i32
    %c0_i32_0 = arith.constant 0 : i32
    %c0_i32_1 = arith.constant 0 : i32
    return %arg0, %arg1, %c0_i32, %c0_i32_0 : i32, i32, i32, i32
  }
}

</mosaic_0001>

<llo_original>
// kernel: tpu_custom_call.1
$region0: #{tpu_custom_call.1}
  #allocation0 [shape = 'u32[]', space=smem, size = 0x4, offset = 0x4, fixed_abs, tag = 'smem constant byte address 0x4 - core index']
  #allocation1 [shape = 'u32[144,128]{1,0:T(1,128)}', space=vmem, size = 0x12000, scoped, tag = 'internal scratch']
  %s0 = inlined_call_operand.vmem [shape: bf16[2,12,12,8], index: 0, kind: input, shape index: {}]
  %s1 = inlined_call_operand.vmem [shape: bf16[72,128], index: 1, kind: input, shape index: {}]
  %s2 = inlined_call_operand.vmem [shape: f32[1,128], index: 2, kind: input, shape index: {}]
  %s3 = inlined_call_operand.vmem [shape: bf16[2,10,10,128], index: 3, kind: output, shape index: {}]
  %s4 = sld [smem:[#allocation0]]
  $region45: #{tpu_custom_call.1} parent=0
    _
  %s6 = ssub.s32 1, %s4
  %s7 = scalar_select 0, %s6, %s4
  loop: start=0, step=1, limit=4
  $region2: #{tpu_custom_call.1} parent=0 // loop_pre_header
    _
  $region3: #{tpu_custom_call.1} parent=0 // loop_header
    %s9 = sphi 0, %s13
    %p10 = scmp.ge.s32.totalorder %s9, 4
    %s16 = sphi 0, %s28
    %s17 = sphi 0, %s24
    %s18 = sphi 0, %s16
    %s19 = sphi 0, %s17
    %s20 = sphi 0, %s18
    %s21 = sphi 0, %s19
    %s31 = sphi 0, %s33
    %s34 = sphi 0, %s31
    %s35 = sphi 0, %s34
    %s51 = sphi 0, %s35
    %s55 = sphi 0, %s55
    %s57 = sphi 0, %s55
    %s58 = sphi 0, %s57
    %s72 = sphi 0, %s58
    %s76 = sphi 0, %s76
    %s78 = sphi 0, %s76
    %s79 = sphi 0, %s78
    %s93 = sphi 0, %s79
    %s101 = sphi 0, %s103
    %s104 = sphi 0, %s101
    %s105 = sphi 0, %s104
    %s121 = sphi 0, %s105
  $region4: #{tpu_custom_call.1} parent=0 // loop_header_branch
    %12 = sbr.rel (%p10) target = $region8
  $region5: #{tpu_custom_call.1} parent=0 // loop_body
    %s14 = ssub.s32 %s9, 1
    %s15 = ssub.s32 %s9, 2
    %s22 = sadd.s32 1, %s17
    %p23 = scmp.ge.s32.totalorder %s22, 1
    %s24 = scalar_select %p23, 0, %s22
    %s25 = sadd.s32 1, %s16
    %s26 = scalar_select %p23, %s25, %s16
    %p27 = scmp.ge.s32.totalorder %s26, 2
    %s28 = scalar_select %p27, 0, %s26
    %s29 = ssub.s32 %s16, %s28
    %p30 = scmp.eq.s32.totalorder %s29, 0
    %s32 = sadd.s32 %s31, 1
    %s33 = scalar_select %p30, %s31, %s32
    %p36 = pneg %p30
    %p37 = scmp.eq.s32.totalorder %s9, 1
    %p38 = por %p36, %p37
    %p39 = scmp.ne.s32.totalorder %s31, %s34
    %p40 = scmp.eq.s32.totalorder %s9, 0
    %p41 = por %p39, %p40
    %p42 = scmp.ne.s32.totalorder %s31, %s34
    %p43 = scmp.eq.s32.totalorder %s14, 1
    %p44 = por %p42, %p43
    %p45 = scmp.ne.s32.totalorder %s34, %s35
    %p46 = scmp.eq.s32.totalorder %s14, 0
    %p47 = por %p45, %p46
    %p48 = scmp.ne.s32.totalorder %s34, %s35
    %p49 = scmp.eq.s32.totalorder %s15, 1
    %p50 = por %p48, %p49
    %p52 = scmp.ne.s32.totalorder %s35, %s51
    %p53 = scmp.eq.s32.totalorder %s15, 0
    %p54 = por %p52, %p53
    %s56 = sadd.s32 %s55, 1
    %p59 = scmp.eq.s32.totalorder %s9, 1
    %p60 = scmp.ne.s32.totalorder %s55, %s57
    %p61 = scmp.eq.s32.totalorder %s9, 0
    %p62 = por %p60, %p61
    %p63 = scmp.ne.s32.totalorder %s55, %s57
    %p64 = scmp.eq.s32.totalorder %s14, 1
    %p65 = por %p63, %p64
    %p66 = scmp.ne.s32.totalorder %s57, %s58
    %p67 = scmp.eq.s32.totalorder %s14, 0
    %p68 = por %p66, %p67
    %p69 = scmp.ne.s32.totalorder %s57, %s58
    %p70 = scmp.eq.s32.totalorder %s15, 1
    %p71 = por %p69, %p70
    %p73 = scmp.ne.s32.totalorder %s58, %s72
    %p74 = scmp.eq.s32.totalorder %s15, 0
    %p75 = por %p73, %p74
    %s77 = sadd.s32 %s76, 1
    %p80 = scmp.eq.s32.totalorder %s9, 1
    %p81 = scmp.ne.s32.totalorder %s76, %s78
    %p82 = scmp.eq.s32.totalorder %s9, 0
    %p83 = por %p81, %p82
    %p84 = scmp.ne.s32.totalorder %s76, %s78
    %p85 = scmp.eq.s32.totalorder %s14, 1
    %p86 = por %p84, %p85
    %p87 = scmp.ne.s32.totalorder %s78, %s79
    %p88 = scmp.eq.s32.totalorder %s14, 0
    %p89 = por %p87, %p88
    %p90 = scmp.ne.s32.totalorder %s78, %s79
    %p91 = scmp.eq.s32.totalorder %s15, 1
    %p92 = por %p90, %p91
    %p94 = scmp.ne.s32.totalorder %s79, %s93
    %p95 = scmp.eq.s32.totalorder %s15, 0
    %p96 = por %p94, %p95
    %s97 = ssub.s32 %s16, %s28
    %s98 = ssub.s32 %s17, %s24
    %s99 = sor.u32 %s97, %s98
    %p100 = scmp.eq.s32.totalorder %s99, 0
    %s102 = sadd.s32 %s101, 1
    %s103 = scalar_select %p100, %s101, %s102
    %p106 = pneg %p100
    %p107 = scmp.eq.s32.totalorder %s9, 1
    %p108 = por %p106, %p107
    %p109 = scmp.ne.s32.totalorder %s101, %s104
    %p110 = scmp.eq.s32.totalorder %s9, 0
    %p111 = por %p109, %p110
    %p112 = scmp.ne.s32.totalorder %s101, %s104
    %p113 = scmp.eq.s32.totalorder %s14, 1
    %p114 = por %p112, %p113
    %p115 = scmp.ne.s32.totalorder %s104, %s105
    %p116 = scmp.eq.s32.totalorder %s14, 0
    %p117 = por %p115, %p116
    %p118 = scmp.ne.s32.totalorder %s104, %s105
    %p119 = scmp.eq.s32.totalorder %s15, 1
    %p120 = por %p118, %p119
    %p122 = scmp.ne.s32.totalorder %s105, %s121
    %p123 = scmp.eq.s32.totalorder %s15, 0
    %p124 = por %p122, %p123
    %p125 = scmp.le.s32.totalorder 1, %s9
    %p126 = scmp.lt.s32.totalorder %s9, 3
    %p127 = pnand %p125, %p126
    %p128 = pneg %p127
    // Predicated region
    $region9: #{tpu_custom_call.1} parent=5 // pred_check
      _
    $region10: #{tpu_custom_call.1} parent=5 // pred_check_branch
      %130 = sbr.rel (%p127) target = $region12
    $region11: #{tpu_custom_call.1} parent=5 // pred_region
      %s131 = ssub.s32 %s9, 1
      // Predicated region
      $region13: #{tpu_custom_call.1} parent=11 // pred_check
        %p132 = pneg %p68
      $region14: #{tpu_custom_call.1} parent=11 // pred_check_branch
        %134 = sbr.rel (%p132) target = $region16
      $region15: #{tpu_custom_call.1} parent=11 // pred_region
        _
      $region16: #{tpu_custom_call.1} parent=11 // pred_fallthru
        _
      // Predicated region
      $region17: #{tpu_custom_call.1} parent=11 // pred_check
        %p135 = pneg %p89
      $region18: #{tpu_custom_call.1} parent=11 // pred_check_branch
        %137 = sbr.rel (%p135) target = $region20
      $region19: #{tpu_custom_call.1} parent=11 // pred_region
        _
      $region20: #{tpu_custom_call.1} parent=11 // pred_fallthru
        _
    $region12: #{tpu_custom_call.1} parent=5 // pred_fallthru
      _
    %p138 = scmp.lt.s32.totalorder %s9, 2
    // Predicated region
    $region21: #{tpu_custom_call.1} parent=5 // pred_check
      %p139 = pneg %p138
    $region22: #{tpu_custom_call.1} parent=5 // pred_check_branch
      %141 = sbr.rel (%p139) target = $region24
    $region23: #{tpu_custom_call.1} parent=5 // pred_region
      // Predicated region
      $region25: #{tpu_custom_call.1} parent=23 // pred_check
        %p142 = pneg %p41
      $region26: #{tpu_custom_call.1} parent=23 // pred_check_branch
        %144 = sbr.rel (%p142) target = $region28
      $region27: #{tpu_custom_call.1} parent=23 // pred_region
        %p145 = scmp.lt.s32.totalorder %s16, 1
        %s146 = scalar_select %p145, %s16, 1
        %s147 = smul.addr %s146, 24
        %s148 = smul.addr %s147, 4
        %s149 = scalar_lea.vmem %s0, %s148
      $region28: #{tpu_custom_call.1} parent=23 // pred_fallthru
        _
    $region24: #{tpu_custom_call.1} parent=5 // pred_fallthru
      _
    %p150 = scmp.le.s32.totalorder 1, %s9
    %p151 = scmp.lt.s32.totalorder %s9, 3
    %p152 = pnand %p150, %p151
    %p153 = pneg %p152
    // Predicated region
    $region29: #{tpu_custom_call.1} parent=5 // pred_check
      _
    $region30: #{tpu_custom_call.1} parent=5 // pred_check_branch
      %155 = sbr.rel (%p152) target = $region32
    $region31: #{tpu_custom_call.1} parent=5 // pred_region
      %s156 = ssub.s32 %s9, 1
      %p157 = scmp.lt.s32.totalorder %s18, 1
      %s158 = scalar_select %p157, %s18, 1
      %s159 = smul.addr %s158, 24
      %s160 = smul.addr %s159, 4
      %s161 = scalar_lea.vmem %s0, %s160
      %p162 = pneg %p47
      %p163 = pneg %p44
      %p164 = pneg %p68
      %p165 = pneg %p65
      %p166 = pneg %p89
      %p167 = pneg %p86
      %p168 = pneg %p117
      %p169 = pneg %p114
      %s170 = smul.u32 10, %s19
      %p171 = scmp.lt.s32.totalorder %s18, 1
      %s172 = scalar_select %p171, %s18, 1
      %p173 = scmp.lt.s32.totalorder %s170, 9
      %s174 = scalar_select %p173, %s170, 9
      %s175 = smul.addr %s174, 2
      %s176 = smul.addr %s172, 20
      %s177 = sadd.s32 %s175, %s176
      %s178 = smul.addr %s177, 4
      %s179 = scalar_lea.vmem %s3, %s178
      %p180 = scmp.lt.s32.totalorder %s18, 1
      %s181 = scalar_select %p180, %s18, 1
      %s182 = smul.addr %s181, 24
      %s183 = smul.addr %s182, 4
      %s184 = scalar_lea.vmem %s0, %s183
      %s185 = smul.u32 10, %s19
      %p186 = scmp.lt.s32.totalorder %s18, 1
      %s187 = scalar_select %p186, %s18, 1
      %p188 = scmp.lt.s32.totalorder %s185, 9
      %s189 = scalar_select %p188, %s185, 9
      %s190 = smul.addr %s189, 2
      %s191 = smul.addr %s187, 20
      %s192 = sadd.s32 %s190, %s191
      %s193 = smul.addr %s192, 4
      %s194 = scalar_lea.vmem %s3, %s193
      %s195 = smul.u32 10, %s19
      %s197 = smul.u32 %s19, 10
      %s198 = smul.u32 %s197, 2
      %s199 = smul.addr %s198, 4
      %s200 = scalar_lea.vmem %s184, %s199
      %v201 = vld [vmem:[%s200] sm:$0xf]
      %v202 = vld [vmem:[%s200 + $0x4] sm:$0x3]
      %v203 = vld [vmem:[%s200 + $0x8] sm:$0xf]
      %v204 = vld [vmem:[%s200 + $0xc] sm:$0x3]
      %v205 = vld [vmem:[%s200 + $0x10] sm:$0xf]
      %v206 = vld [vmem:[%s200 + $0x14] sm:$0x3]
      %v207 = vld [vmem:[%s200 + $0x18] sm:$0xf]
      %v208 = vld [vmem:[%s200 + $0x1c] sm:$0x3]
      %v209 = vld [vmem:[%s200 + $0x20] sm:$0xf]
      %v210 = vld [vmem:[%s200 + $0x24] sm:$0x3]
      %v211 = vld [vmem:[%s200 + $0x28] sm:$0xf]
      %v212 = vld [vmem:[%s200 + $0x2c] sm:$0x3]
      %v213 = vld [vmem:[%s200 + $0x30] sm:$0xf]
      %v214 = vld [vmem:[%s200 + $0x34] sm:$0x3]
      %v215 = vld [vmem:[%s200 + $0x38] sm:$0xf]
      %v216 = vld [vmem:[%s200 + $0x3c] sm:$0x3]
      %v217 = vld [vmem:[%s200 + $0x40] sm:$0xf]
      %v218 = vld [vmem:[%s200 + $0x44] sm:$0x3]
      %v219 = vld [vmem:[%s200 + $0x48] sm:$0xf]
      %v220 = vld [vmem:[%s200 + $0x4c] sm:$0x3]
      %v242 = vunpack.c.l.s4 1966171168
      %v243 = vunpack.c.0.s8 %v242
      %v244 = vlaneseq
      %v245 = vshrl.u32 %v244, 7
      %v246 = vsub.s32 %v243, %v245
      %v247 = vrot.slane %v201, %v246
      %v248 = vcombine.high %v247, %v247
      %v250 = vunpack.c.l.s4 1966171168
      %v251 = vunpack.c.0.s8 %v250
      %v252 = vlaneseq
      %v253 = vshrl.u32 %v252, 7
      %v254 = vsub.s32 %v251, %v253
      %v255 = vrot.slane %v247, %v254
      %v257 = vunpack.c.l.s4 1966171168
      %v258 = vunpack.c.0.s8 %v257
      %v259 = vlaneseq
      %v260 = vshrl.u32 %v259, 7
      %v261 = vsub.s32 %v258, %v260
      %v262 = vrot.slane %v248, %v261
      %v263 = vcombine.high %v255, %v255
      %v264 = vcombine.high %v262, %v262
      %v266 = vunpack.c.l.s4 1966171168
      %v267 = vunpack.c.0.s8 %v266
      %v268 = vlaneseq
      %v269 = vshrl.u32 %v268, 7
      %v270 = vsub.s32 %v267, %v269
      %v271 = vrot.slane %v202, %v270
      %v273 = vunpack.c.l.s4 1966171168
      %v274 = vunpack.c.0.s8 %v273
      %v275 = vlaneseq
      %v276 = vshrl.u32 %v275, 7
      %v277 = vsub.s32 %v274, %v276
      %v278 = vrot.slane %v271, %v277
      %v280 = vunpack.c.l.s4 1966171168
      %v281 = vunpack.c.0.s8 %v280
      %v282 = vlaneseq
      %v283 = vshrl.u32 %v282, 7
      %v284 = vsub.s32 %v281, %v283
      %v285 = vrot.slane %v203, %v284
      %v286 = vcombine.high %v285, %v285
      %v288 = vunpack.c.l.s4 1966171168
      %v289 = vunpack.c.0.s8 %v288
      %v290 = vlaneseq
      %v291 = vshrl.u32 %v290, 7
      %v292 = vsub.s32 %v289, %v291
      %v293 = vrot.slane %v285, %v292
      %v295 = vunpack.c.l.s4 1966171168
      %v296 = vunpack.c.0.s8 %v295
      %v297 = vlaneseq
      %v298 = vshrl.u32 %v297, 7
      %v299 = vsub.s32 %v296, %v298
      %v300 = vrot.slane %v286, %v299
      %v301 = vcombine.high %v293, %v293
      %v302 = vcombine.high %v300, %v300
      %v304 = vunpack.c.l.s4 1966171168
      %v305 = vunpack.c.0.s8 %v304
      %v306 = vlaneseq
      %v307 = vshrl.u32 %v306, 7
      %v308 = vsub.s32 %v305, %v307
      %v309 = vrot.slane %v204, %v308
      %v311 = vunpack.c.l.s4 1966171168
      %v312 = vunpack.c.0.s8 %v311
      %v313 = vlaneseq
      %v314 = vshrl.u32 %v313, 7
      %v315 = vsub.s32 %v312, %v314
      %v316 = vrot.slane %v309, %v315
      %v318 = vunpack.c.l.s4 1966171168
      %v319 = vunpack.c.0.s8 %v318
      %v320 = vlaneseq
      %v321 = vshrl.u32 %v320, 7
      %v322 = vsub.s32 %v319, %v321
      %v323 = vrot.slane %v205, %v322
      %v324 = vcombine.high %v323, %v323
      %v326 = vunpack.c.l.s4 1966171168
      %v327 = vunpack.c.0.s8 %v326
      %v328 = vlaneseq
      %v329 = vshrl.u32 %v328, 7
      %v330 = vsub.s32 %v327, %v329
      %v331 = vrot.slane %v323, %v330
      %v333 = vunpack.c.l.s4 1966171168
      %v334 = vunpack.c.0.s8 %v333
      %v335 = vlaneseq
      %v336 = vshrl.u32 %v335, 7
      %v337 = vsub.s32 %v334, %v336
      %v338 = vrot.slane %v324, %v337
      %v339 = vcombine.high %v331, %v331
      %v340 = vcombine.high %v338, %v338
      %v342 = vunpack.c.l.s4 1966171168
      %v343 = vunpack.c.0.s8 %v342
      %v344 = vlaneseq
      %v345 = vshrl.u32 %v344, 7
      %v346 = vsub.s32 %v343, %v345
      %v347 = vrot.slane %v206, %v346
      %v349 = vunpack.c.l.s4 1966171168
      %v350 = vunpack.c.0.s8 %v349
      %v351 = vlaneseq
      %v352 = vshrl.u32 %v351, 7
      %v353 = vsub.s32 %v350, %v352
      %v354 = vrot.slane %v347, %v353
      %v356 = vunpack.c.l.s4 1966171168
      %v357 = vunpack.c.0.s8 %v356
      %v358 = vlaneseq
      %v359 = vshrl.u32 %v358, 7
      %v360 = vsub.s32 %v357, %v359
      %v361 = vrot.slane %v207, %v360
      %v362 = vcombine.high %v361, %v361
      %v364 = vunpack.c.l.s4 1966171168
      %v365 = vunpack.c.0.s8 %v364
      %v366 = vlaneseq
      %v367 = vshrl.u32 %v366, 7
      %v368 = vsub.s32 %v365, %v367
      %v369 = vrot.slane %v361, %v368
      %v371 = vunpack.c.l.s4 1966171168
      %v372 = vunpack.c.0.s8 %v371
      %v373 = vlaneseq
      %v374 = vshrl.u32 %v373, 7
      %v375 = vsub.s32 %v372, %v374
      %v376 = vrot.slane %v362, %v375
      %v377 = vcombine.high %v369, %v369
      %v378 = vcombine.high %v376, %v376
      %v380 = vunpack.c.l.s4 1966171168
      %v381 = vunpack.c.0.s8 %v380
      %v382 = vlaneseq
      %v383 = vshrl.u32 %v382, 7
      %v384 = vsub.s32 %v381, %v383
      %v385 = vrot.slane %v208, %v384
      %v387 = vunpack.c.l.s4 1966171168
      %v388 = vunpack.c.0.s8 %v387
      %v389 = vlaneseq
      %v390 = vshrl.u32 %v389, 7
      %v391 = vsub.s32 %v388, %v390
      %v392 = vrot.slane %v385, %v391
      %v394 = vunpack.c.l.s4 1966171168
      %v395 = vunpack.c.0.s8 %v394
      %v396 = vlaneseq
      %v397 = vshrl.u32 %v396, 7
      %v398 = vsub.s32 %v395, %v397
      %v399 = vrot.slane %v209, %v398
      %v400 = vcombine.high %v399, %v399
      %v402 = vunpack.c.l.s4 1966171168
      %v403 = vunpack.c.0.s8 %v402
      %v404 = vlaneseq
      %v405 = vshrl.u32 %v404, 7
      %v406 = vsub.s32 %v403, %v405
      %v407 = vrot.slane %v399, %v406
      %v409 = vunpack.c.l.s4 1966171168
      %v410 = vunpack.c.0.s8 %v409
      %v411 = vlaneseq
      %v412 = vshrl.u32 %v411, 7
      %v413 = vsub.s32 %v410, %v412
      %v414 = vrot.slane %v400, %v413
      %v415 = vcombine.high %v407, %v407
      %v416 = vcombine.high %v414, %v414
      %v418 = vunpack.c.l.s4 1966171168
      %v419 = vunpack.c.0.s8 %v418
      %v420 = vlaneseq
      %v421 = vshrl.u32 %v420, 7
      %v422 = vsub.s32 %v419, %v421
      %v423 = vrot.slane %v210, %v422
      %v425 = vunpack.c.l.s4 1966171168
      %v426 = vunpack.c.0.s8 %v425
      %v427 = vlaneseq
      %v428 = vshrl.u32 %v427, 7
      %v429 = vsub.s32 %v426, %v428
      %v430 = vrot.slane %v423, %v429
      %v432 = vunpack.c.l.s4 1966171168
      %v433 = vunpack.c.0.s8 %v432
      %v434 = vlaneseq
      %v435 = vshrl.u32 %v434, 7
      %v436 = vsub.s32 %v433, %v435
      %v437 = vrot.slane %v211, %v436
      %v438 = vcombine.high %v437, %v437
      %v440 = vunpack.c.l.s4 1966171168
      %v441 = vunpack.c.0.s8 %v440
      %v442 = vlaneseq
      %v443 = vshrl.u32 %v442, 7
      %v444 = vsub.s32 %v441, %v443
      %v445 = vrot.slane %v437, %v444
      %v447 = vunpack.c.l.s4 1966171168
      %v448 = vunpack.c.0.s8 %v447
      %v449 = vlaneseq
      %v450 = vshrl.u32 %v449, 7
      %v451 = vsub.s32 %v448, %v450
      %v452 = vrot.slane %v438, %v451
      %v453 = vcombine.high %v445, %v445
      %v454 = vcombine.high %v452, %v452
      %v456 = vunpack.c.l.s4 1966171168
      %v457 = vunpack.c.0.s8 %v456
      %v458 = vlaneseq
      %v459 = vshrl.u32 %v458, 7
      %v460 = vsub.s32 %v457, %v459
      %v461 = vrot.slane %v212, %v460
      %v463 = vunpack.c.l.s4 1966171168
      %v464 = vunpack.c.0.s8 %v463
      %v465 = vlaneseq
      %v466 = vshrl.u32 %v465, 7
      %v467 = vsub.s32 %v464, %v466
      %v468 = vrot.slane %v461, %v467
      %v470 = vunpack.c.l.s4 1966171168
      %v471 = vunpack.c.0.s8 %v470
      %v472 = vlaneseq
      %v473 = vshrl.u32 %v472, 7
      %v474 = vsub.s32 %v471, %v473
      %v475 = vrot.slane %v213, %v474
      %v476 = vcombine.high %v475, %v475
      %v478 = vunpack.c.l.s4 1966171168
      %v479 = vunpack.c.0.s8 %v478
      %v480 = vlaneseq
      %v481 = vshrl.u32 %v480, 7
      %v482 = vsub.s32 %v479, %v481
      %v483 = vrot.slane %v475, %v482
      %v485 = vunpack.c.l.s4 1966171168
      %v486 = vunpack.c.0.s8 %v485
      %v487 = vlaneseq
      %v488 = vshrl.u32 %v487, 7
      %v489 = vsub.s32 %v486, %v488
      %v490 = vrot.slane %v476, %v489
      %v491 = vcombine.high %v483, %v483
      %v492 = vcombine.high %v490, %v490
      %v494 = vunpack.c.l.s4 1966171168
      %v495 = vunpack.c.0.s8 %v494
      %v496 = vlaneseq
      %v497 = vshrl.u32 %v496, 7
      %v498 = vsub.s32 %v495, %v497
      %v499 = vrot.slane %v214, %v498
      %v501 = vunpack.c.l.s4 1966171168
      %v502 = vunpack.c.0.s8 %v501
      %v503 = vlaneseq
      %v504 = vshrl.u32 %v503, 7
      %v505 = vsub.s32 %v502, %v504
      %v506 = vrot.slane %v499, %v505
      %v508 = vunpack.c.l.s4 1966171168
      %v509 = vunpack.c.0.s8 %v508
      %v510 = vlaneseq
      %v511 = vshrl.u32 %v510, 7
      %v512 = vsub.s32 %v509, %v511
      %v513 = vrot.slane %v215, %v512
      %v514 = vcombine.high %v513, %v513
      %v516 = vunpack.c.l.s4 1966171168
      %v517 = vunpack.c.0.s8 %v516
      %v518 = vlaneseq
      %v519 = vshrl.u32 %v518, 7
      %v520 = vsub.s32 %v517, %v519
      %v521 = vrot.slane %v513, %v520
      %v523 = vunpack.c.l.s4 1966171168
      %v524 = vunpack.c.0.s8 %v523
      %v525 = vlaneseq
      %v526 = vshrl.u32 %v525, 7
      %v527 = vsub.s32 %v524, %v526
      %v528 = vrot.slane %v514, %v527
      %v529 = vcombine.high %v521, %v521
      %v530 = vcombine.high %v528, %v528
      %v532 = vunpack.c.l.s4 1966171168
      %v533 = vunpack.c.0.s8 %v532
      %v534 = vlaneseq
      %v535 = vshrl.u32 %v534, 7
      %v536 = vsub.s32 %v533, %v535
      %v537 = vrot.slane %v216, %v536
      %v539 = vunpack.c.l.s4 1966171168
      %v540 = vunpack.c.0.s8 %v539
      %v541 = vlaneseq
      %v542 = vshrl.u32 %v541, 7
      %v543 = vsub.s32 %v540, %v542
      %v544 = vrot.slane %v537, %v543
      %v546 = vunpack.c.l.s4 1966171168
      %v547 = vunpack.c.0.s8 %v546
      %v548 = vlaneseq
      %v549 = vshrl.u32 %v548, 7
      %v550 = vsub.s32 %v547, %v549
      %v551 = vrot.slane %v217, %v550
      %v552 = vcombine.high %v551, %v551
      %v554 = vunpack.c.l.s4 1966171168
      %v555 = vunpack.c.0.s8 %v554
      %v556 = vlaneseq
      %v557 = vshrl.u32 %v556, 7
      %v558 = vsub.s32 %v555, %v557
      %v559 = vrot.slane %v551, %v558
      %v561 = vunpack.c.l.s4 1966171168
      %v562 = vunpack.c.0.s8 %v561
      %v563 = vlaneseq
      %v564 = vshrl.u32 %v563, 7
      %v565 = vsub.s32 %v562, %v564
      %v566 = vrot.slane %v552, %v565
      %v567 = vcombine.high %v559, %v559
      %v568 = vcombine.high %v566, %v566
      %v570 = vunpack.c.l.s4 1966171168
      %v571 = vunpack.c.0.s8 %v570
      %v572 = vlaneseq
      %v573 = vshrl.u32 %v572, 7
      %v574 = vsub.s32 %v571, %v573
      %v575 = vrot.slane %v218, %v574
      %v577 = vunpack.c.l.s4 1966171168
      %v578 = vunpack.c.0.s8 %v577
      %v579 = vlaneseq
      %v580 = vshrl.u32 %v579, 7
      %v581 = vsub.s32 %v578, %v580
      %v582 = vrot.slane %v575, %v581
      %v584 = vunpack.c.l.s4 1966171168
      %v585 = vunpack.c.0.s8 %v584
      %v586 = vlaneseq
      %v587 = vshrl.u32 %v586, 7
      %v588 = vsub.s32 %v585, %v587
      %v589 = vrot.slane %v219, %v588
      %v590 = vcombine.high %v589, %v589
      %v592 = vunpack.c.l.s4 1966171168
      %v593 = vunpack.c.0.s8 %v592
      %v594 = vlaneseq
      %v595 = vshrl.u32 %v594, 7
      %v596 = vsub.s32 %v593, %v595
      %v597 = vrot.slane %v589, %v596
      %v599 = vunpack.c.l.s4 1966171168
      %v600 = vunpack.c.0.s8 %v599
      %v601 = vlaneseq
      %v602 = vshrl.u32 %v601, 7
      %v603 = vsub.s32 %v600, %v602
      %v604 = vrot.slane %v590, %v603
      %v605 = vcombine.high %v597, %v597
      %v606 = vcombine.high %v604, %v604
      %v608 = vunpack.c.l.s4 1966171168
      %v609 = vunpack.c.0.s8 %v608
      %v610 = vlaneseq
      %v611 = vshrl.u32 %v610, 7
      %v612 = vsub.s32 %v609, %v611
      %v613 = vrot.slane %v220, %v612
      %v615 = vunpack.c.l.s4 1966171168
      %v616 = vunpack.c.0.s8 %v615
      %v617 = vlaneseq
      %v618 = vshrl.u32 %v617, 7
      %v619 = vsub.s32 %v616, %v618
      %v620 = vrot.slane %v613, %v619
      %v621 = vld [vmem:[%s1] sm:$0xf]
      %v622 = vcombine.high %v271, %v271
      %v624 = vunpack.c.l.s4 1966171168
      %v625 = vunpack.c.0.s8 %v624
      %v626 = vlaneseq
      %v627 = vshrl.u32 %v626, 7
      %v628 = vsub.s32 %v625, %v627
      %v629 = vrot.slane %v622, %v628
      %v630 = vcombine.high %v309, %v309
      %v632 = vunpack.c.l.s4 1966171168
      %v633 = vunpack.c.0.s8 %v632
      %v634 = vlaneseq
      %v635 = vshrl.u32 %v634, 7
      %v636 = vsub.s32 %v633, %v635
      %v637 = vrot.slane %v630, %v636
      %v638 = vcombine.high %v347, %v347
      %v640 = vunpack.c.l.s4 1966171168
      %v641 = vunpack.c.0.s8 %v640
      %v642 = vlaneseq
      %v643 = vshrl.u32 %v642, 7
      %v644 = vsub.s32 %v641, %v643
      %v645 = vrot.slane %v638, %v644
      %v646 = vcombine.high %v385, %v385
      %v648 = vunpack.c.l.s4 1966171168
      %v649 = vunpack.c.0.s8 %v648
      %v650 = vlaneseq
      %v651 = vshrl.u32 %v650, 7
      %v652 = vsub.s32 %v649, %v651
      %v653 = vrot.slane %v646, %v652
      %v654 = vcombine.high %v423, %v423
      %v656 = vunpack.c.l.s4 1966171168
      %v657 = vunpack.c.0.s8 %v656
      %v658 = vlaneseq
      %v659 = vshrl.u32 %v658, 7
      %v660 = vsub.s32 %v657, %v659
      %v661 = vrot.slane %v654, %v660
      %v662 = vcombine.high %v461, %v461
      %v664 = vunpack.c.l.s4 1966171168
      %v665 = vunpack.c.0.s8 %v664
      %v666 = vlaneseq
      %v667 = vshrl.u32 %v666, 7
      %v668 = vsub.s32 %v665, %v667
      %v669 = vrot.slane %v662, %v668
      %v670 = vcombine.high %v499, %v499
      %v672 = vunpack.c.l.s4 1966171168
      %v673 = vunpack.c.0.s8 %v672
      %v674 = vlaneseq
      %v675 = vshrl.u32 %v674, 7
      %v676 = vsub.s32 %v673, %v675
      %v677 = vrot.slane %v670, %v676
      %v678 = vcombine.high %v537, %v537
      %v680 = vunpack.c.l.s4 1966171168
      %v681 = vunpack.c.0.s8 %v680
      %v682 = vlaneseq
      %v683 = vshrl.u32 %v682, 7
      %v684 = vsub.s32 %v681, %v683
      %v685 = vrot.slane %v678, %v684
      %v686 = vcombine.high %v575, %v575
      %v688 = vunpack.c.l.s4 1966171168
      %v689 = vunpack.c.0.s8 %v688
      %v690 = vlaneseq
      %v691 = vshrl.u32 %v690, 7
      %v692 = vsub.s32 %v689, %v691
      %v693 = vrot.slane %v686, %v692
      %v694 = vcombine.high %v613, %v613
      %v696 = vunpack.c.l.s4 1966171168
      %v697 = vunpack.c.0.s8 %v696
      %v698 = vlaneseq
      %v699 = vshrl.u32 %v698, 7
      %v700 = vsub.s32 %v697, %v699
      %v701 = vrot.slane %v694, %v700
      %vm702 = vsmask.f32 256
      %vm703 = vsmask.f32 1284
      %vm704 = vmor %vm702, %vm703
      %vm705 = vsmask.f32 2312
      %vm706 = vmor %vm704, %vm705
      %vm707 = vsmask.f32 3340
      %vm708 = vmor %vm706, %vm707
      %vm709 = vsmask.f32 4368
      %vm710 = vmor %vm708, %vm709
      %vm711 = vsmask.f32 5396
      %vm712 = vmor %vm710, %vm711
      %vm713 = vsmask.f32 6424
      %vm714 = vmor %vm712, %vm713
      %vm715 = vsmask.f32 7452
      %vm716 = vmor %vm714, %vm715
      %v718 = vshrl.u32 %v255, 16
      %v720 = vrot.slane %v718, 7
      %v721 = vrot.slane %v720, 1
      %v723 = vshll.u32 %v262, 16
      %v725 = vsel %vm716, %v721, %v723
      %v726 = vshrl.u32 %v262, 16
      %v728 = vrot.slane %v726, 7
      %v729 = vrot.slane %v728, 1
      %v731 = vshll.u32 %v263, 16
      %v733 = vsel %vm716, %v729, %v731
      %v734 = vshrl.u32 %v263, 16
      %v736 = vrot.slane %v734, 7
      %v737 = vrot.slane %v736, 1
      %v739 = vshll.u32 %v264, 16
      %v741 = vsel %vm716, %v737, %v739
      %v742 = vshrl.u32 %v264, 16
      %v744 = vrot.slane %v742, 7
      %v745 = vrot.slane %v744, 1
      %v747 = vshll.u32 %v278, 16
      %v749 = vsel %vm716, %v745, %v747
      %v750 = vshrl.u32 %v278, 16
      %v752 = vrot.slane %v750, 7
      %v753 = vrot.slane %v752, 1
      %v755 = vshll.u32 %v629, 16
      %v757 = vsel %vm716, %v753, %v755
      %v759 = vshrl.u32 %v293, 16
      %v761 = vrot.slane %v759, 7
      %v762 = vrot.slane %v761, 1
      %v764 = vshll.u32 %v300, 16
      %v766 = vsel %vm716, %v762, %v764
      %v767 = vshrl.u32 %v300, 16
      %v769 = vrot.slane %v767, 7
      %v770 = vrot.slane %v769, 1
      %v772 = vshll.u32 %v301, 16
      %v774 = vsel %vm716, %v770, %v772
      %v775 = vshrl.u32 %v301, 16
      %v777 = vrot.slane %v775, 7
      %v778 = vrot.slane %v777, 1
      %v780 = vshll.u32 %v302, 16
      %v782 = vsel %vm716, %v778, %v780
      %v783 = vshrl.u32 %v302, 16
      %v785 = vrot.slane %v783, 7
      %v786 = vrot.slane %v785, 1
      %v788 = vshll.u32 %v316, 16
      %v790 = vsel %vm716, %v786, %v788
      %v791 = vshrl.u32 %v316, 16
      %v793 = vrot.slane %v791, 7
      %v794 = vrot.slane %v793, 1
      %v796 = vshll.u32 %v637, 16
      %v798 = vsel %vm716, %v794, %v796
      %v800 = vshrl.u32 %v331, 16
      %v802 = vrot.slane %v800, 7
      %v803 = vrot.slane %v802, 1
      %v805 = vshll.u32 %v338, 16
      %v807 = vsel %vm716, %v803, %v805
      %v808 = vshrl.u32 %v338, 16
      %v810 = vrot.slane %v808, 7
      %v811 = vrot.slane %v810, 1
      %v813 = vshll.u32 %v339, 16
      %v815 = vsel %vm716, %v811, %v813
      %v816 = vshrl.u32 %v339, 16
      %v818 = vrot.slane %v816, 7
      %v819 = vrot.slane %v818, 1
      %v821 = vshll.u32 %v340, 16
      %v823 = vsel %vm716, %v819, %v821
      %v824 = vshrl.u32 %v340, 16
      %v826 = vrot.slane %v824, 7
      %v827 = vrot.slane %v826, 1
      %v829 = vshll.u32 %v354, 16
      %v831 = vsel %vm716, %v827, %v829
      %v832 = vshrl.u32 %v354, 16
      %v834 = vrot.slane %v832, 7
      %v835 = vrot.slane %v834, 1
      %v837 = vshll.u32 %v645, 16
      %v839 = vsel %vm716, %v835, %v837
      %v841 = vshrl.u32 %v369, 16
      %v843 = vrot.slane %v841, 7
      %v844 = vrot.slane %v843, 1
      %v846 = vshll.u32 %v376, 16
      %v848 = vsel %vm716, %v844, %v846
      %v849 = vshrl.u32 %v376, 16
      %v851 = vrot.slane %v849, 7
      %v852 = vrot.slane %v851, 1
      %v854 = vshll.u32 %v377, 16
      %v856 = vsel %vm716, %v852, %v854
      %v857 = vshrl.u32 %v377, 16
      %v859 = vrot.slane %v857, 7
      %v860 = vrot.slane %v859, 1
      %v862 = vshll.u32 %v378, 16
      %v864 = vsel %vm716, %v860, %v862
      %v865 = vshrl.u32 %v378, 16
      %v867 = vrot.slane %v865, 7
      %v868 = vrot.slane %v867, 1
      %v870 = vshll.u32 %v392, 16
      %v872 = vsel %vm716, %v868, %v870
      %v873 = vshrl.u32 %v392, 16
      %v875 = vrot.slane %v873, 7
      %v876 = vrot.slane %v875, 1
      %v878 = vshll.u32 %v653, 16
      %v880 = vsel %vm716, %v876, %v878
      %v882 = vshrl.u32 %v407, 16
      %v884 = vrot.slane %v882, 7
      %v885 = vrot.slane %v884, 1
      %v887 = vshll.u32 %v414, 16
      %v889 = vsel %vm716, %v885, %v887
      %v890 = vshrl.u32 %v414, 16
      %v892 = vrot.slane %v890, 7
      %v893 = vrot.slane %v892, 1
      %v895 = vshll.u32 %v415, 16
      %v897 = vsel %vm716, %v893, %v895
      %v898 = vshrl.u32 %v415, 16
      %v900 = vrot.slane %v898, 7
      %v901 = vrot.slane %v900, 1
      %v903 = vshll.u32 %v416, 16
      %v905 = vsel %vm716, %v901, %v903
      %v906 = vshrl.u32 %v416, 16
      %v908 = vrot.slane %v906, 7
      %v909 = vrot.slane %v908, 1
      %v911 = vshll.u32 %v430, 16
      %v913 = vsel %vm716, %v909, %v911
      %v914 = vshrl.u32 %v430, 16
      %v916 = vrot.slane %v914, 7
      %v917 = vrot.slane %v916, 1
      %v919 = vshll.u32 %v661, 16
      %v921 = vsel %vm716, %v917, %v919
      %v923 = vshrl.u32 %v445, 16
      %v925 = vrot.slane %v923, 7
      %v926 = vrot.slane %v925, 1
      %v928 = vshll.u32 %v452, 16
      %v930 = vsel %vm716, %v926, %v928
      %v931 = vshrl.u32 %v452, 16
      %v933 = vrot.slane %v931, 7
      %v934 = vrot.slane %v933, 1
      %v936 = vshll.u32 %v453, 16
      %v938 = vsel %vm716, %v934, %v936
      %v939 = vshrl.u32 %v453, 16
      %v941 = vrot.slane %v939, 7
      %v942 = vrot.slane %v941, 1
      %v944 = vshll.u32 %v454, 16
      %v946 = vsel %vm716, %v942, %v944
      %v947 = vshrl.u32 %v454, 16
      %v949 = vrot.slane %v947, 7
      %v950 = vrot.slane %v949, 1
      %v952 = vshll.u32 %v468, 16
      %v954 = vsel %vm716, %v950, %v952
      %v955 = vshrl.u32 %v468, 16
      %v957 = vrot.slane %v955, 7
      %v958 = vrot.slane %v957, 1
      %v960 = vshll.u32 %v669, 16
      %v962 = vsel %vm716, %v958, %v960
      %v964 = vshrl.u32 %v483, 16
      %v966 = vrot.slane %v964, 7
      %v967 = vrot.slane %v966, 1
      %v969 = vshll.u32 %v490, 16
      %v971 = vsel %vm716, %v967, %v969
      %v972 = vshrl.u32 %v490, 16
      %v974 = vrot.slane %v972, 7
      %v975 = vrot.slane %v974, 1
      %v977 = vshll.u32 %v491, 16
      %v979 = vsel %vm716, %v975, %v977
      %v980 = vshrl.u32 %v491, 16
      %v982 = vrot.slane %v980, 7
      %v983 = vrot.slane %v982, 1
      %v985 = vshll.u32 %v492, 16
      %v987 = vsel %vm716, %v983, %v985
      %v988 = vshrl.u32 %v492, 16
      %v990 = vrot.slane %v988, 7
      %v991 = vrot.slane %v990, 1
      %v993 = vshll.u32 %v506, 16
      %v995 = vsel %vm716, %v991, %v993
      %v996 = vshrl.u32 %v506, 16
      %v998 = vrot.slane %v996, 7
      %v999 = vrot.slane %v998, 1
      %v1001 = vshll.u32 %v677, 16
      %v1003 = vsel %vm716, %v999, %v1001
      %v1005 = vshrl.u32 %v521, 16
      %v1007 = vrot.slane %v1005, 7
      %v1008 = vrot.slane %v1007, 1
      %v1010 = vshll.u32 %v528, 16
      %v1012 = vsel %vm716, %v1008, %v1010
      %v1013 = vshrl.u32 %v528, 16
      %v1015 = vrot.slane %v1013, 7
      %v1016 = vrot.slane %v1015, 1
      %v1018 = vshll.u32 %v529, 16
      %v1020 = vsel %vm716, %v1016, %v1018
      %v1021 = vshrl.u32 %v529, 16
      %v1023 = vrot.slane %v1021, 7
      %v1024 = vrot.slane %v1023, 1
      %v1026 = vshll.u32 %v530, 16
      %v1028 = vsel %vm716, %v1024, %v1026
      %v1029 = vshrl.u32 %v530, 16
      %v1031 = vrot.slane %v1029, 7
      %v1032 = vrot.slane %v1031, 1
      %v1034 = vshll.u32 %v544, 16
      %v1036 = vsel %vm716, %v1032, %v1034
      %v1037 = vshrl.u32 %v544, 16
      %v1039 = vrot.slane %v1037, 7
      %v1040 = vrot.slane %v1039, 1
      %v1042 = vshll.u32 %v685, 16
      %v1044 = vsel %vm716, %v1040, %v1042
      %v1046 = vshrl.u32 %v559, 16
      %v1048 = vrot.slane %v1046, 7
      %v1049 = vrot.slane %v1048, 1
      %v1051 = vshll.u32 %v566, 16
      %v1053 = vsel %vm716, %v1049, %v1051
      %v1054 = vshrl.u32 %v566, 16
      %v1056 = vrot.slane %v1054, 7
      %v1057 = vrot.slane %v1056, 1
      %v1059 = vshll.u32 %v567, 16
      %v1061 = vsel %vm716, %v1057, %v1059
      %v1062 = vshrl.u32 %v567, 16
      %v1064 = vrot.slane %v1062, 7
      %v1065 = vrot.slane %v1064, 1
      %v1067 = vshll.u32 %v568, 16
      %v1069 = vsel %vm716, %v1065, %v1067
      %v1070 = vshrl.u32 %v568, 16
      %v1072 = vrot.slane %v1070, 7
      %v1073 = vrot.slane %v1072, 1
      %v1075 = vshll.u32 %v582, 16
      %v1077 = vsel %vm716, %v1073, %v1075
      %v1078 = vshrl.u32 %v582, 16
      %v1080 = vrot.slane %v1078, 7
      %v1081 = vrot.slane %v1080, 1
      %v1083 = vshll.u32 %v693, 16
      %v1085 = vsel %vm716, %v1081, %v1083
      %v1087 = vshrl.u32 %v597, 16
      %v1089 = vrot.slane %v1087, 7
      %v1090 = vrot.slane %v1089, 1
      %v1092 = vshll.u32 %v604, 16
      %v1094 = vsel %vm716, %v1090, %v1092
      %v1095 = vshrl.u32 %v604, 16
      %v1097 = vrot.slane %v1095, 7
      %v1098 = vrot.slane %v1097, 1
      %v1100 = vshll.u32 %v605, 16
      %v1102 = vsel %vm716, %v1098, %v1100
      %v1103 = vshrl.u32 %v605, 16
      %v1105 = vrot.slane %v1103, 7
      %v1106 = vrot.slane %v1105, 1
      %v1108 = vshll.u32 %v606, 16
      %v1110 = vsel %vm716, %v1106, %v1108
      %v1111 = vshrl.u32 %v606, 16
      %v1113 = vrot.slane %v1111, 7
      %v1114 = vrot.slane %v1113, 1
      %v1116 = vshll.u32 %v620, 16
      %v1118 = vsel %vm716, %v1114, %v1116
      %v1119 = vshrl.u32 %v620, 16
      %v1121 = vrot.slane %v1119, 7
      %v1122 = vrot.slane %v1121, 1
      %v1124 = vshll.u32 %v701, 16
      %v1126 = vsel %vm716, %v1122, %v1124
      %v1127 = vld [vmem:[%s1 + $0x4] sm:$0xf]
      %v1128 = vcombine.low %v725, %v733
      %v1129 = vcombine.low %v741, %v749
      %v1130 = vcombine.low %v757, %v766
      %v1131 = vcombine.low %v774, %v782
      %v1133 = vunpack.c.l.s4 1966171168
      %v1134 = vunpack.c.0.s8 %v1133
      %v1135 = vlaneseq
      %v1136 = vshrl.u32 %v1135, 7
      %v1137 = vsub.s32 %v1134, %v1136
      %v1138 = vrot.slane %v1128, %v1137
      %v1140 = vunpack.c.l.s4 1966171168
      %v1141 = vunpack.c.0.s8 %v1140
      %v1142 = vlaneseq
      %v1143 = vshrl.u32 %v1142, 7
      %v1144 = vsub.s32 %v1141, %v1143
      %v1145 = vrot.slane %v1129, %v1144
      %v1147 = vunpack.c.l.s4 1966171168
      %v1148 = vunpack.c.0.s8 %v1147
      %v1149 = vlaneseq
      %v1150 = vshrl.u32 %v1149, 7
      %v1151 = vsub.s32 %v1148, %v1150
      %v1152 = vrot.slane %v1130, %v1151
      %v1154 = vunpack.c.l.s4 1966171168
      %v1155 = vunpack.c.0.s8 %v1154
      %v1156 = vlaneseq
      %v1157 = vshrl.u32 %v1156, 7
      %v1158 = vsub.s32 %v1155, %v1157
      %v1159 = vrot.slane %v1131, %v1158
      %v1160 = vcombine.low %v1138, %v1145
      %v1161 = vcombine.low %v1152, %v1159
      %v1163 = vunpack.c.l.s4 1966171168
      %v1164 = vunpack.c.0.s8 %v1163
      %v1165 = vlaneseq
      %v1166 = vshrl.u32 %v1165, 7
      %v1167 = vsub.s32 %v1164, %v1166
      %v1168 = vrot.slane %v1160, %v1167
      %v1170 = vunpack.c.l.s4 1966171168
      %v1171 = vunpack.c.0.s8 %v1170
      %v1172 = vlaneseq
      %v1173 = vshrl.u32 %v1172, 7
      %v1174 = vsub.s32 %v1171, %v1173
      %v1175 = vrot.slane %v1161, %v1174
      %v1176 = vcombine.low %v1168, %v1175
      %v1177 = vcombine.low %v790, %v798
      %v1178 = vcombine.low %v807, %v815
      %v1179 = vcombine.low %v823, %v831
      %v1180 = vcombine.low %v839, %v848
      %v1182 = vunpack.c.l.s4 1966171168
      %v1183 = vunpack.c.0.s8 %v1182
      %v1184 = vlaneseq
      %v1185 = vshrl.u32 %v1184, 7
      %v1186 = vsub.s32 %v1183, %v1185
      %v1187 = vrot.slane %v1177, %v1186
      %v1189 = vunpack.c.l.s4 1966171168
      %v1190 = vunpack.c.0.s8 %v1189
      %v1191 = vlaneseq
      %v1192 = vshrl.u32 %v1191, 7
      %v1193 = vsub.s32 %v1190, %v1192
      %v1194 = vrot.slane %v1178, %v1193
      %v1196 = vunpack.c.l.s4 1966171168
      %v1197 = vunpack.c.0.s8 %v1196
      %v1198 = vlaneseq
      %v1199 = vshrl.u32 %v1198, 7
      %v1200 = vsub.s32 %v1197, %v1199
      %v1201 = vrot.slane %v1179, %v1200
      %v1203 = vunpack.c.l.s4 1966171168
      %v1204 = vunpack.c.0.s8 %v1203
      %v1205 = vlaneseq
      %v1206 = vshrl.u32 %v1205, 7
      %v1207 = vsub.s32 %v1204, %v1206
      %v1208 = vrot.slane %v1180, %v1207
      %v1209 = vcombine.low %v1187, %v1194
      %v1210 = vcombine.low %v1201, %v1208
      %v1212 = vunpack.c.l.s4 1966171168
      %v1213 = vunpack.c.0.s8 %v1212
      %v1214 = vlaneseq
      %v1215 = vshrl.u32 %v1214, 7
      %v1216 = vsub.s32 %v1213, %v1215
      %v1217 = vrot.slane %v1209, %v1216
      %v1219 = vunpack.c.l.s4 1966171168
      %v1220 = vunpack.c.0.s8 %v1219
      %v1221 = vlaneseq
      %v1222 = vshrl.u32 %v1221, 7
      %v1223 = vsub.s32 %v1220, %v1222
      %v1224 = vrot.slane %v1210, %v1223
      %v1225 = vcombine.low %v1217, %v1224
      %v1226 = vcombine.low %v856, %v864
      %v1227 = vcombine.low %v872, %v880
      %v1228 = vcombine.low %v889, %v897
      %v1229 = vcombine.low %v905, %v913
      %v1231 = vunpack.c.l.s4 1966171168
      %v1232 = vunpack.c.0.s8 %v1231
      %v1233 = vlaneseq
      %v1234 = vshrl.u32 %v1233, 7
      %v1235 = vsub.s32 %v1232, %v1234
      %v1236 = vrot.slane %v1226, %v1235
      %v1238 = vunpack.c.l.s4 1966171168
      %v1239 = vunpack.c.0.s8 %v1238
      %v1240 = vlaneseq
      %v1241 = vshrl.u32 %v1240, 7
      %v1242 = vsub.s32 %v1239, %v1241
      %v1243 = vrot.slane %v1227, %v1242
      %v1245 = vunpack.c.l.s4 1966171168
      %v1246 = vunpack.c.0.s8 %v1245
      %v1247 = vlaneseq
      %v1248 = vshrl.u32 %v1247, 7
      %v1249 = vsub.s32 %v1246, %v1248
      %v1250 = vrot.slane %v1228, %v1249
      %v1252 = vunpack.c.l.s4 1966171168
      %v1253 = vunpack.c.0.s8 %v1252
      %v1254 = vlaneseq
      %v1255 = vshrl.u32 %v1254, 7
      %v1256 = vsub.s32 %v1253, %v1255
      %v1257 = vrot.slane %v1229, %v1256
      %v1258 = vcombine.low %v1236, %v1243
      %v1259 = vcombine.low %v1250, %v1257
      %v1261 = vunpack.c.l.s4 1966171168
      %v1262 = vunpack.c.0.s8 %v1261
      %v1263 = vlaneseq
      %v1264 = vshrl.u32 %v1263, 7
      %v1265 = vsub.s32 %v1262, %v1264
      %v1266 = vrot.slane %v1258, %v1265
      %v1268 = vunpack.c.l.s4 1966171168
      %v1269 = vunpack.c.0.s8 %v1268
      %v1270 = vlaneseq
      %v1271 = vshrl.u32 %v1270, 7
      %v1272 = vsub.s32 %v1269, %v1271
      %v1273 = vrot.slane %v1259, %v1272
      %v1274 = vcombine.low %v1266, %v1273
      %v1275 = vcombine.low %v921, %v930
      %v1276 = vcombine.low %v938, %v946
      %v1277 = vcombine.low %v954, %v962
      %v1278 = vcombine.low %v971, %v979
      %v1280 = vunpack.c.l.s4 1966171168
      %v1281 = vunpack.c.0.s8 %v1280
      %v1282 = vlaneseq
      %v1283 = vshrl.u32 %v1282, 7
      %v1284 = vsub.s32 %v1281, %v1283
      %v1285 = vrot.slane %v1275, %v1284
      %v1287 = vunpack.c.l.s4 1966171168
      %v1288 = vunpack.c.0.s8 %v1287
      %v1289 = vlaneseq
      %v1290 = vshrl.u32 %v1289, 7
      %v1291 = vsub.s32 %v1288, %v1290
      %v1292 = vrot.slane %v1276, %v1291
      %v1294 = vunpack.c.l.s4 1966171168
      %v1295 = vunpack.c.0.s8 %v1294
      %v1296 = vlaneseq
      %v1297 = vshrl.u32 %v1296, 7
      %v1298 = vsub.s32 %v1295, %v1297
      %v1299 = vrot.slane %v1277, %v1298
      %v1301 = vunpack.c.l.s4 1966171168
      %v1302 = vunpack.c.0.s8 %v1301
      %v1303 = vlaneseq
      %v1304 = vshrl.u32 %v1303, 7
      %v1305 = vsub.s32 %v1302, %v1304
      %v1306 = vrot.slane %v1278, %v1305
      %v1307 = vcombine.low %v1285, %v1292
      %v1308 = vcombine.low %v1299, %v1306
      %v1310 = vunpack.c.l.s4 1966171168
      %v1311 = vunpack.c.0.s8 %v1310
      %v1312 = vlaneseq
      %v1313 = vshrl.u32 %v1312, 7
      %v1314 = vsub.s32 %v1311, %v1313
      %v1315 = vrot.slane %v1307, %v1314
      %v1317 = vunpack.c.l.s4 1966171168
      %v1318 = vunpack.c.0.s8 %v1317
      %v1319 = vlaneseq
      %v1320 = vshrl.u32 %v1319, 7
      %v1321 = vsub.s32 %v1318, %v1320
      %v1322 = vrot.slane %v1308, %v1321
      %v1323 = vcombine.low %v1315, %v1322
      %v1324 = vcombine.low %v987, %v995
      %v1325 = vcombine.low %v1003, %v1012
      %v1326 = vcombine.low %v1020, %v1028
      %v1327 = vcombine.low %v1036, %v1044
      %v1329 = vunpack.c.l.s4 1966171168
      %v1330 = vunpack.c.0.s8 %v1329
      %v1331 = vlaneseq
      %v1332 = vshrl.u32 %v1331, 7
      %v1333 = vsub.s32 %v1330, %v1332
      %v1334 = vrot.slane %v1324, %v1333
      %v1336 = vunpack.c.l.s4 1966171168
      %v1337 = vunpack.c.0.s8 %v1336
      %v1338 = vlaneseq
      %v1339 = vshrl.u32 %v1338, 7
      %v1340 = vsub.s32 %v1337, %v1339
      %v1341 = vrot.slane %v1325, %v1340
      %v1343 = vunpack.c.l.s4 1966171168
      %v1344 = vunpack.c.0.s8 %v1343
      %v1345 = vlaneseq
      %v1346 = vshrl.u32 %v1345, 7
      %v1347 = vsub.s32 %v1344, %v1346
      %v1348 = vrot.slane %v1326, %v1347
      %v1350 = vunpack.c.l.s4 1966171168
      %v1351 = vunpack.c.0.s8 %v1350
      %v1352 = vlaneseq
      %v1353 = vshrl.u32 %v1352, 7
      %v1354 = vsub.s32 %v1351, %v1353
      %v1355 = vrot.slane %v1327, %v1354
      %v1356 = vcombine.low %v1334, %v1341
      %v1357 = vcombine.low %v1348, %v1355
      %v1359 = vunpack.c.l.s4 1966171168
      %v1360 = vunpack.c.0.s8 %v1359
      %v1361 = vlaneseq
      %v1362 = vshrl.u32 %v1361, 7
      %v1363 = vsub.s32 %v1360, %v1362
      %v1364 = vrot.slane %v1356, %v1363
      %v1366 = vunpack.c.l.s4 1966171168
      %v1367 = vunpack.c.0.s8 %v1366
      %v1368 = vlaneseq
      %v1369 = vshrl.u32 %v1368, 7
      %v1370 = vsub.s32 %v1367, %v1369
      %v1371 = vrot.slane %v1357, %v1370
      %v1372 = vcombine.low %v1364, %v1371
      %v1373 = vcombine.low %v1053, %v1061
      %v1374 = vcombine.low %v1069, %v1077
      %v1375 = vcombine.low %v1085, %v1094
      %v1376 = vcombine.low %v1102, %v1110
      %v1378 = vunpack.c.l.s4 1966171168
      %v1379 = vunpack.c.0.s8 %v1378
      %v1380 = vlaneseq
      %v1381 = vshrl.u32 %v1380, 7
      %v1382 = vsub.s32 %v1379, %v1381
      %v1383 = vrot.slane %v1373, %v1382
      %v1385 = vunpack.c.l.s4 1966171168
      %v1386 = vunpack.c.0.s8 %v1385
      %v1387 = vlaneseq
      %v1388 = vshrl.u32 %v1387, 7
      %v1389 = vsub.s32 %v1386, %v1388
      %v1390 = vrot.slane %v1374, %v1389
      %v1392 = vunpack.c.l.s4 1966171168
      %v1393 = vunpack.c.0.s8 %v1392
      %v1394 = vlaneseq
      %v1395 = vshrl.u32 %v1394, 7
      %v1396 = vsub.s32 %v1393, %v1395
      %v1397 = vrot.slane %v1375, %v1396
      %v1399 = vunpack.c.l.s4 1966171168
      %v1400 = vunpack.c.0.s8 %v1399
      %v1401 = vlaneseq
      %v1402 = vshrl.u32 %v1401, 7
      %v1403 = vsub.s32 %v1400, %v1402
      %v1404 = vrot.slane %v1376, %v1403
      %v1405 = vcombine.low %v1383, %v1390
      %v1406 = vcombine.low %v1397, %v1404
      %v1408 = vunpack.c.l.s4 1966171168
      %v1409 = vunpack.c.0.s8 %v1408
      %v1410 = vlaneseq
      %v1411 = vshrl.u32 %v1410, 7
      %v1412 = vsub.s32 %v1409, %v1411
      %v1413 = vrot.slane %v1405, %v1412
      %v1415 = vunpack.c.l.s4 1966171168
      %v1416 = vunpack.c.0.s8 %v1415
      %v1417 = vlaneseq
      %v1418 = vshrl.u32 %v1417, 7
      %v1419 = vsub.s32 %v1416, %v1418
      %v1420 = vrot.slane %v1406, %v1419
      %v1421 = vcombine.low %v1413, %v1420
      %v1422 = vcombine.low %v1118, %v1126
      %v1424 = vunpack.c.l.s4 1966171168
      %v1425 = vunpack.c.0.s8 %v1424
      %v1426 = vlaneseq
      %v1427 = vshrl.u32 %v1426, 7
      %v1428 = vsub.s32 %v1425, %v1427
      %v1429 = vrot.slane %v1422, %v1428
      %v1431 = vunpack.c.l.s4 1966171168
      %v1432 = vunpack.c.0.s8 %v1431
      %v1433 = vlaneseq
      %v1434 = vshrl.u32 %v1433, 7
      %v1435 = vsub.s32 %v1432, %v1434
      %v1436 = vrot.slane %v1429, %v1435
      %vm1437 = vcmask 64512
      %v1439 = vsel %vm1437, %v1176, 0
      %v1442 = vsel %vm1437, %v1225, 0
      %v1445 = vsel %vm1437, %v1274, 0
      %v1448 = vsel %vm1437, %v1323, 0
      %v1451 = vsel %vm1437, %v1372, 0
      %v1454 = vsel %vm1437, %v1421, 0
      %v1457 = vsel %vm1437, %v1436, 0
      %vm1459 = vcmask 1043456
      %v1461 = vsel %vm1459, %v1127, 0
      %1463 = vmatprep.subr.bf16.mxu0 0
      %1464 = vmatpush1.bf16.msra.mxu0 %v1461
      %1465 = vmatprep.subr.bf16.mxu0 0
      %1466 = vmatpush1.bf16.msra.mxu0 0
      %1467 = vmatprep.subr.bf16.mxu0 0
      %1468 = vmatpush1.bf16.msra.mxu0 0
      %1469 = vmatprep.subr.bf16.mxu0 0
      %1470 = vmatpush1.bf16.msra.mxu0 0
      %1471 = vmatprep.subr.bf16.mxu0 0
      %1472 = vmatpush1.bf16.msra.mxu0 0
      %1473 = vmatprep.subr.bf16.mxu0 0
      %1474 = vmatpush1.bf16.msra.mxu0 0
      %1475 = vmatprep.subr.bf16.mxu0 0
      %1476 = vmatpush1.bf16.msra.mxu0 0
      %1477 = vmatprep.subr.bf16.mxu0 0
      %1478 = vmatpush1.bf16.msra.mxu0 0
      %1479 = vmatprep.subr.bf16.mxu0 0
      %1480 = vmatpush1.bf16.msra.mxu0 0
      %1481 = vmatprep.subr.bf16.mxu0 0
      %1482 = vmatpush1.bf16.msra.mxu0 0
      %1483 = vmatprep.subr.bf16.mxu0 0
      %1484 = vmatpush1.bf16.msra.mxu0 0
      %1485 = vmatprep.subr.bf16.mxu0 0
      %1486 = vmatpush1.bf16.msra.mxu0 0
      %1487 = vmatprep.subr.bf16.mxu0 0
      %1488 = vmatpush1.bf16.msra.mxu0 0
      %1489 = vmatprep.subr.bf16.mxu0 0
      %1490 = vmatpush1.bf16.msra.mxu0 0
      %1491 = vmatprep.subr.bf16.mxu0 0
      %1492 = vmatpush1.bf16.msra.mxu0 0
      %1493 = vmatprep.subr.bf16.mxu0 0
      %1494 = vmatpush1.bf16.msra.mxu0 0
      %1495 = vmatprep.mubr.bf16.mxu0 0
      %1496 = vmatmul.mubr.bf16.gmra.mrb[0].mxu0 %v1439
      %v1497 = vpop.f32.mrb[0].mxu0
      %v1498 = vadd.f32 0.0, %v1497
      %v1499 = vpop.f32.mrb[0].mxu0
      %v1500 = vpop.f32.mrb[0].mxu0
      %v1501 = vadd.f32 0.0, %v1500
      %v1502 = vpop.f32.mrb[0].mxu0
      %1503 = vmatprep.mubr.bf16.mxu0 0
      %1504 = vmatmul.mubr.bf16.gmra.mrb[0].mxu0 %v1442
      %v1505 = vpop.f32.mrb[0].mxu0
      %v1506 = vadd.f32 0.0, %v1505
      %v1507 = vpop.f32.mrb[0].mxu0
      %v1508 = vpop.f32.mrb[0].mxu0
      %v1509 = vadd.f32 0.0, %v1508
      %v1510 = vpop.f32.mrb[0].mxu0
      %1511 = vmatprep.mubr.bf16.mxu0 0
      %1512 = vmatmul.mubr.bf16.gmra.mrb[0].mxu0 %v1445
      %v1513 = vpop.f32.mrb[0].mxu0
      %v1514 = vadd.f32 0.0, %v1513
      %v1515 = vpop.f32.mrb[0].mxu0
      %v1516 = vpop.f32.mrb[0].mxu0
      %v1517 = vadd.f32 0.0, %v1516
      %v1518 = vpop.f32.mrb[0].mxu0
      %1519 = vmatprep.mubr.bf16.mxu0 0
      %1520 = vmatmul.mubr.bf16.gmra.mrb[0].mxu0 %v1448
      %v1521 = vpop.f32.mrb[0].mxu0
      %v1522 = vadd.f32 0.0, %v1521
      %v1523 = vpop.f32.mrb[0].mxu0
      %v1524 = vpop.f32.mrb[0].mxu0
      %v1525 = vadd.f32 0.0, %v1524
      %v1526 = vpop.f32.mrb[0].mxu0
      %1527 = vmatprep.mubr.bf16.mxu0 0
      %1528 = vmatmul.mubr.bf16.gmra.mrb[0].mxu0 %v1451
      %v1529 = vpop.f32.mrb[0].mxu0
      %v1530 = vadd.f32 0.0, %v1529
      %v1531 = vpop.f32.mrb[0].mxu0
      %v1532 = vpop.f32.mrb[0].mxu0
      %v1533 = vadd.f32 0.0, %v1532
      %v1534 = vpop.f32.mrb[0].mxu0
      %1535 = vmatprep.mubr.bf16.mxu0 0
      %1536 = vmatmul.mubr.bf16.gmra.mrb[0].mxu0 %v1454
      %v1537 = vpop.f32.mrb[0].mxu0
      %v1538 = vadd.f32 0.0, %v1537
      %v1539 = vpop.f32.mrb[0].mxu0
      %v1540 = vpop.f32.mrb[0].mxu0
      %v1541 = vadd.f32 0.0, %v1540
      %v1542 = vpop.f32.mrb[0].mxu0
      %1543 = vmatprep.mubr.bf16.mxu0 0
      %1544 = vmatmul.mubr.bf16.gmra.mrb[0].mxu0 %v1457
      %v1545 = vpop.f32.mrb[0].mxu0
      %v1546 = vadd.f32 0.0, %v1545
      %v1547 = vpop.f32.mrb[0].mxu0
      %v1548 = vpop.f32.mrb[0].mxu0
      %v1549 = vpop.f32.mrb[0].mxu0
      %1550 = vdwg.mxu0
      %v1551 = vcombine.low %v255, %v262
      %v1552 = vcombine.low %v263, %v264
      %v1553 = vcombine.low %v278, %v293
      %v1554 = vcombine.low %v300, %v301
      %v1556 = vunpack.c.l.s4 1966171168
      %v1557 = vunpack.c.0.s8 %v1556
      %v1558 = vlaneseq
      %v1559 = vshrl.u32 %v1558, 7
      %v1560 = vsub.s32 %v1557, %v1559
      %v1561 = vrot.slane %v1551, %v1560
      %v1563 = vunpack.c.l.s4 1966171168
      %v1564 = vunpack.c.0.s8 %v1563
      %v1565 = vlaneseq
      %v1566 = vshrl.u32 %v1565, 7
      %v1567 = vsub.s32 %v1564, %v1566
      %v1568 = vrot.slane %v1552, %v1567
      %v1570 = vunpack.c.l.s4 1966171168
      %v1571 = vunpack.c.0.s8 %v1570
      %v1572 = vlaneseq
      %v1573 = vshrl.u32 %v1572, 7
      %v1574 = vsub.s32 %v1571, %v1573
      %v1575 = vrot.slane %v1553, %v1574
      %v1577 = vunpack.c.l.s4 1966171168
      %v1578 = vunpack.c.0.s8 %v1577
      %v1579 = vlaneseq
      %v1580 = vshrl.u32 %v1579, 7
      %v1581 = vsub.s32 %v1578, %v1580
      %v1582 = vrot.slane %v1554, %v1581
      %v1583 = vcombine.low %v1561, %v1568
      %v1584 = vcombine.low %v1575, %v1582
      %v1586 = vunpack.c.l.s4 1966171168
      %v1587 = vunpack.c.0.s8 %v1586
      %v1588 = vlaneseq
      %v1589 = vshrl.u32 %v1588, 7
      %v1590 = vsub.s32 %v1587, %v1589
      %v1591 = vrot.slane %v1583, %v1590
      %v1593 = vunpack.c.l.s4 1966171168
      %v1594 = vunpack.c.0.s8 %v1593
      %v1595 = vlaneseq
      %v1596 = vshrl.u32 %v1595, 7
      %v1597 = vsub.s32 %v1594, %v1596
      %v1598 = vrot.slane %v1584, %v1597
      %v1599 = vcombine.low %v1591, %v1598
      %v1600 = vcombine.low %v302, %v316
      %v1601 = vcombine.low %v331, %v338
      %v1602 = vcombine.low %v339, %v340
      %v1603 = vcombine.low %v354, %v369
      %v1605 = vunpack.c.l.s4 1966171168
      %v1606 = vunpack.c.0.s8 %v1605
      %v1607 = vlaneseq
      %v1608 = vshrl.u32 %v1607, 7
      %v1609 = vsub.s32 %v1606, %v1608
      %v1610 = vrot.slane %v1600, %v1609
      %v1612 = vunpack.c.l.s4 1966171168
      %v1613 = vunpack.c.0.s8 %v1612
      %v1614 = vlaneseq
      %v1615 = vshrl.u32 %v1614, 7
      %v1616 = vsub.s32 %v1613, %v1615
      %v1617 = vrot.slane %v1601, %v1616
      %v1619 = vunpack.c.l.s4 1966171168
      %v1620 = vunpack.c.0.s8 %v1619
      %v1621 = vlaneseq
      %v1622 = vshrl.u32 %v1621, 7
      %v1623 = vsub.s32 %v1620, %v1622
      %v1624 = vrot.slane %v1602, %v1623
      %v1626 = vunpack.c.l.s4 1966171168
      %v1627 = vunpack.c.0.s8 %v1626
      %v1628 = vlaneseq
      %v1629 = vshrl.u32 %v1628, 7
      %v1630 = vsub.s32 %v1627, %v1629
      %v1631 = vrot.slane %v1603, %v1630
      %v1632 = vcombine.low %v1610, %v1617
      %v1633 = vcombine.low %v1624, %v1631
      %v1635 = vunpack.c.l.s4 1966171168
      %v1636 = vunpack.c.0.s8 %v1635
      %v1637 = vlaneseq
      %v1638 = vshrl.u32 %v1637, 7
      %v1639 = vsub.s32 %v1636, %v1638
      %v1640 = vrot.slane %v1632, %v1639
      %v1642 = vunpack.c.l.s4 1966171168
      %v1643 = vunpack.c.0.s8 %v1642
      %v1644 = vlaneseq
      %v1645 = vshrl.u32 %v1644, 7
      %v1646 = vsub.s32 %v1643, %v1645
      %v1647 = vrot.slane %v1633, %v1646
      %v1648 = vcombine.low %v1640, %v1647
      %v1649 = vcombine.low %v376, %v377
      %v1650 = vcombine.low %v378, %v392
      %v1651 = vcombine.low %v407, %v414
      %v1652 = vcombine.low %v415, %v416
      %v1654 = vunpack.c.l.s4 1966171168
      %v1655 = vunpack.c.0.s8 %v1654
      %v1656 = vlaneseq
      %v1657 = vshrl.u32 %v1656, 7
      %v1658 = vsub.s32 %v1655, %v1657
      %v1659 = vrot.slane %v1649, %v1658
      %v1661 = vunpack.c.l.s4 1966171168
      %v1662 = vunpack.c.0.s8 %v1661
      %v1663 = vlaneseq
      %v1664 = vshrl.u32 %v1663, 7
      %v1665 = vsub.s32 %v1662, %v1664
      %v1666 = vrot.slane %v1650, %v1665
      %v1668 = vunpack.c.l.s4 1966171168
      %v1669 = vunpack.c.0.s8 %v1668
      %v1670 = vlaneseq
      %v1671 = vshrl.u32 %v1670, 7
      %v1672 = vsub.s32 %v1669, %v1671
      %v1673 = vrot.slane %v1651, %v1672
      %v1675 = vunpack.c.l.s4 1966171168
      %v1676 = vunpack.c.0.s8 %v1675
      %v1677 = vlaneseq
      %v1678 = vshrl.u32 %v1677, 7
      %v1679 = vsub.s32 %v1676, %v1678
      %v1680 = vrot.slane %v1652, %v1679
      %v1681 = vcombine.low %v1659, %v1666
      %v1682 = vcombine.low %v1673, %v1680
      %v1684 = vunpack.c.l.s4 1966171168
      %v1685 = vunpack.c.0.s8 %v1684
      %v1686 = vlaneseq
      %v1687 = vshrl.u32 %v1686, 7
      %v1688 = vsub.s32 %v1685, %v1687
      %v1689 = vrot.slane %v1681, %v1688
      %v1691 = vunpack.c.l.s4 1966171168
      %v1692 = vunpack.c.0.s8 %v1691
      %v1693 = vlaneseq
      %v1694 = vshrl.u32 %v1693, 7
      %v1695 = vsub.s32 %v1692, %v1694
      %v1696 = vrot.slane %v1682, %v1695
      %v1697 = vcombine.low %v1689, %v1696
      %v1698 = vcombine.low %v430, %v445
      %v1699 = vcombine.low %v452, %v453
      %v1700 = vcombine.low %v454, %v468
      %v1701 = vcombine.low %v483, %v490
      %v1703 = vunpack.c.l.s4 1966171168
      %v1704 = vunpack.c.0.s8 %v1703
      %v1705 = vlaneseq
      %v1706 = vshrl.u32 %v1705, 7
      %v1707 = vsub.s32 %v1704, %v1706
      %v1708 = vrot.slane %v1698, %v1707
      %v1710 = vunpack.c.l.s4 1966171168
      %v1711 = vunpack.c.0.s8 %v1710
      %v1712 = vlaneseq
      %v1713 = vshrl.u32 %v1712, 7
      %v1714 = vsub.s32 %v1711, %v1713
      %v1715 = vrot.slane %v1699, %v1714
      %v1717 = vunpack.c.l.s4 1966171168
      %v1718 = vunpack.c.0.s8 %v1717
      %v1719 = vlaneseq
      %v1720 = vshrl.u32 %v1719, 7
      %v1721 = vsub.s32 %v1718, %v1720
      %v1722 = vrot.slane %v1700, %v1721
      %v1724 = vunpack.c.l.s4 1966171168
      %v1725 = vunpack.c.0.s8 %v1724
      %v1726 = vlaneseq
      %v1727 = vshrl.u32 %v1726, 7
      %v1728 = vsub.s32 %v1725, %v1727
      %v1729 = vrot.slane %v1701, %v1728
      %v1730 = vcombine.low %v1708, %v1715
      %v1731 = vcombine.low %v1722, %v1729
      %v1733 = vunpack.c.l.s4 1966171168
      %v1734 = vunpack.c.0.s8 %v1733
      %v1735 = vlaneseq
      %v1736 = vshrl.u32 %v1735, 7
      %v1737 = vsub.s32 %v1734, %v1736
      %v1738 = vrot.slane %v1730, %v1737
      %v1740 = vunpack.c.l.s4 1966171168
      %v1741 = vunpack.c.0.s8 %v1740
      %v1742 = vlaneseq
      %v1743 = vshrl.u32 %v1742, 7
      %v1744 = vsub.s32 %v1741, %v1743
      %v1745 = vrot.slane %v1731, %v1744
      %v1746 = vcombine.low %v1738, %v1745
      %v1747 = vcombine.low %v491, %v492
      %v1748 = vcombine.low %v506, %v521
      %v1749 = vcombine.low %v528, %v529
      %v1750 = vcombine.low %v530, %v544
      %v1752 = vunpack.c.l.s4 1966171168
      %v1753 = vunpack.c.0.s8 %v1752
      %v1754 = vlaneseq
      %v1755 = vshrl.u32 %v1754, 7
      %v1756 = vsub.s32 %v1753, %v1755
      %v1757 = vrot.slane %v1747, %v1756
      %v1759 = vunpack.c.l.s4 1966171168
      %v1760 = vunpack.c.0.s8 %v1759
      %v1761 = vlaneseq
      %v1762 = vshrl.u32 %v1761, 7
      %v1763 = vsub.s32 %v1760, %v1762
      %v1764 = vrot.slane %v1748, %v1763
      %v1766 = vunpack.c.l.s4 1966171168
      %v1767 = vunpack.c.0.s8 %v1766
      %v1768 = vlaneseq
      %v1769 = vshrl.u32 %v1768, 7
      %v1770 = vsub.s32 %v1767, %v1769
      %v1771 = vrot.slane %v1749, %v1770
      %v1773 = vunpack.c.l.s4 1966171168
      %v1774 = vunpack.c.0.s8 %v1773
      %v1775 = vlaneseq
      %v1776 = vshrl.u32 %v1775, 7
      %v1777 = vsub.s32 %v1774, %v1776
      %v1778 = vrot.slane %v1750, %v1777
      %v1779 = vcombine.low %v1757, %v1764
      %v1780 = vcombine.low %v1771, %v1778
      %v1782 = vunpack.c.l.s4 1966171168
      %v1783 = vunpack.c.0.s8 %v1782
      %v1784 = vlaneseq
      %v1785 = vshrl.u32 %v1784, 7
      %v1786 = vsub.s32 %v1783, %v1785
      %v1787 = vrot.slane %v1779, %v1786
      %v1789 = vunpack.c.l.s4 1966171168
      %v1790 = vunpack.c.0.s8 %v1789
      %v1791 = vlaneseq
      %v1792 = vshrl.u32 %v1791, 7
      %v1793 = vsub.s32 %v1790, %v1792
      %v1794 = vrot.slane %v1780, %v1793
      %v1795 = vcombine.low %v1787, %v1794
      %v1796 = vcombine.low %v559, %v566
      %v1797 = vcombine.low %v567, %v568
      %v1798 = vcombine.low %v582, %v597
      %v1799 = vcombine.low %v604, %v605
      %v1801 = vunpack.c.l.s4 1966171168
      %v1802 = vunpack.c.0.s8 %v1801
      %v1803 = vlaneseq
      %v1804 = vshrl.u32 %v1803, 7
      %v1805 = vsub.s32 %v1802, %v1804
      %v1806 = vrot.slane %v1796, %v1805
      %v1808 = vunpack.c.l.s4 1966171168
      %v1809 = vunpack.c.0.s8 %v1808
      %v1810 = vlaneseq
      %v1811 = vshrl.u32 %v1810, 7
      %v1812 = vsub.s32 %v1809, %v1811
      %v1813 = vrot.slane %v1797, %v1812
      %v1815 = vunpack.c.l.s4 1966171168
      %v1816 = vunpack.c.0.s8 %v1815
      %v1817 = vlaneseq
      %v1818 = vshrl.u32 %v1817, 7
      %v1819 = vsub.s32 %v1816, %v1818
      %v1820 = vrot.slane %v1798, %v1819
      %v1822 = vunpack.c.l.s4 1966171168
      %v1823 = vunpack.c.0.s8 %v1822
      %v1824 = vlaneseq
      %v1825 = vshrl.u32 %v1824, 7
      %v1826 = vsub.s32 %v1823, %v1825
      %v1827 = vrot.slane %v1799, %v1826
      %v1828 = vcombine.low %v1806, %v1813
      %v1829 = vcombine.low %v1820, %v1827
      %v1831 = vunpack.c.l.s4 1966171168
      %v1832 = vunpack.c.0.s8 %v1831
      %v1833 = vlaneseq
      %v1834 = vshrl.u32 %v1833, 7
      %v1835 = vsub.s32 %v1832, %v1834
      %v1836 = vrot.slane %v1828, %v1835
      %v1838 = vunpack.c.l.s4 1966171168
      %v1839 = vunpack.c.0.s8 %v1838
      %v1840 = vlaneseq
      %v1841 = vshrl.u32 %v1840, 7
      %v1842 = vsub.s32 %v1839, %v1841
      %v1843 = vrot.slane %v1829, %v1842
      %v1844 = vcombine.low %v1836, %v1843
      %v1845 = vcombine.low %v606, %v620
      %v1847 = vunpack.c.l.s4 1966171168
      %v1848 = vunpack.c.0.s8 %v1847
      %v1849 = vlaneseq
      %v1850 = vshrl.u32 %v1849, 7
      %v1851 = vsub.s32 %v1848, %v1850
      %v1852 = vrot.slane %v1845, %v1851
      %v1854 = vunpack.c.l.s4 1966171168
      %v1855 = vunpack.c.0.s8 %v1854
      %v1856 = vlaneseq
      %v1857 = vshrl.u32 %v1856, 7
      %v1858 = vsub.s32 %v1855, %v1857
      %v1859 = vrot.slane %v1852, %v1858
      %v1861 = vsel %vm1437, %v1599, 0
      %v1864 = vsel %vm1437, %v1648, 0
      %v1867 = vsel %vm1437, %v1697, 0
      %v1870 = vsel %vm1437, %v1746, 0
      %v1873 = vsel %vm1437, %v1795, 0
      %v1876 = vsel %vm1437, %v1844, 0
      %v1879 = vsel %vm1437, %v1859, 0
      %v1882 = vsel %vm1459, %v621, 0
      %1884 = vmatprep.subr.bf16.mxu0 0
      %1885 = vmatpush1.bf16.msra.mxu0 %v1882
      %1886 = vmatprep.subr.bf16.mxu0 0
      %1887 = vmatpush1.bf16.msra.mxu0 0
      %1888 = vmatprep.subr.bf16.mxu0 0
      %1889 = vmatpush1.bf16.msra.mxu0 0
      %1890 = vmatprep.subr.bf16.mxu0 0
      %1891 = vmatpush1.bf16.msra.mxu0 0
      %1892 = vmatprep.subr.bf16.mxu0 0
      %1893 = vmatpush1.bf16.msra.mxu0 0
      %1894 = vmatprep.subr.bf16.mxu0 0
      %1895 = vmatpush1.bf16.msra.mxu0 0
      %1896 = vmatprep.subr.bf16.mxu0 0
      %1897 = vmatpush1.bf16.msra.mxu0 0
      %1898 = vmatprep.subr.bf16.mxu0 0
      %1899 = vmatpush1.bf16.msra.mxu0 0
      %1900 = vmatprep.subr.bf16.mxu0 0
      %1901 = vmatpush1.bf16.msra.mxu0 0
      %1902 = vmatprep.subr.bf16.mxu0 0
      %1903 = vmatpush1.bf16.msra.mxu0 0
      %1904 = vmatprep.subr.bf16.mxu0 0
      %1905 = vmatpush1.bf16.msra.mxu0 0
      %1906 = vmatprep.subr.bf16.mxu0 0
      %1907 = vmatpush1.bf16.msra.mxu0 0
      %1908 = vmatprep.subr.bf16.mxu0 0
      %1909 = vmatpush1.bf16.msra.mxu0 0
      %1910 = vmatprep.subr.bf16.mxu0 0
      %1911 = vmatpush1.bf16.msra.mxu0 0
      %1912 = vmatprep.subr.bf16.mxu0 0
      %1913 = vmatpush1.bf16.msra.mxu0 0
      %1914 = vmatprep.subr.bf16.mxu0 0
      %1915 = vmatpush1.bf16.msra.mxu0 0
      %1916 = vmatprep.mubr.bf16.mxu0 0
      %1917 = vmatmul.mubr.bf16.gmra.mrb[0].mxu0 %v1861
      %v1918 = vpop.f32.mrb[0].mxu0
      %v1919 = vadd.f32 %v1498, %v1918
      %v1920 = vpop.f32.mrb[0].mxu0
      %v1921 = vpop.f32.mrb[0].mxu0
      %v1922 = vadd.f32 %v1501, %v1921
      %v1923 = vpop.f32.mrb[0].mxu0
      %1924 = vmatprep.mubr.bf16.mxu0 0
      %1925 = vmatmul.mubr.bf16.gmra.mrb[0].mxu0 %v1864
      %v1926 = vpop.f32.mrb[0].mxu0
      %v1927 = vadd.f32 %v1506, %v1926
      %v1928 = vpop.f32.mrb[0].mxu0
      %v1929 = vpop.f32.mrb[0].mxu0
      %v1930 = vadd.f32 %v1509, %v1929
      %v1931 = vpop.f32.mrb[0].mxu0
      %1932 = vmatprep.mubr.bf16.mxu0 0
      %1933 = vmatmul.mubr.bf16.gmra.mrb[0].mxu0 %v1867
      %v1934 = vpop.f32.mrb[0].mxu0
      %v1935 = vadd.f32 %v1514, %v1934
      %v1936 = vpop.f32.mrb[0].mxu0
      %v1937 = vpop.f32.mrb[0].mxu0
      %v1938 = vadd.f32 %v1517, %v1937
      %v1939 = vpop.f32.mrb[0].mxu0
      %1940 = vmatprep.mubr.bf16.mxu0 0
      %1941 = vmatmul.mubr.bf16.gmra.mrb[0].mxu0 %v1870
      %v1942 = vpop.f32.mrb[0].mxu0
      %v1943 = vadd.f32 %v1522, %v1942
      %v1944 = vpop.f32.mrb[0].mxu0
      %v1945 = vpop.f32.mrb[0].mxu0
      %v1946 = vadd.f32 %v1525, %v1945
      %v1947 = vpop.f32.mrb[0].mxu0
      %1948 = vmatprep.mubr.bf16.mxu0 0
      %1949 = vmatmul.mubr.bf16.gmra.mrb[0].mxu0 %v1873
      %v1950 = vpop.f32.mrb[0].mxu0
      %v1951 = vadd.f32 %v1530, %v1950
      %v1952 = vpop.f32.mrb[0].mxu0
      %v1953 = vpop.f32.mrb[0].mxu0
      %v1954 = vadd.f32 %v1533, %v1953
      %v1955 = vpop.f32.mrb[0].mxu0
      %1956 = vmatprep.mubr.bf16.mxu0 0
      %1957 = vmatmul.mubr.bf16.gmra.mrb[0].mxu0 %v1876
      %v1958 = vpop.f32.mrb[0].mxu0
      %v1959 = vadd.f32 %v1538, %v1958
      %v1960 = vpop.f32.mrb[0].mxu0
      %v1961 = vpop.f32.mrb[0].mxu0
      %v1962 = vadd.f32 %v1541, %v1961
      %v1963 = vpop.f32.mrb[0].mxu0
      %1964 = vmatprep.mubr.bf16.mxu0 0
      %1965 = vmatmul.mubr.bf16.gmra.mrb[0].mxu0 %v1879
      %v1966 = vpop.f32.mrb[0].mxu0
      %v1967 = vadd.f32 %v1546, %v1966
      %v1968 = vpop.f32.mrb[0].mxu0
      %v1969 = vpop.f32.mrb[0].mxu0
      %v1970 = vpop.f32.mrb[0].mxu0
      %1971 = vdwg.mxu0
      %v1972 = vld [vmem:[%s1 + $0x8] sm:$0xf]
      %v1973 = vcombine.low %v262, %v263
      %v1974 = vcombine.low %v264, %v278
      %v1975 = vcombine.low %v629, %v300
      %v1976 = vcombine.low %v301, %v302
      %v1978 = vunpack.c.l.s4 1966171168
      %v1979 = vunpack.c.0.s8 %v1978
      %v1980 = vlaneseq
      %v1981 = vshrl.u32 %v1980, 7
      %v1982 = vsub.s32 %v1979, %v1981
      %v1983 = vrot.slane %v1973, %v1982
      %v1985 = vunpack.c.l.s4 1966171168
      %v1986 = vunpack.c.0.s8 %v1985
      %v1987 = vlaneseq
      %v1988 = vshrl.u32 %v1987, 7
      %v1989 = vsub.s32 %v1986, %v1988
      %v1990 = vrot.slane %v1974, %v1989
      %v1992 = vunpack.c.l.s4 1966171168
      %v1993 = vunpack.c.0.s8 %v1992
      %v1994 = vlaneseq
      %v1995 = vshrl.u32 %v1994, 7
      %v1996 = vsub.s32 %v1993, %v1995
      %v1997 = vrot.slane %v1975, %v1996
      %v1999 = vunpack.c.l.s4 1966171168
      %v2000 = vunpack.c.0.s8 %v1999
      %v2001 = vlaneseq
      %v2002 = vshrl.u32 %v2001, 7
      %v2003 = vsub.s32 %v2000, %v2002
      %v2004 = vrot.slane %v1976, %v2003
      %v2005 = vcombine.low %v1983, %v1990
      %v2006 = vcombine.low %v1997, %v2004
      %v2008 = vunpack.c.l.s4 1966171168
      %v2009 = vunpack.c.0.s8 %v2008
      %v2010 = vlaneseq
      %v2011 = vshrl.u32 %v2010, 7
      %v2012 = vsub.s32 %v2009, %v2011
      %v2013 = vrot.slane %v2005, %v2012
      %v2015 = vunpack.c.l.s4 1966171168
      %v2016 = vunpack.c.0.s8 %v2015
      %v2017 = vlaneseq
      %v2018 = vshrl.u32 %v2017, 7
      %v2019 = vsub.s32 %v2016, %v2018
      %v2020 = vrot.slane %v2006, %v2019
      %v2021 = vcombine.low %v2013, %v2020
      %v2022 = vcombine.low %v316, %v637
      %v2023 = vcombine.low %v338, %v339
      %v2024 = vcombine.low %v340, %v354
      %v2025 = vcombine.low %v645, %v376
      %v2027 = vunpack.c.l.s4 1966171168
      %v2028 = vunpack.c.0.s8 %v2027
      %v2029 = vlaneseq
      %v2030 = vshrl.u32 %v2029, 7
      %v2031 = vsub.s32 %v2028, %v2030
      %v2032 = vrot.slane %v2022, %v2031
      %v2034 = vunpack.c.l.s4 1966171168
      %v2035 = vunpack.c.0.s8 %v2034
      %v2036 = vlaneseq
      %v2037 = vshrl.u32 %v2036, 7
      %v2038 = vsub.s32 %v2035, %v2037
      %v2039 = vrot.slane %v2023, %v2038
      %v2041 = vunpack.c.l.s4 1966171168
      %v2042 = vunpack.c.0.s8 %v2041
      %v2043 = vlaneseq
      %v2044 = vshrl.u32 %v2043, 7
      %v2045 = vsub.s32 %v2042, %v2044
      %v2046 = vrot.slane %v2024, %v2045
      %v2048 = vunpack.c.l.s4 1966171168
      %v2049 = vunpack.c.0.s8 %v2048
      %v2050 = vlaneseq
      %v2051 = vshrl.u32 %v2050, 7
      %v2052 = vsub.s32 %v2049, %v2051
      %v2053 = vrot.slane %v2025, %v2052
      %v2054 = vcombine.low %v2032, %v2039
      %v2055 = vcombine.low %v2046, %v2053
      %v2057 = vunpack.c.l.s4 1966171168
      %v2058 = vunpack.c.0.s8 %v2057
      %v2059 = vlaneseq
      %v2060 = vshrl.u32 %v2059, 7
      %v2061 = vsub.s32 %v2058, %v2060
      %v2062 = vrot.slane %v2054, %v2061
      %v2064 = vunpack.c.l.s4 1966171168
      %v2065 = vunpack.c.0.s8 %v2064
      %v2066 = vlaneseq
      %v2067 = vshrl.u32 %v2066, 7
      %v2068 = vsub.s32 %v2065, %v2067
      %v2069 = vrot.slane %v2055, %v2068
      %v2070 = vcombine.low %v2062, %v2069
      %v2071 = vcombine.low %v377, %v378
      %v2072 = vcombine.low %v392, %v653
      %v2073 = vcombine.low %v414, %v415
      %v2074 = vcombine.low %v416, %v430
      %v2076 = vunpack.c.l.s4 1966171168
      %v2077 = vunpack.c.0.s8 %v2076
      %v2078 = vlaneseq
      %v2079 = vshrl.u32 %v2078, 7
      %v2080 = vsub.s32 %v2077, %v2079
      %v2081 = vrot.slane %v2071, %v2080
      %v2083 = vunpack.c.l.s4 1966171168
      %v2084 = vunpack.c.0.s8 %v2083
      %v2085 = vlaneseq
      %v2086 = vshrl.u32 %v2085, 7
      %v2087 = vsub.s32 %v2084, %v2086
      %v2088 = vrot.slane %v2072, %v2087
      %v2090 = vunpack.c.l.s4 1966171168
      %v2091 = vunpack.c.0.s8 %v2090
      %v2092 = vlaneseq
      %v2093 = vshrl.u32 %v2092, 7
      %v2094 = vsub.s32 %v2091, %v2093
      %v2095 = vrot.slane %v2073, %v2094
      %v2097 = vunpack.c.l.s4 1966171168
      %v2098 = vunpack.c.0.s8 %v2097
      %v2099 = vlaneseq
      %v2100 = vshrl.u32 %v2099, 7
      %v2101 = vsub.s32 %v2098, %v2100
      %v2102 = vrot.slane %v2074, %v2101
      %v2103 = vcombine.low %v2081, %v2088
      %v2104 = vcombine.low %v2095, %v2102
      %v2106 = vunpack.c.l.s4 1966171168
      %v2107 = vunpack.c.0.s8 %v2106
      %v2108 = vlaneseq
      %v2109 = vshrl.u32 %v2108, 7
      %v2110 = vsub.s32 %v2107, %v2109
      %v2111 = vrot.slane %v2103, %v2110
      %v2113 = vunpack.c.l.s4 1966171168
      %v2114 = vunpack.c.0.s8 %v2113
      %v2115 = vlaneseq
      %v2116 = vshrl.u32 %v2115, 7
      %v2117 = vsub.s32 %v2114, %v2116
      %v2118 = vrot.slane %v2104, %v2117
      %v2119 = vcombine.low %v2111, %v2118
      %v2120 = vcombine.low %v661, %v452
      %v2121 = vcombine.low %v453, %v454
      %v2122 = vcombine.low %v468, %v669
      %v2123 = vcombine.low %v490, %v491
      %v2125 = vunpack.c.l.s4 1966171168
      %v2126 = vunpack.c.0.s8 %v2125
      %v2127 = vlaneseq
      %v2128 = vshrl.u32 %v2127, 7
      %v2129 = vsub.s32 %v2126, %v2128
      %v2130 = vrot.slane %v2120, %v2129
      %v2132 = vunpack.c.l.s4 1966171168
      %v2133 = vunpack.c.0.s8 %v2132
      %v2134 = vlaneseq
      %v2135 = vshrl.u32 %v2134, 7
      %v2136 = vsub.s32 %v2133, %v2135
      %v2137 = vrot.slane %v2121, %v2136
      %v2139 = vunpack.c.l.s4 1966171168
      %v2140 = vunpack.c.0.s8 %v2139
      %v2141 = vlaneseq
      %v2142 = vshrl.u32 %v2141, 7
      %v2143 = vsub.s32 %v2140, %v2142
      %v2144 = vrot.slane %v2122, %v2143
      %v2146 = vunpack.c.l.s4 1966171168
      %v2147 = vunpack.c.0.s8 %v2146
      %v2148 = vlaneseq
      %v2149 = vshrl.u32 %v2148, 7
      %v2150 = vsub.s32 %v2147, %v2149
      %v2151 = vrot.slane %v2123, %v2150
      %v2152 = vcombine.low %v2130, %v2137
      %v2153 = vcombine.low %v2144, %v2151
      %v2155 = vunpack.c.l.s4 1966171168
      %v2156 = vunpack.c.0.s8 %v2155
      %v2157 = vlaneseq
      %v2158 = vshrl.u32 %v2157, 7
      %v2159 = vsub.s32 %v2156, %v2158
      %v2160 = vrot.slane %v2152, %v2159
      %v2162 = vunpack.c.l.s4 1966171168
      %v2163 = vunpack.c.0.s8 %v2162
      %v2164 = vlaneseq
      %v2165 = vshrl.u32 %v2164, 7
      %v2166 = vsub.s32 %v2163, %v2165
      %v2167 = vrot.slane %v2153, %v2166
      %v2168 = vcombine.low %v2160, %v2167
      %v2169 = vcombine.low %v492, %v506
      %v2170 = vcombine.low %v677, %v528
      %v2171 = vcombine.low %v529, %v530
      %v2172 = vcombine.low %v544, %v685
      %v2174 = vunpack.c.l.s4 1966171168
      %v2175 = vunpack.c.0.s8 %v2174
      %v2176 = vlaneseq
      %v2177 = vshrl.u32 %v2176, 7
      %v2178 = vsub.s32 %v2175, %v2177
      %v2179 = vrot.slane %v2169, %v2178
      %v2181 = vunpack.c.l.s4 1966171168
      %v2182 = vunpack.c.0.s8 %v2181
      %v2183 = vlaneseq
      %v2184 = vshrl.u32 %v2183, 7
      %v2185 = vsub.s32 %v2182, %v2184
      %v2186 = vrot.slane %v2170, %v2185
      %v2188 = vunpack.c.l.s4 1966171168
      %v2189 = vunpack.c.0.s8 %v2188
      %v2190 = vlaneseq
      %v2191 = vshrl.u32 %v2190, 7
      %v2192 = vsub.s32 %v2189, %v2191
      %v2193 = vrot.slane %v2171, %v2192
      %v2195 = vunpack.c.l.s4 1966171168
      %v2196 = vunpack.c.0.s8 %v2195
      %v2197 = vlaneseq
      %v2198 = vshrl.u32 %v2197, 7
      %v2199 = vsub.s32 %v2196, %v2198
      %v2200 = vrot.slane %v2172, %v2199
      %v2201 = vcombine.low %v2179, %v2186
      %v2202 = vcombine.low %v2193, %v2200
      %v2204 = vunpack.c.l.s4 1966171168
      %v2205 = vunpack.c.0.s8 %v2204
      %v2206 = vlaneseq
      %v2207 = vshrl.u32 %v2206, 7
      %v2208 = vsub.s32 %v2205, %v2207
      %v2209 = vrot.slane %v2201, %v2208
      %v2211 = vunpack.c.l.s4 1966171168
      %v2212 = vunpack.c.0.s8 %v2211
      %v2213 = vlaneseq
      %v2214 = vshrl.u32 %v2213, 7
      %v2215 = vsub.s32 %v2212, %v2214
      %v2216 = vrot.slane %v2202, %v2215
      %v2217 = vcombine.low %v2209, %v2216
      %v2218 = vcombine.low %v566, %v567
      %v2219 = vcombine.low %v568, %v582
      %v2220 = vcombine.low %v693, %v604
      %v2221 = vcombine.low %v605, %v606
      %v2223 = vunpack.c.l.s4 1966171168
      %v2224 = vunpack.c.0.s8 %v2223
      %v2225 = vlaneseq
      %v2226 = vshrl.u32 %v2225, 7
      %v2227 = vsub.s32 %v2224, %v2226
      %v2228 = vrot.slane %v2218, %v2227
      %v2230 = vunpack.c.l.s4 1966171168
      %v2231 = vunpack.c.0.s8 %v2230
      %v2232 = vlaneseq
      %v2233 = vshrl.u32 %v2232, 7
      %v2234 = vsub.s32 %v2231, %v2233
      %v2235 = vrot.slane %v2219, %v2234
      %v2237 = vunpack.c.l.s4 1966171168
      %v2238 = vunpack.c.0.s8 %v2237
      %v2239 = vlaneseq
      %v2240 = vshrl.u32 %v2239, 7
      %v2241 = vsub.s32 %v2238, %v2240
      %v2242 = vrot.slane %v2220, %v2241
      %v2244 = vunpack.c.l.s4 1966171168
      %v2245 = vunpack.c.0.s8 %v2244
      %v2246 = vlaneseq
      %v2247 = vshrl.u32 %v2246, 7
      %v2248 = vsub.s32 %v2245, %v2247
      %v2249 = vrot.slane %v2221, %v2248
      %v2250 = vcombine.low %v2228, %v2235
      %v2251 = vcombine.low %v2242, %v2249
      %v2253 = vunpack.c.l.s4 1966171168
      %v2254 = vunpack.c.0.s8 %v2253
      %v2255 = vlaneseq
      %v2256 = vshrl.u32 %v2255, 7
      %v2257 = vsub.s32 %v2254, %v2256
      %v2258 = vrot.slane %v2250, %v2257
      %v2260 = vunpack.c.l.s4 1966171168
      %v2261 = vunpack.c.0.s8 %v2260
      %v2262 = vlaneseq
      %v2263 = vshrl.u32 %v2262, 7
      %v2264 = vsub.s32 %v2261, %v2263
      %v2265 = vrot.slane %v2251, %v2264
      %v2266 = vcombine.low %v2258, %v2265
      %v2267 = vcombine.low %v620, %v701
      %v2269 = vunpack.c.l.s4 1966171168
      %v2270 = vunpack.c.0.s8 %v2269
      %v2271 = vlaneseq
      %v2272 = vshrl.u32 %v2271, 7
      %v2273 = vsub.s32 %v2270, %v2272
      %v2274 = vrot.slane %v2267, %v2273
      %v2276 = vunpack.c.l.s4 1966171168
      %v2277 = vunpack.c.0.s8 %v2276
      %v2278 = vlaneseq
      %v2279 = vshrl.u32 %v2278, 7
      %v2280 = vsub.s32 %v2277, %v2279
      %v2281 = vrot.slane %v2274, %v2280
      %v2283 = vsel %vm1437, %v2021, 0
      %v2286 = vsel %vm1437, %v2070, 0
      %v2289 = vsel %vm1437, %v2119, 0
      %v2292 = vsel %vm1437, %v2168, 0
      %v2295 = vsel %vm1437, %v2217, 0
      %v2298 = vsel %vm1437, %v2266, 0
      %v2301 = vsel %vm1437, %v2281, 0
      %v2304 = vsel %vm1459, %v1972, 0
      %2306 = vmatprep.subr.bf16.mxu0 0
      %2307 = vmatpush1.bf16.msra.mxu0 %v2304
      %2308 = vmatprep.subr.bf16.mxu0 0
      %2309 = vmatpush1.bf16.msra.mxu0 0
      %2310 = vmatprep.subr.bf16.mxu0 0
      %2311 = vmatpush1.bf16.msra.mxu0 0
      %2312 = vmatprep.subr.bf16.mxu0 0
      %2313 = vmatpush1.bf16.msra.mxu0 0
      %2314 = vmatprep.subr.bf16.mxu0 0
      %2315 = vmatpush1.bf16.msra.mxu0 0
      %2316 = vmatprep.subr.bf16.mxu0 0
      %2317 = vmatpush1.bf16.msra.mxu0 0
      %2318 = vmatprep.subr.bf16.mxu0 0
      %2319 = vmatpush1.bf16.msra.mxu0 0
      %2320 = vmatprep.subr.bf16.mxu0 0
      %2321 = vmatpush1.bf16.msra.mxu0 0
      %2322 = vmatprep.subr.bf16.mxu0 0
      %2323 = vmatpush1.bf16.msra.mxu0 0
      %2324 = vmatprep.subr.bf16.mxu0 0
      %2325 = vmatpush1.bf16.msra.mxu0 0
      %2326 = vmatprep.subr.bf16.mxu0 0
      %2327 = vmatpush1.bf16.msra.mxu0 0
      %2328 = vmatprep.subr.bf16.mxu0 0
      %2329 = vmatpush1.bf16.msra.mxu0 0
      %2330 = vmatprep.subr.bf16.mxu0 0
      %2331 = vmatpush1.bf16.msra.mxu0 0
      %2332 = vmatprep.subr.bf16.mxu0 0
      %2333 = vmatpush1.bf16.msra.mxu0 0
      %2334 = vmatprep.subr.bf16.mxu0 0
      %2335 = vmatpush1.bf16.msra.mxu0 0
      %2336 = vmatprep.subr.bf16.mxu0 0
      %2337 = vmatpush1.bf16.msra.mxu0 0
      %2338 = vmatprep.mubr.bf16.mxu0 0
      %2339 = vmatmul.mubr.bf16.gmra.mrb[0].mxu0 %v2283
      %v2340 = vpop.f32.mrb[0].mxu0
      %v2341 = vadd.f32 0.0, %v2340
      %v2342 = vpop.f32.mrb[0].mxu0
      %v2343 = vpop.f32.mrb[0].mxu0
      %v2344 = vadd.f32 0.0, %v2343
      %v2345 = vpop.f32.mrb[0].mxu0
      %2346 = vmatprep.mubr.bf16.mxu0 0
      %2347 = vmatmul.mubr.bf16.gmra.mrb[0].mxu0 %v2286
      %v2348 = vpop.f32.mrb[0].mxu0
      %v2349 = vadd.f32 0.0, %v2348
      %v2350 = vpop.f32.mrb[0].mxu0
      %v2351 = vpop.f32.mrb[0].mxu0
      %v2352 = vadd.f32 0.0, %v2351
      %v2353 = vpop.f32.mrb[0].mxu0
      %2354 = vmatprep.mubr.bf16.mxu0 0
      %2355 = vmatmul.mubr.bf16.gmra.mrb[0].mxu0 %v2289
      %v2356 = vpop.f32.mrb[0].mxu0
      %v2357 = vadd.f32 0.0, %v2356
      %v2358 = vpop.f32.mrb[0].mxu0
      %v2359 = vpop.f32.mrb[0].mxu0
      %v2360 = vadd.f32 0.0, %v2359
      %v2361 = vpop.f32.mrb[0].mxu0
      %2362 = vmatprep.mubr.bf16.mxu0 0
      %2363 = vmatmul.mubr.bf16.gmra.mrb[0].mxu0 %v2292
      %v2364 = vpop.f32.mrb[0].mxu0
      %v2365 = vadd.f32 0.0, %v2364
      %v2366 = vpop.f32.mrb[0].mxu0
      %v2367 = vpop.f32.mrb[0].mxu0
      %v2368 = vadd.f32 0.0, %v2367
      %v2369 = vpop.f32.mrb[0].mxu0
      %2370 = vmatprep.mubr.bf16.mxu0 0
      %2371 = vmatmul.mubr.bf16.gmra.mrb[0].mxu0 %v2295
      %v2372 = vpop.f32.mrb[0].mxu0
      %v2373 = vadd.f32 0.0, %v2372
      %v2374 = vpop.f32.mrb[0].mxu0
      %v2375 = vpop.f32.mrb[0].mxu0
      %v2376 = vadd.f32 0.0, %v2375
      %v2377 = vpop.f32.mrb[0].mxu0
      %2378 = vmatprep.mubr.bf16.mxu0 0
      %2379 = vmatmul.mubr.bf16.gmra.mrb[0].mxu0 %v2298
      %v2380 = vpop.f32.mrb[0].mxu0
      %v2381 = vadd.f32 0.0, %v2380
      %v2382 = vpop.f32.mrb[0].mxu0
      %v2383 = vpop.f32.mrb[0].mxu0
      %v2384 = vadd.f32 0.0, %v2383
      %v2385 = vpop.f32.mrb[0].mxu0
      %2386 = vmatprep.mubr.bf16.mxu0 0
      %2387 = vmatmul.mubr.bf16.gmra.mrb[0].mxu0 %v2301
      %v2388 = vpop.f32.mrb[0].mxu0
      %v2389 = vadd.f32 0.0, %v2388
      %v2390 = vpop.f32.mrb[0].mxu0
      %v2391 = vpop.f32.mrb[0].mxu0
      %v2392 = vpop.f32.mrb[0].mxu0
      %2393 = vdwg.mxu0
      %v2394 = vadd.f32 %v1919, %v2341
      %v2395 = vadd.f32 %v1922, %v2344
      %v2396 = vadd.f32 %v1927, %v2349
      %v2397 = vadd.f32 %v1930, %v2352
      %v2398 = vadd.f32 %v1935, %v2357
      %v2399 = vadd.f32 %v1938, %v2360
      %v2400 = vadd.f32 %v1943, %v2365
      %v2401 = vadd.f32 %v1946, %v2368
      %v2402 = vadd.f32 %v1951, %v2373
      %v2403 = vadd.f32 %v1954, %v2376
      %v2404 = vadd.f32 %v1959, %v2381
      %v2405 = vadd.f32 %v1962, %v2384
      %v2406 = vadd.f32 %v1967, %v2389
      %s2407 = sadd.s32 %s197, 1
      %s2408 = smul.u32 %s2407, 2
      %s2409 = smul.addr %s2408, 4
      %s2410 = scalar_lea.vmem %s184, %s2409
      %v2411 = vld [vmem:[%s2410] sm:$0xf]
      %v2412 = vld [vmem:[%s2410 + $0x4] sm:$0x3]
      %v2413 = vld [vmem:[%s2410 + $0x8] sm:$0xf]
      %v2414 = vld [vmem:[%s2410 + $0xc] sm:$0x3]
      %v2415 = vld [vmem:[%s2410 + $0x10] sm:$0xf]
      %v2416 = vld [vmem:[%s2410 + $0x14] sm:$0x3]
      %v2417 = vld [vmem:[%s2410 + $0x18] sm:$0xf]
      %v2418 = vld [vmem:[%s2410 + $0x1c] sm:$0x3]
      %v2419 = vld [vmem:[%s2410 + $0x20] sm:$0xf]
      %v2420 = vld [vmem:[%s2410 + $0x24] sm:$0x3]
      %v2421 = vld [vmem:[%s2410 + $0x28] sm:$0xf]
      %v2422 = vld [vmem:[%s2410 + $0x2c] sm:$0x3]
      %v2423 = vld [vmem:[%s2410 + $0x30] sm:$0xf]
      %v2424 = vld [vmem:[%s2410 + $0x34] sm:$0x3]
      %v2425 = vld [vmem:[%s2410 + $0x38] sm:$0xf]
      %v2426 = vld [vmem:[%s2410 + $0x3c] sm:$0x3]
      %v2427 = vld [vmem:[%s2410 + $0x40] sm:$0xf]
      %v2428 = vld [vmem:[%s2410 + $0x44] sm:$0x3]
      %v2429 = vld [vmem:[%s2410 + $0x48] sm:$0xf]
      %v2430 = vld [vmem:[%s2410 + $0x4c] sm:$0x3]
      %v2452 = vunpack.c.l.s4 1966171168
      %v2453 = vunpack.c.0.s8 %v2452
      %v2454 = vlaneseq
      %v2455 = vshrl.u32 %v2454, 7
      %v2456 = vsub.s32 %v2453, %v2455
      %v2457 = vrot.slane %v2411, %v2456
      %v2458 = vcombine.high %v2457, %v2457
      %v2460 = vunpack.c.l.s4 1966171168
      %v2461 = vunpack.c.0.s8 %v2460
      %v2462 = vlaneseq
      %v2463 = vshrl.u32 %v2462, 7
      %v2464 = vsub.s32 %v2461, %v2463
      %v2465 = vrot.slane %v2457, %v2464
      %v2467 = vunpack.c.l.s4 1966171168
      %v2468 = vunpack.c.0.s8 %v2467
      %v2469 = vlaneseq
      %v2470 = vshrl.u32 %v2469, 7
      %v2471 = vsub.s32 %v2468, %v2470
      %v2472 = vrot.slane %v2458, %v2471
      %v2473 = vcombine.high %v2465, %v2465
      %v2474 = vcombine.high %v2472, %v2472
      %v2476 = vunpack.c.l.s4 1966171168
      %v2477 = vunpack.c.0.s8 %v2476
      %v2478 = vlaneseq
      %v2479 = vshrl.u32 %v2478, 7
      %v2480 = vsub.s32 %v2477, %v2479
      %v2481 = vrot.slane %v2412, %v2480
      %v2483 = vunpack.c.l.s4 1966171168
      %v2484 = vunpack.c.0.s8 %v2483
      %v2485 = vlaneseq
      %v2486 = vshrl.u32 %v2485, 7
      %v2487 = vsub.s32 %v2484, %v2486
      %v2488 = vrot.slane %v2481, %v2487
      %v2490 = vunpack.c.l.s4 1966171168
      %v2491 = vunpack.c.0.s8 %v2490
      %v2492 = vlaneseq
      %v2493 = vshrl.u32 %v2492, 7
      %v2494 = vsub.s32 %v2491, %v2493
      %v2495 = vrot.slane %v2413, %v2494
      %v2496 = vcombine.high %v2495, %v2495
      %v2498 = vunpack.c.l.s4 1966171168
      %v2499 = vunpack.c.0.s8 %v2498
      %v2500 = vlaneseq
      %v2501 = vshrl.u32 %v2500, 7
      %v2502 = vsub.s32 %v2499, %v2501
      %v2503 = vrot.slane %v2495, %v2502
      %v2505 = vunpack.c.l.s4 1966171168
      %v2506 = vunpack.c.0.s8 %v2505
      %v2507 = vlaneseq
      %v2508 = vshrl.u32 %v2507, 7
      %v2509 = vsub.s32 %v2506, %v2508
      %v2510 = vrot.slane %v2496, %v2509
      %v2511 = vcombine.high %v2503, %v2503
      %v2512 = vcombine.high %v2510, %v2510
      %v2514 = vunpack.c.l.s4 1966171168
      %v2515 = vunpack.c.0.s8 %v2514
      %v2516 = vlaneseq
      %v2517 = vshrl.u32 %v2516, 7
      %v2518 = vsub.s32 %v2515, %v2517
      %v2519 = vrot.slane %v2414, %v2518
      %v2521 = vunpack.c.l.s4 1966171168
      %v2522 = vunpack.c.0.s8 %v2521
      %v2523 = vlaneseq
      %v2524 = vshrl.u32 %v2523, 7
      %v2525 = vsub.s32 %v2522, %v2524
      %v2526 = vrot.slane %v2519, %v2525
      %v2528 = vunpack.c.l.s4 1966171168
      %v2529 = vunpack.c.0.s8 %v2528
      %v2530 = vlaneseq
      %v2531 = vshrl.u32 %v2530, 7
      %v2532 = vsub.s32 %v2529, %v2531
      %v2533 = vrot.slane %v2415, %v2532
      %v2534 = vcombine.high %v2533, %v2533
      %v2536 = vunpack.c.l.s4 1966171168
      %v2537 = vunpack.c.0.s8 %v2536
      %v2538 = vlaneseq
      %v2539 = vshrl.u32 %v2538, 7
      %v2540 = vsub.s32 %v2537, %v2539
      %v2541 = vrot.slane %v2533, %v2540
      %v2543 = vunpack.c.l.s4 1966171168
      %v2544 = vunpack.c.0.s8 %v2543
      %v2545 = vlaneseq
      %v2546 = vshrl.u32 %v2545, 7
      %v2547 = vsub.s32 %v2544, %v2546
      %v2548 = vrot.slane %v2534, %v2547
      %v2549 = vcombine.high %v2541, %v2541
      %v2550 = vcombine.high %v2548, %v2548
      %v2552 = vunpack.c.l.s4 1966171168
      %v2553 = vunpack.c.0.s8 %v2552
      %v2554 = vlaneseq
      %v2555 = vshrl.u32 %v2554, 7
      %v2556 = vsub.s32 %v2553, %v2555
      %v2557 = vrot.slane %v2416, %v2556
      %v2559 = vunpack.c.l.s4 1966171168
      %v2560 = vunpack.c.0.s8 %v2559
      %v2561 = vlaneseq
      %v2562 = vshrl.u32 %v2561, 7
      %v2563 = vsub.s32 %v2560, %v2562
      %v2564 = vrot.slane %v2557, %v2563
      %v2566 = vunpack.c.l.s4 1966171168
      %v2567 = vunpack.c.0.s8 %v2566
      %v2568 = vlaneseq
      %v2569 = vshrl.u32 %v2568, 7
      %v2570 = vsub.s32 %v2567, %v2569
      %v2571 = vrot.slane %v2417, %v2570
      %v2572 = vcombine.high %v2571, %v2571
      %v2574 = vunpack.c.l.s4 1966171168
      %v2575 = vunpack.c.0.s8 %v2574
      %v2576 = vlaneseq
      %v2577 = vshrl.u32 %v2576, 7
      %v2578 = vsub.s32 %v2575, %v2577
      %v2579 = vrot.slane %v2571, %v2578
      %v2581 = vunpack.c.l.s4 1966171168
      %v2582 = vunpack.c.0.s8 %v2581
      %v2583 = vlaneseq
      %v2584 = vshrl.u32 %v2583, 7
      %v2585 = vsub.s32 %v2582, %v2584
      %v2586 = vrot.slane %v2572, %v2585
      %v2587 = vcombine.high %v2579, %v2579
      %v2588 = vcombine.high %v2586, %v2586
      %v2590 = vunpack.c.l.s4 1966171168
      %v2591 = vunpack.c.0.s8 %v2590
      %v2592 = vlaneseq
      %v2593 = vshrl.u32 %v2592, 7
      %v2594 = vsub.s32 %v2591, %v2593
      %v2595 = vrot.slane %v2418, %v2594
      %v2597 = vunpack.c.l.s4 1966171168
      %v2598 = vunpack.c.0.s8 %v2597
      %v2599 = vlaneseq
      %v2600 = vshrl.u32 %v2599, 7
      %v2601 = vsub.s32 %v2598, %v2600
      %v2602 = vrot.slane %v2595, %v2601
      %v2604 = vunpack.c.l.s4 1966171168
      %v2605 = vunpack.c.0.s8 %v2604
      %v2606 = vlaneseq
      %v2607 = vshrl.u32 %v2606, 7
      %v2608 = vsub.s32 %v2605, %v2607
      %v2609 = vrot.slane %v2419, %v2608
      %v2610 = vcombine.high %v2609, %v2609
      %v2612 = vunpack.c.l.s4 1966171168
      %v2613 = vunpack.c.0.s8 %v2612
      %v2614 = vlaneseq
      %v2615 = vshrl.u32 %v2614, 7
      %v2616 = vsub.s32 %v2613, %v2615
      %v2617 = vrot.slane %v2609, %v2616
      %v2619 = vunpack.c.l.s4 1966171168
      %v2620 = vunpack.c.0.s8 %v2619
      %v2621 = vlaneseq
      %v2622 = vshrl.u32 %v2621, 7
      %v2623 = vsub.s32 %v2620, %v2622
      %v2624 = vrot.slane %v2610, %v2623
      %v2625 = vcombine.high %v2617, %v2617
      %v2626 = vcombine.high %v2624, %v2624
      %v2628 = vunpack.c.l.s4 1966171168
      %v2629 = vunpack.c.0.s8 %v2628
      %v2630 = vlaneseq
      %v2631 = vshrl.u32 %v2630, 7
      %v2632 = vsub.s32 %v2629, %v2631
      %v2633 = vrot.slane %v2420, %v2632
      %v2635 = vunpack.c.l.s4 1966171168
      %v2636 = vunpack.c.0.s8 %v2635
      %v2637 = vlaneseq
      %v2638 = vshrl.u32 %v2637, 7
      %v2639 = vsub.s32 %v2636, %v2638
      %v2640 = vrot.slane %v2633, %v2639
      %v2642 = vunpack.c.l.s4 1966171168
      %v2643 = vunpack.c.0.s8 %v2642
      %v2644 = vlaneseq
      %v2645 = vshrl.u32 %v2644, 7
      %v2646 = vsub.s32 %v2643, %v2645
      %v2647 = vrot.slane %v2421, %v2646
      %v2648 = vcombine.high %v2647, %v2647
      %v2650 = vunpack.c.l.s4 1966171168
      %v2651 = vunpack.c.0.s8 %v2650
      %v2652 = vlaneseq
      %v2653 = vshrl.u32 %v2652, 7
      %v2654 = vsub.s32 %v2651, %v2653
      %v2655 = vrot.slane %v2647, %v2654
      %v2657 = vunpack.c.l.s4 1966171168
      %v2658 = vunpack.c.0.s8 %v2657
      %v2659 = vlaneseq
      %v2660 = vshrl.u32 %v2659, 7
      %v2661 = vsub.s32 %v2658, %v2660
      %v2662 = vrot.slane %v2648, %v2661
      %v2663 = vcombine.high %v2655, %v2655
      %v2664 = vcombine.high %v2662, %v2662
      %v2666 = vunpack.c.l.s4 1966171168
      %v2667 = vunpack.c.0.s8 %v2666
      %v2668 = vlaneseq
      %v2669 = vshrl.u32 %v2668, 7
      %v2670 = vsub.s32 %v2667, %v2669
      %v2671 = vrot.slane %v2422, %v2670
      %v2673 = vunpack.c.l.s4 1966171168
      %v2674 = vunpack.c.0.s8 %v2673
      %v2675 = vlaneseq
      %v2676 = vshrl.u32 %v2675, 7
      %v2677 = vsub.s32 %v2674, %v2676
      %v2678 = vrot.slane %v2671, %v2677
      %v2680 = vunpack.c.l.s4 1966171168
      %v2681 = vunpack.c.0.s8 %v2680
      %v2682 = vlaneseq
      %v2683 = vshrl.u32 %v2682, 7
      %v2684 = vsub.s32 %v2681, %v2683
      %v2685 = vrot.slane %v2423, %v2684
      %v2686 = vcombine.high %v2685, %v2685
      %v2688 = vunpack.c.l.s4 1966171168
      %v2689 = vunpack.c.0.s8 %v2688
      %v2690 = vlaneseq
      %v2691 = vshrl.u32 %v2690, 7
      %v2692 = vsub.s32 %v2689, %v2691
      %v2693 = vrot.slane %v2685, %v2692
      %v2695 = vunpack.c.l.s4 1966171168
      %v2696 = vunpack.c.0.s8 %v2695
      %v2697 = vlaneseq
      %v2698 = vshrl.u32 %v2697, 7
      %v2699 = vsub.s32 %v2696, %v2698
      %v2700 = vrot.slane %v2686, %v2699
      %v2701 = vcombine.high %v2693, %v2693
      %v2702 = vcombine.high %v2700, %v2700
      %v2704 = vunpack.c.l.s4 1966171168
      %v2705 = vunpack.c.0.s8 %v2704
      %v2706 = vlaneseq
      %v2707 = vshrl.u32 %v2706, 7
      %v2708 = vsub.s32 %v2705, %v2707
      %v2709 = vrot.slane %v2424, %v2708
      %v2711 = vunpack.c.l.s4 1966171168
      %v2712 = vunpack.c.0.s8 %v2711
      %v2713 = vlaneseq
      %v2714 = vshrl.u32 %v2713, 7
      %v2715 = vsub.s32 %v2712, %v2714
      %v2716 = vrot.slane %v2709, %v2715
      %v2718 = vunpack.c.l.s4 1966171168
      %v2719 = vunpack.c.0.s8 %v2718
      %v2720 = vlaneseq
      %v2721 = vshrl.u32 %v2720, 7
      %v2722 = vsub.s32 %v2719, %v2721
      %v2723 = vrot.slane %v2425, %v2722
      %v2724 = vcombine.high %v2723, %v2723
      %v2726 = vunpack.c.l.s4 1966171168
      %v2727 = vunpack.c.0.s8 %v2726
      %v2728 = vlaneseq
      %v2729 = vshrl.u32 %v2728, 7
      %v2730 = vsub.s32 %v2727, %v2729
      %v2731 = vrot.slane %v2723, %v2730
      %v2733 = vunpack.c.l.s4 1966171168
      %v2734 = vunpack.c.0.s8 %v2733
      %v2735 = vlaneseq
      %v2736 = vshrl.u32 %v2735, 7
      %v2737 = vsub.s32 %v2734, %v2736
      %v2738 = vrot.slane %v2724, %v2737
      %v2739 = vcombine.high %v2731, %v2731
      %v2740 = vcombine.high %v2738, %v2738
      %v2742 = vunpack.c.l.s4 1966171168
      %v2743 = vunpack.c.0.s8 %v2742
      %v2744 = vlaneseq
      %v2745 = vshrl.u32 %v2744, 7
      %v2746 = vsub.s32 %v2743, %v2745
      %v2747 = vrot.slane %v2426, %v2746
      %v2749 = vunpack.c.l.s4 1966171168
      %v2750 = vunpack.c.0.s8 %v2749
      %v2751 = vlaneseq
      %v2752 = vshrl.u32 %v2751, 7
      %v2753 = vsub.s32 %v2750, %v2752
      %v2754 = vrot.slane %v2747, %v2753
      %v2756 = vunpack.c.l.s4 1966171168
      %v2757 = vunpack.c.0.s8 %v2756
      %v2758 = vlaneseq
      %v2759 = vshrl.u32 %v2758, 7
      %v2760 = vsub.s32 %v2757, %v2759
      %v2761 = vrot.slane %v2427, %v2760
      %v2762 = vcombine.high %v2761, %v2761
      %v2764 = vunpack.c.l.s4 1966171168
      %v2765 = vunpack.c.0.s8 %v2764
      %v2766 = vlaneseq
      %v2767 = vshrl.u32 %v2766, 7
      %v2768 = vsub.s32 %v2765, %v2767
      %v2769 = vrot.slane %v2761, %v2768
      %v2771 = vunpack.c.l.s4 1966171168
      %v2772 = vunpack.c.0.s8 %v2771
      %v2773 = vlaneseq
      %v2774 = vshrl.u32 %v2773, 7
      %v2775 = vsub.s32 %v2772, %v2774
      %v2776 = vrot.slane %v2762, %v2775
      %v2777 = vcombine.high %v2769, %v2769
      %v2778 = vcombine.high %v2776, %v2776
      %v2780 = vunpack.c.l.s4 1966171168
      %v2781 = vunpack.c.0.s8 %v2780
      %v2782 = vlaneseq
      %v2783 = vshrl.u32 %v2782, 7
      %v2784 = vsub.s32 %v2781, %v2783
      %v2785 = vrot.slane %v2428, %v2784
      %v2787 = vunpack.c.l.s4 1966171168
      %v2788 = vunpack.c.0.s8 %v2787
      %v2789 = vlaneseq
      %v2790 = vshrl.u32 %v2789, 7
      %v2791 = vsub.s32 %v2788, %v2790
      %v2792 = vrot.slane %v2785, %v2791
      %v2794 = vunpack.c.l.s4 1966171168
      %v2795 = vunpack.c.0.s8 %v2794
      %v2796 = vlaneseq
      %v2797 = vshrl.u32 %v2796, 7
      %v2798 = vsub.s32 %v2795, %v2797
      %v2799 = vrot.slane %v2429, %v2798
      %v2800 = vcombine.high %v2799, %v2799
      %v2802 = vunpack.c.l.s4 1966171168
      %v2803 = vunpack.c.0.s8 %v2802
      %v2804 = vlaneseq
      %v2805 = vshrl.u32 %v2804, 7
      %v2806 = vsub.s32 %v2803, %v2805
      %v2807 = vrot.slane %v2799, %v2806
      %v2809 = vunpack.c.l.s4 1966171168
      %v2810 = vunpack.c.0.s8 %v2809
      %v2811 = vlaneseq
      %v2812 = vshrl.u32 %v2811, 7
      %v2813 = vsub.s32 %v2810, %v2812
      %v2814 = vrot.slane %v2800, %v2813
      %v2815 = vcombine.high %v2807, %v2807
      %v2816 = vcombine.high %v2814, %v2814
      %v2818 = vunpack.c.l.s4 1966171168
      %v2819 = vunpack.c.0.s8 %v2818
      %v2820 = vlaneseq
      %v2821 = vshrl.u32 %v2820, 7
      %v2822 = vsub.s32 %v2819, %v2821
      %v2823 = vrot.slane %v2430, %v2822
      %v2825 = vunpack.c.l.s4 1966171168
      %v2826 = vunpack.c.0.s8 %v2825
      %v2827 = vlaneseq
      %v2828 = vshrl.u32 %v2827, 7
      %v2829 = vsub.s32 %v2826, %v2828
      %v2830 = vrot.slane %v2823, %v2829
      %v2831 = vld [vmem:[%s1 + $0xc] sm:$0xf]
      %v2832 = vcombine.low %v2465, %v2472
      %v2833 = vcombine.low %v2473, %v2474
      %v2834 = vcombine.low %v2488, %v2503
      %v2835 = vcombine.low %v2510, %v2511
      %v2837 = vunpack.c.l.s4 1966171168
      %v2838 = vunpack.c.0.s8 %v2837
      %v2839 = vlaneseq
      %v2840 = vshrl.u32 %v2839, 7
      %v2841 = vsub.s32 %v2838, %v2840
      %v2842 = vrot.slane %v2832, %v2841
      %v2844 = vunpack.c.l.s4 1966171168
      %v2845 = vunpack.c.0.s8 %v2844
      %v2846 = vlaneseq
      %v2847 = vshrl.u32 %v2846, 7
      %v2848 = vsub.s32 %v2845, %v2847
      %v2849 = vrot.slane %v2833, %v2848
      %v2851 = vunpack.c.l.s4 1966171168
      %v2852 = vunpack.c.0.s8 %v2851
      %v2853 = vlaneseq
      %v2854 = vshrl.u32 %v2853, 7
      %v2855 = vsub.s32 %v2852, %v2854
      %v2856 = vrot.slane %v2834, %v2855
      %v2858 = vunpack.c.l.s4 1966171168
      %v2859 = vunpack.c.0.s8 %v2858
      %v2860 = vlaneseq
      %v2861 = vshrl.u32 %v2860, 7
      %v2862 = vsub.s32 %v2859, %v2861
      %v2863 = vrot.slane %v2835, %v2862
      %v2864 = vcombine.low %v2842, %v2849
      %v2865 = vcombine.low %v2856, %v2863
      %v2867 = vunpack.c.l.s4 1966171168
      %v2868 = vunpack.c.0.s8 %v2867
      %v2869 = vlaneseq
      %v2870 = vshrl.u32 %v2869, 7
      %v2871 = vsub.s32 %v2868, %v2870
      %v2872 = vrot.slane %v2864, %v2871
      %v2874 = vunpack.c.l.s4 1966171168
      %v2875 = vunpack.c.0.s8 %v2874
      %v2876 = vlaneseq
      %v2877 = vshrl.u32 %v2876, 7
      %v2878 = vsub.s32 %v2875, %v2877
      %v2879 = vrot.slane %v2865, %v2878
      %v2880 = vcombine.low %v2872, %v2879
      %v2881 = vcombine.low %v2512, %v2526
      %v2882 = vcombine.low %v2541, %v2548
      %v2883 = vcombine.low %v2549, %v2550
      %v2884 = vcombine.low %v2564, %v2579
      %v2886 = vunpack.c.l.s4 1966171168
      %v2887 = vunpack.c.0.s8 %v2886
      %v2888 = vlaneseq
      %v2889 = vshrl.u32 %v2888, 7
      %v2890 = vsub.s32 %v2887, %v2889
      %v2891 = vrot.slane %v2881, %v2890
      %v2893 = vunpack.c.l.s4 1966171168
      %v2894 = vunpack.c.0.s8 %v2893
      %v2895 = vlaneseq
      %v2896 = vshrl.u32 %v2895, 7
      %v2897 = vsub.s32 %v2894, %v2896
      %v2898 = vrot.slane %v2882, %v2897
      %v2900 = vunpack.c.l.s4 1966171168
      %v2901 = vunpack.c.0.s8 %v2900
      %v2902 = vlaneseq
      %v2903 = vshrl.u32 %v2902, 7
      %v2904 = vsub.s32 %v2901, %v2903
      %v2905 = vrot.slane %v2883, %v2904
      %v2907 = vunpack.c.l.s4 1966171168
      %v2908 = vunpack.c.0.s8 %v2907
      %v2909 = vlaneseq
      %v2910 = vshrl.u32 %v2909, 7
      %v2911 = vsub.s32 %v2908, %v2910
      %v2912 = vrot.slane %v2884, %v2911
      %v2913 = vcombine.low %v2891, %v2898
      %v2914 = vcombine.low %v2905, %v2912
      %v2916 = vunpack.c.l.s4 1966171168
      %v2917 = vunpack.c.0.s8 %v2916
      %v2918 = vlaneseq
      %v2919 = vshrl.u32 %v2918, 7
      %v2920 = vsub.s32 %v2917, %v2919
      %v2921 = vrot.slane %v2913, %v2920
      %v2923 = vunpack.c.l.s4 1966171168
      %v2924 = vunpack.c.0.s8 %v2923
      %v2925 = vlaneseq
      %v2926 = vshrl.u32 %v2925, 7
      %v2927 = vsub.s32 %v2924, %v2926
      %v2928 = vrot.slane %v2914, %v2927
      %v2929 = vcombine.low %v2921, %v2928
      %v2930 = vcombine.low %v2586, %v2587
      %v2931 = vcombine.low %v2588, %v2602
      %v2932 = vcombine.low %v2617, %v2624
      %v2933 = vcombine.low %v2625, %v2626
      %v2935 = vunpack.c.l.s4 1966171168
      %v2936 = vunpack.c.0.s8 %v2935
      %v2937 = vlaneseq
      %v2938 = vshrl.u32 %v2937, 7
      %v2939 = vsub.s32 %v2936, %v2938
      %v2940 = vrot.slane %v2930, %v2939
      %v2942 = vunpack.c.l.s4 1966171168
      %v2943 = vunpack.c.0.s8 %v2942
      %v2944 = vlaneseq
      %v2945 = vshrl.u32 %v2944, 7
      %v2946 = vsub.s32 %v2943, %v2945
      %v2947 = vrot.slane %v2931, %v2946
      %v2949 = vunpack.c.l.s4 1966171168
      %v2950 = vunpack.c.0.s8 %v2949
      %v2951 = vlaneseq
      %v2952 = vshrl.u32 %v2951, 7
      %v2953 = vsub.s32 %v2950, %v2952
      %v2954 = vrot.slane %v2932, %v2953
      %v2956 = vunpack.c.l.s4 1966171168
      %v2957 = vunpack.c.0.s8 %v2956
      %v2958 = vlaneseq
      %v2959 = vshrl.u32 %v2958, 7
      %v2960 = vsub.s32 %v2957, %v2959
      %v2961 = vrot.slane %v2933, %v2960
      %v2962 = vcombine.low %v2940, %v2947
      %v2963 = vcombine.low %v2954, %v2961
      %v2965 = vunpack.c.l.s4 1966171168
      %v2966 = vunpack.c.0.s8 %v2965
      %v2967 = vlaneseq
      %v2968 = vshrl.u32 %v2967, 7
      %v2969 = vsub.s32 %v2966, %v2968
      %v2970 = vrot.slane %v2962, %v2969
      %v2972 = vunpack.c.l.s4 1966171168
      %v2973 = vunpack.c.0.s8 %v2972
      %v2974 = vlaneseq
      %v2975 = vshrl.u32 %v2974, 7
      %v2976 = vsub.s32 %v2973, %v2975
      %v2977 = vrot.slane %v2963, %v2976
      %v2978 = vcombine.low %v2970, %v2977
      %v2979 = vcombine.low %v2640, %v2655
      %v2980 = vcombine.low %v2662, %v2663
      %v2981 = vcombine.low %v2664, %v2678
      %v2982 = vcombine.low %v2693, %v2700
      %v2984 = vunpack.c.l.s4 1966171168
      %v2985 = vunpack.c.0.s8 %v2984
      %v2986 = vlaneseq
      %v2987 = vshrl.u32 %v2986, 7
      %v2988 = vsub.s32 %v2985, %v2987
      %v2989 = vrot.slane %v2979, %v2988
      %v2991 = vunpack.c.l.s4 1966171168
      %v2992 = vunpack.c.0.s8 %v2991
      %v2993 = vlaneseq
      %v2994 = vshrl.u32 %v2993, 7
      %v2995 = vsub.s32 %v2992, %v2994
      %v2996 = vrot.slane %v2980, %v2995
      %v2998 = vunpack.c.l.s4 1966171168
      %v2999 = vunpack.c.0.s8 %v2998
      %v3000 = vlaneseq
      %v3001 = vshrl.u32 %v3000, 7
      %v3002 = vsub.s32 %v2999, %v3001
      %v3003 = vrot.slane %v2981, %v3002
      %v3005 = vunpack.c.l.s4 1966171168
      %v3006 = vunpack.c.0.s8 %v3005
      %v3007 = vlaneseq
      %v3008 = vshrl.u32 %v3007, 7
      %v3009 = vsub.s32 %v3006, %v3008
      %v3010 = vrot.slane %v2982, %v3009
      %v3011 = vcombine.low %v2989, %v2996
      %v3012 = vcombine.low %v3003, %v3010
      %v3014 = vunpack.c.l.s4 1966171168
      %v3015 = vunpack.c.0.s8 %v3014
      %v3016 = vlaneseq
      %v3017 = vshrl.u32 %v3016, 7
      %v3018 = vsub.s32 %v3015, %v3017
      %v3019 = vrot.slane %v3011, %v3018
      %v3021 = vunpack.c.l.s4 1966171168
      %v3022 = vunpack.c.0.s8 %v3021
      %v3023 = vlaneseq
      %v3024 = vshrl.u32 %v3023, 7
      %v3025 = vsub.s32 %v3022, %v3024
      %v3026 = vrot.slane %v3012, %v3025
      %v3027 = vcombine.low %v3019, %v3026
      %v3028 = vcombine.low %v2701, %v2702
      %v3029 = vcombine.low %v2716, %v2731
      %v3030 = vcombine.low %v2738, %v2739
      %v3031 = vcombine.low %v2740, %v2754
      %v3033 = vunpack.c.l.s4 1966171168
      %v3034 = vunpack.c.0.s8 %v3033
      %v3035 = vlaneseq
      %v3036 = vshrl.u32 %v3035, 7
      %v3037 = vsub.s32 %v3034, %v3036
      %v3038 = vrot.slane %v3028, %v3037
      %v3040 = vunpack.c.l.s4 1966171168
      %v3041 = vunpack.c.0.s8 %v3040
      %v3042 = vlaneseq
      %v3043 = vshrl.u32 %v3042, 7
      %v3044 = vsub.s32 %v3041, %v3043
      %v3045 = vrot.slane %v3029, %v3044
      %v3047 = vunpack.c.l.s4 1966171168
      %v3048 = vunpack.c.0.s8 %v3047
      %v3049 = vlaneseq
      %v3050 = vshrl.u32 %v3049, 7
      %v3051 = vsub.s32 %v3048, %v3050
      %v3052 = vrot.slane %v3030, %v3051
      %v3054 = vunpack.c.l.s4 1966171168
      %v3055 = vunpack.c.0.s8 %v3054
      %v3056 = vlaneseq
      %v3057 = vshrl.u32 %v3056, 7
      %v3058 = vsub.s32 %v3055, %v3057
      %v3059 = vrot.slane %v3031, %v3058
      %v3060 = vcombine.low %v3038, %v3045
      %v3061 = vcombine.low %v3052, %v3059
      %v3063 = vunpack.c.l.s4 1966171168
      %v3064 = vunpack.c.0.s8 %v3063
      %v3065 = vlaneseq
      %v3066 = vshrl.u32 %v3065, 7
      %v3067 = vsub.s32 %v3064, %v3066
      %v3068 = vrot.slane %v3060, %v3067
      %v3070 = vunpack.c.l.s4 1966171168
      %v3071 = vunpack.c.0.s8 %v3070
      %v3072 = vlaneseq
      %v3073 = vshrl.u32 %v3072, 7
      %v3074 = vsub.s32 %v3071, %v3073
      %v3075 = vrot.slane %v3061, %v3074
      %v3076 = vcombine.low %v3068, %v3075
      %v3077 = vcombine.low %v2769, %v2776
      %v3078 = vcombine.low %v2777, %v2778
      %v3079 = vcombine.low %v2792, %v2807
      %v3080 = vcombine.low %v2814, %v2815
      %v3082 = vunpack.c.l.s4 1966171168
      %v3083 = vunpack.c.0.s8 %v3082
      %v3084 = vlaneseq
      %v3085 = vshrl.u32 %v3084, 7
      %v3086 = vsub.s32 %v3083, %v3085
      %v3087 = vrot.slane %v3077, %v3086
      %v3089 = vunpack.c.l.s4 1966171168
      %v3090 = vunpack.c.0.s8 %v3089
      %v3091 = vlaneseq
      %v3092 = vshrl.u32 %v3091, 7
      %v3093 = vsub.s32 %v3090, %v3092
      %v3094 = vrot.slane %v3078, %v3093
      %v3096 = vunpack.c.l.s4 1966171168
      %v3097 = vunpack.c.0.s8 %v3096
      %v3098 = vlaneseq
      %v3099 = vshrl.u32 %v3098, 7
      %v3100 = vsub.s32 %v3097, %v3099
      %v3101 = vrot.slane %v3079, %v3100
      %v3103 = vunpack.c.l.s4 1966171168
      %v3104 = vunpack.c.0.s8 %v3103
      %v3105 = vlaneseq
      %v3106 = vshrl.u32 %v3105, 7
      %v3107 = vsub.s32 %v3104, %v3106
      %v3108 = vrot.slane %v3080, %v3107
      %v3109 = vcombine.low %v3087, %v3094
      %v3110 = vcombine.low %v3101, %v3108
      %v3112 = vunpack.c.l.s4 1966171168
      %v3113 = vunpack.c.0.s8 %v3112
      %v3114 = vlaneseq
      %v3115 = vshrl.u32 %v3114, 7
      %v3116 = vsub.s32 %v3113, %v3115
      %v3117 = vrot.slane %v3109, %v3116
      %v3119 = vunpack.c.l.s4 1966171168
      %v3120 = vunpack.c.0.s8 %v3119
      %v3121 = vlaneseq
      %v3122 = vshrl.u32 %v3121, 7
      %v3123 = vsub.s32 %v3120, %v3122
      %v3124 = vrot.slane %v3110, %v3123
      %v3125 = vcombine.low %v3117, %v3124
      %v3126 = vcombine.low %v2816, %v2830
      %v3128 = vunpack.c.l.s4 1966171168
      %v3129 = vunpack.c.0.s8 %v3128
      %v3130 = vlaneseq
      %v3131 = vshrl.u32 %v3130, 7
      %v3132 = vsub.s32 %v3129, %v3131
      %v3133 = vrot.slane %v3126, %v3132
      %v3135 = vunpack.c.l.s4 1966171168
      %v3136 = vunpack.c.0.s8 %v3135
      %v3137 = vlaneseq
      %v3138 = vshrl.u32 %v3137, 7
      %v3139 = vsub.s32 %v3136, %v3138
      %v3140 = vrot.slane %v3133, %v3139
      %v3142 = vsel %vm1437, %v2880, 0
      %v3145 = vsel %vm1437, %v2929, 0
      %v3148 = vsel %vm1437, %v2978, 0
      %v3151 = vsel %vm1437, %v3027, 0
      %v3154 = vsel %vm1437, %v3076, 0
      %v3157 = vsel %vm1437, %v3125, 0
      %v3160 = vsel %vm1437, %v3140, 0
      %v3163 = vsel %vm1459, %v2831, 0
      %3165 = vmatprep.subr.bf16.mxu0 0
      %3166 = vmatpush1.bf16.msra.mxu0 %v3163
      %3167 = vmatprep.subr.bf16.mxu0 0
      %3168 = vmatpush1.bf16.msra.mxu0 0
      %3169 = vmatprep.subr.bf16.mxu0 0
      %3170 = vmatpush1.bf16.msra.mxu0 0
      %3171 = vmatprep.subr.bf16.mxu0 0
      %3172 = vmatpush1.bf16.msra.mxu0 0
      %3173 = vmatprep.subr.bf16.mxu0 0
      %3174 = vmatpush1.bf16.msra.mxu0 0
      %3175 = vmatprep.subr.bf16.mxu0 0
      %3176 = vmatpush1.bf16.msra.mxu0 0
      %3177 = vmatprep.subr.bf16.mxu0 0
      %3178 = vmatpush1.bf16.msra.mxu0 0
      %3179 = vmatprep.subr.bf16.mxu0 0
      %3180 = vmatpush1.bf16.msra.mxu0 0
      %3181 = vmatprep.subr.bf16.mxu0 0
      %3182 = vmatpush1.bf16.msra.mxu0 0
      %3183 = vmatprep.subr.bf16.mxu0 0
      %3184 = vmatpush1.bf16.msra.mxu0 0
      %3185 = vmatprep.subr.bf16.mxu0 0
      %3186 = vmatpush1.bf16.msra.mxu0 0
      %3187 = vmatprep.subr.bf16.mxu0 0
      %3188 = vmatpush1.bf16.msra.mxu0 0
      %3189 = vmatprep.subr.bf16.mxu0 0
      %3190 = vmatpush1.bf16.msra.mxu0 0
      %3191 = vmatprep.subr.bf16.mxu0 0
      %3192 = vmatpush1.bf16.msra.mxu0 0
      %3193 = vmatprep.subr.bf16.mxu0 0
      %3194 = vmatpush1.bf16.msra.mxu0 0
      %3195 = vmatprep.subr.bf16.mxu0 0
      %3196 = vmatpush1.bf16.msra.mxu0 0
      %3197 = vmatprep.mubr.bf16.mxu0 0
      %3198 = vmatmul.mubr.bf16.gmra.mrb[0].mxu0 %v3142
      %v3199 = vpop.f32.mrb[0].mxu0
      %v3200 = vadd.f32 0.0, %v3199
      %v3201 = vpop.f32.mrb[0].mxu0
      %v3202 = vpop.f32.mrb[0].mxu0
      %v3203 = vadd.f32 0.0, %v3202
      %v3204 = vpop.f32.mrb[0].mxu0
      %3205 = vmatprep.mubr.bf16.mxu0 0
      %3206 = vmatmul.mubr.bf16.gmra.mrb[0].mxu0 %v3145
      %v3207 = vpop.f32.mrb[0].mxu0
      %v3208 = vadd.f32 0.0, %v3207
      %v3209 = vpop.f32.mrb[0].mxu0
      %v3210 = vpop.f32.mrb[0].mxu0
      %v3211 = vadd.f32 0.0, %v3210
      %v3212 = vpop.f32.mrb[0].mxu0
      %3213 = vmatprep.mubr.bf16.mxu0 0
      %3214 = vmatmul.mubr.bf16.gmra.mrb[0].mxu0 %v3148
      %v3215 = vpop.f32.mrb[0].mxu0
      %v3216 = vadd.f32 0.0, %v3215
      %v3217 = vpop.f32.mrb[0].mxu0
      %v3218 = vpop.f32.mrb[0].mxu0
      %v3219 = vadd.f32 0.0, %v3218
      %v3220 = vpop.f32.mrb[0].mxu0
      %3221 = vmatprep.mubr.bf16.mxu0 0
      %3222 = vmatmul.mubr.bf16.gmra.mrb[0].mxu0 %v3151
      %v3223 = vpop.f32.mrb[0].mxu0
      %v3224 = vadd.f32 0.0, %v3223
      %v3225 = vpop.f32.mrb[0].mxu0
      %v3226 = vpop.f32.mrb[0].mxu0
      %v3227 = vadd.f32 0.0, %v3226
      %v3228 = vpop.f32.mrb[0].mxu0
      %3229 = vmatprep.mubr.bf16.mxu0 0
      %3230 = vmatmul.mubr.bf16.gmra.mrb[0].mxu0 %v3154
      %v3231 = vpop.f32.mrb[0].mxu0
      %v3232 = vadd.f32 0.0, %v3231
      %v3233 = vpop.f32.mrb[0].mxu0
      %v3234 = vpop.f32.mrb[0].mxu0
      %v3235 = vadd.f32 0.0, %v3234
      %v3236 = vpop.f32.mrb[0].mxu0
      %3237 = vmatprep.mubr.bf16.mxu0 0
      %3238 = vmatmul.mubr.bf16.gmra.mrb[0].mxu0 %v3157
      %v3239 = vpop.f32.mrb[0].mxu0
      %v3240 = vadd.f32 0.0, %v3239
      %v3241 = vpop.f32.mrb[0].mxu0
      %v3242 = vpop.f32.mrb[0].mxu0
      %v3243 = vadd.f32 0.0, %v3242
      %v3244 = vpop.f32.mrb[0].mxu0
      %3245 = vmatprep.mubr.bf16.mxu0 0
      %3246 = vmatmul.mubr.bf16.gmra.mrb[0].mxu0 %v3160
      %v3247 = vpop.f32.mrb[0].mxu0
      %v3248 = vadd.f32 0.0, %v3247
      %v3249 = vpop.f32.mrb[0].mxu0
      %v3250 = vpop.f32.mrb[0].mxu0
      %v3251 = vpop.f32.mrb[0].mxu0
      %3252 = vdwg.mxu0
      %v3253 = vadd.f32 %v2394, %v3200
      %v3254 = vadd.f32 %v2395, %v3203
      %v3255 = vadd.f32 %v2396, %v3208
      %v3256 = vadd.f32 %v2397, %v3211
      %v3257 = vadd.f32 %v2398, %v3216
      %v3258 = vadd.f32 %v2399, %v3219
      %v3259 = vadd.f32 %v2400, %v3224
      %v3260 = vadd.f32 %v2401, %v3227
      %v3261 = vadd.f32 %v2402, %v3232
      %v3262 = vadd.f32 %v2403, %v3235
      %v3263 = vadd.f32 %v2404, %v3240
      %v3264 = vadd.f32 %v2405, %v3243
      %v3265 = vadd.f32 %v2406, %v3248
      %v3266 = vcombine.high %v2481, %v2481
      %v3268 = vunpack.c.l.s4 1966171168
      %v3269 = vunpack.c.0.s8 %v3268
      %v3270 = vlaneseq
      %v3271 = vshrl.u32 %v3270, 7
      %v3272 = vsub.s32 %v3269, %v3271
      %v3273 = vrot.slane %v3266, %v3272
      %v3274 = vcombine.high %v2519, %v2519
      %v3276 = vunpack.c.l.s4 1966171168
      %v3277 = vunpack.c.0.s8 %v3276
      %v3278 = vlaneseq
      %v3279 = vshrl.u32 %v3278, 7
      %v3280 = vsub.s32 %v3277, %v3279
      %v3281 = vrot.slane %v3274, %v3280
      %v3282 = vcombine.high %v2557, %v2557
      %v3284 = vunpack.c.l.s4 1966171168
      %v3285 = vunpack.c.0.s8 %v3284
      %v3286 = vlaneseq
      %v3287 = vshrl.u32 %v3286, 7
      %v3288 = vsub.s32 %v3285, %v3287
      %v3289 = vrot.slane %v3282, %v3288
      %v3290 = vcombine.high %v2595, %v2595
      %v3292 = vunpack.c.l.s4 1966171168
      %v3293 = vunpack.c.0.s8 %v3292
      %v3294 = vlaneseq
      %v3295 = vshrl.u32 %v3294, 7
      %v3296 = vsub.s32 %v3293, %v3295
      %v3297 = vrot.slane %v3290, %v3296
      %v3298 = vcombine.high %v2633, %v2633
      %v3300 = vunpack.c.l.s4 1966171168
      %v3301 = vunpack.c.0.s8 %v3300
      %v3302 = vlaneseq
      %v3303 = vshrl.u32 %v3302, 7
      %v3304 = vsub.s32 %v3301, %v3303
      %v3305 = vrot.slane %v3298, %v3304
      %v3306 = vcombine.high %v2671, %v2671
      %v3308 = vunpack.c.l.s4 1966171168
      %v3309 = vunpack.c.0.s8 %v3308
      %v3310 = vlaneseq
      %v3311 = vshrl.u32 %v3310, 7
      %v3312 = vsub.s32 %v3309, %v3311
      %v3313 = vrot.slane %v3306, %v3312
      %v3314 = vcombine.high %v2709, %v2709
      %v3316 = vunpack.c.l.s4 1966171168
      %v3317 = vunpack.c.0.s8 %v3316
      %v3318 = vlaneseq
      %v3319 = vshrl.u32 %v3318, 7
      %v3320 = vsub.s32 %v3317, %v3319
      %v3321 = vrot.slane %v3314, %v3320
      %v3322 = vcombine.high %v2747, %v2747
      %v3324 = vunpack.c.l.s4 1966171168
      %v3325 = vunpack.c.0.s8 %v3324
      %v3326 = vlaneseq
      %v3327 = vshrl.u32 %v3326, 7
      %v3328 = vsub.s32 %v3325, %v3327
      %v3329 = vrot.slane %v3322, %v3328
      %v3330 = vcombine.high %v2785, %v2785
      %v3332 = vunpack.c.l.s4 1966171168
      %v3333 = vunpack.c.0.s8 %v3332
      %v3334 = vlaneseq
      %v3335 = vshrl.u32 %v3334, 7
      %v3336 = vsub.s32 %v3333, %v3335
      %v3337 = vrot.slane %v3330, %v3336
      %v3338 = vcombine.high %v2823, %v2823
      %v3340 = vunpack.c.l.s4 1966171168
      %v3341 = vunpack.c.0.s8 %v3340
      %v3342 = vlaneseq
      %v3343 = vshrl.u32 %v3342, 7
      %v3344 = vsub.s32 %v3341, %v3343
      %v3345 = vrot.slane %v3338, %v3344
      %v3347 = vshrl.u32 %v2465, 16
      %v3349 = vrot.slane %v3347, 7
      %v3350 = vrot.slane %v3349, 1
      %v3352 = vshll.u32 %v2472, 16
      %v3354 = vsel %vm716, %v3350, %v3352
      %v3355 = vshrl.u32 %v2472, 16
      %v3357 = vrot.slane %v3355, 7
      %v3358 = vrot.slane %v3357, 1
      %v3360 = vshll.u32 %v2473, 16
      %v3362 = vsel %vm716, %v3358, %v3360
      %v3363 = vshrl.u32 %v2473, 16
      %v3365 = vrot.slane %v3363, 7
      %v3366 = vrot.slane %v3365, 1
      %v3368 = vshll.u32 %v2474, 16
      %v3370 = vsel %vm716, %v3366, %v3368
      %v3371 = vshrl.u32 %v2474, 16
      %v3373 = vrot.slane %v3371, 7
      %v3374 = vrot.slane %v3373, 1
      %v3376 = vshll.u32 %v2488, 16
      %v3378 = vsel %vm716, %v3374, %v3376
      %v3379 = vshrl.u32 %v2488, 16
      %v3381 = vrot.slane %v3379, 7
      %v3382 = vrot.slane %v3381, 1
      %v3384 = vshll.u32 %v3273, 16
      %v3386 = vsel %vm716, %v3382, %v3384
      %v3388 = vshrl.u32 %v2503, 16
      %v3390 = vrot.slane %v3388, 7
      %v3391 = vrot.slane %v3390, 1
      %v3393 = vshll.u32 %v2510, 16
      %v3395 = vsel %vm716, %v3391, %v3393
      %v3396 = vshrl.u32 %v2510, 16
      %v3398 = vrot.slane %v3396, 7
      %v3399 = vrot.slane %v3398, 1
      %v3401 = vshll.u32 %v2511, 16
      %v3403 = vsel %vm716, %v3399, %v3401
      %v3404 = vshrl.u32 %v2511, 16
      %v3406 = vrot.slane %v3404, 7
      %v3407 = vrot.slane %v3406, 1
      %v3409 = vshll.u32 %v2512, 16
      %v3411 = vsel %vm716, %v3407, %v3409
      %v3412 = vshrl.u32 %v2512, 16
      %v3414 = vrot.slane %v3412, 7
      %v3415 = vrot.slane %v3414, 1
      %v3417 = vshll.u32 %v2526, 16
      %v3419 = vsel %vm716, %v3415, %v3417
      %v3420 = vshrl.u32 %v2526, 16
      %v3422 = vrot.slane %v3420, 7
      %v3423 = vrot.slane %v3422, 1
      %v3425 = vshll.u32 %v3281, 16
      %v3427 = vsel %vm716, %v3423, %v3425
      %v3429 = vshrl.u32 %v2541, 16
      %v3431 = vrot.slane %v3429, 7
      %v3432 = vrot.slane %v3431, 1
      %v3434 = vshll.u32 %v2548, 16
      %v3436 = vsel %vm716, %v3432, %v3434
      %v3437 = vshrl.u32 %v2548, 16
      %v3439 = vrot.slane %v3437, 7
      %v3440 = vrot.slane %v3439, 1
      %v3442 = vshll.u32 %v2549, 16
      %v3444 = vsel %vm716, %v3440, %v3442
      %v3445 = vshrl.u32 %v2549, 16
      %v3447 = vrot.slane %v3445, 7
      %v3448 = vrot.slane %v3447, 1
      %v3450 = vshll.u32 %v2550, 16
      %v3452 = vsel %vm716, %v3448, %v3450
      %v3453 = vshrl.u32 %v2550, 16
      %v3455 = vrot.slane %v3453, 7
      %v3456 = vrot.slane %v3455, 1
      %v3458 = vshll.u32 %v2564, 16
      %v3460 = vsel %vm716, %v3456, %v3458
      %v3461 = vshrl.u32 %v2564, 16
      %v3463 = vrot.slane %v3461, 7
      %v3464 = vrot.slane %v3463, 1
      %v3466 = vshll.u32 %v3289, 16
      %v3468 = vsel %vm716, %v3464, %v3466
      %v3470 = vshrl.u32 %v2579, 16
      %v3472 = vrot.slane %v3470, 7
      %v3473 = vrot.slane %v3472, 1
      %v3475 = vshll.u32 %v2586, 16
      %v3477 = vsel %vm716, %v3473, %v3475
      %v3478 = vshrl.u32 %v2586, 16
      %v3480 = vrot.slane %v3478, 7
      %v3481 = vrot.slane %v3480, 1
      %v3483 = vshll.u32 %v2587, 16
      %v3485 = vsel %vm716, %v3481, %v3483
      %v3486 = vshrl.u32 %v2587, 16
      %v3488 = vrot.slane %v3486, 7
      %v3489 = vrot.slane %v3488, 1
      %v3491 = vshll.u32 %v2588, 16
      %v3493 = vsel %vm716, %v3489, %v3491
      %v3494 = vshrl.u32 %v2588, 16
      %v3496 = vrot.slane %v3494, 7
      %v3497 = vrot.slane %v3496, 1
      %v3499 = vshll.u32 %v2602, 16
      %v3501 = vsel %vm716, %v3497, %v3499
      %v3502 = vshrl.u32 %v2602, 16
      %v3504 = vrot.slane %v3502, 7
      %v3505 = vrot.slane %v3504, 1
      %v3507 = vshll.u32 %v3297, 16
      %v3509 = vsel %vm716, %v3505, %v3507
      %v3511 = vshrl.u32 %v2617, 16
      %v3513 = vrot.slane %v3511, 7
      %v3514 = vrot.slane %v3513, 1
      %v3516 = vshll.u32 %v2624, 16
      %v3518 = vsel %vm716, %v3514, %v3516
      %v3519 = vshrl.u32 %v2624, 16
      %v3521 = vrot.slane %v3519, 7
      %v3522 = vrot.slane %v3521, 1
      %v3524 = vshll.u32 %v2625, 16
      %v3526 = vsel %vm716, %v3522, %v3524
      %v3527 = vshrl.u32 %v2625, 16
      %v3529 = vrot.slane %v3527, 7
      %v3530 = vrot.slane %v3529, 1
      %v3532 = vshll.u32 %v2626, 16
      %v3534 = vsel %vm716, %v3530, %v3532
      %v3535 = vshrl.u32 %v2626, 16
      %v3537 = vrot.slane %v3535, 7
      %v3538 = vrot.slane %v3537, 1
      %v3540 = vshll.u32 %v2640, 16
      %v3542 = vsel %vm716, %v3538, %v3540
      %v3543 = vshrl.u32 %v2640, 16
      %v3545 = vrot.slane %v3543, 7
      %v3546 = vrot.slane %v3545, 1
      %v3548 = vshll.u32 %v3305, 16
      %v3550 = vsel %vm716, %v3546, %v3548
      %v3552 = vshrl.u32 %v2655, 16
      %v3554 = vrot.slane %v3552, 7
      %v3555 = vrot.slane %v3554, 1
      %v3557 = vshll.u32 %v2662, 16
      %v3559 = vsel %vm716, %v3555, %v3557
      %v3560 = vshrl.u32 %v2662, 16
      %v3562 = vrot.slane %v3560, 7
      %v3563 = vrot.slane %v3562, 1
      %v3565 = vshll.u32 %v2663, 16
      %v3567 = vsel %vm716, %v3563, %v3565
      %v3568 = vshrl.u32 %v2663, 16
      %v3570 = vrot.slane %v3568, 7
      %v3571 = vrot.slane %v3570, 1
      %v3573 = vshll.u32 %v2664, 16
      %v3575 = vsel %vm716, %v3571, %v3573
      %v3576 = vshrl.u32 %v2664, 16
      %v3578 = vrot.slane %v3576, 7
      %v3579 = vrot.slane %v3578, 1
      %v3581 = vshll.u32 %v2678, 16
      %v3583 = vsel %vm716, %v3579, %v3581
      %v3584 = vshrl.u32 %v2678, 16
      %v3586 = vrot.slane %v3584, 7
      %v3587 = vrot.slane %v3586, 1
      %v3589 = vshll.u32 %v3313, 16
      %v3591 = vsel %vm716, %v3587, %v3589
      %v3593 = vshrl.u32 %v2693, 16
      %v3595 = vrot.slane %v3593, 7
      %v3596 = vrot.slane %v3595, 1
      %v3598 = vshll.u32 %v2700, 16
      %v3600 = vsel %vm716, %v3596, %v3598
      %v3601 = vshrl.u32 %v2700, 16
      %v3603 = vrot.slane %v3601, 7
      %v3604 = vrot.slane %v3603, 1
      %v3606 = vshll.u32 %v2701, 16
      %v3608 = vsel %vm716, %v3604, %v3606
      %v3609 = vshrl.u32 %v2701, 16
      %v3611 = vrot.slane %v3609, 7
      %v3612 = vrot.slane %v3611, 1
      %v3614 = vshll.u32 %v2702, 16
      %v3616 = vsel %vm716, %v3612, %v3614
      %v3617 = vshrl.u32 %v2702, 16
      %v3619 = vrot.slane %v3617, 7
      %v3620 = vrot.slane %v3619, 1
      %v3622 = vshll.u32 %v2716, 16
      %v3624 = vsel %vm716, %v3620, %v3622
      %v3625 = vshrl.u32 %v2716, 16
      %v3627 = vrot.slane %v3625, 7
      %v3628 = vrot.slane %v3627, 1
      %v3630 = vshll.u32 %v3321, 16
      %v3632 = vsel %vm716, %v3628, %v3630
      %v3634 = vshrl.u32 %v2731, 16
      %v3636 = vrot.slane %v3634, 7
      %v3637 = vrot.slane %v3636, 1
      %v3639 = vshll.u32 %v2738, 16
      %v3641 = vsel %vm716, %v3637, %v3639
      %v3642 = vshrl.u32 %v2738, 16
      %v3644 = vrot.slane %v3642, 7
      %v3645 = vrot.slane %v3644, 1
      %v3647 = vshll.u32 %v2739, 16
      %v3649 = vsel %vm716, %v3645, %v3647
      %v3650 = vshrl.u32 %v2739, 16
      %v3652 = vrot.slane %v3650, 7
      %v3653 = vrot.slane %v3652, 1
      %v3655 = vshll.u32 %v2740, 16
      %v3657 = vsel %vm716, %v3653, %v3655
      %v3658 = vshrl.u32 %v2740, 16
      %v3660 = vrot.slane %v3658, 7
      %v3661 = vrot.slane %v3660, 1
      %v3663 = vshll.u32 %v2754, 16
      %v3665 = vsel %vm716, %v3661, %v3663
      %v3666 = vshrl.u32 %v2754, 16
      %v3668 = vrot.slane %v3666, 7
      %v3669 = vrot.slane %v3668, 1
      %v3671 = vshll.u32 %v3329, 16
      %v3673 = vsel %vm716, %v3669, %v3671
      %v3675 = vshrl.u32 %v2769, 16
      %v3677 = vrot.slane %v3675, 7
      %v3678 = vrot.slane %v3677, 1
      %v3680 = vshll.u32 %v2776, 16
      %v3682 = vsel %vm716, %v3678, %v3680
      %v3683 = vshrl.u32 %v2776, 16
      %v3685 = vrot.slane %v3683, 7
      %v3686 = vrot.slane %v3685, 1
      %v3688 = vshll.u32 %v2777, 16
      %v3690 = vsel %vm716, %v3686, %v3688
      %v3691 = vshrl.u32 %v2777, 16
      %v3693 = vrot.slane %v3691, 7
      %v3694 = vrot.slane %v3693, 1
      %v3696 = vshll.u32 %v2778, 16
      %v3698 = vsel %vm716, %v3694, %v3696
      %v3699 = vshrl.u32 %v2778, 16
      %v3701 = vrot.slane %v3699, 7
      %v3702 = vrot.slane %v3701, 1
      %v3704 = vshll.u32 %v2792, 16
      %v3706 = vsel %vm716, %v3702, %v3704
      %v3707 = vshrl.u32 %v2792, 16
      %v3709 = vrot.slane %v3707, 7
      %v3710 = vrot.slane %v3709, 1
      %v3712 = vshll.u32 %v3337, 16
      %v3714 = vsel %vm716, %v3710, %v3712
      %v3716 = vshrl.u32 %v2807, 16
      %v3718 = vrot.slane %v3716, 7
      %v3719 = vrot.slane %v3718, 1
      %v3721 = vshll.u32 %v2814, 16
      %v3723 = vsel %vm716, %v3719, %v3721
      %v3724 = vshrl.u32 %v2814, 16
      %v3726 = vrot.slane %v3724, 7
      %v3727 = vrot.slane %v3726, 1
      %v3729 = vshll.u32 %v2815, 16
      %v3731 = vsel %vm716, %v3727, %v3729
      %v3732 = vshrl.u32 %v2815, 16
      %v3734 = vrot.slane %v3732, 7
      %v3735 = vrot.slane %v3734, 1
      %v3737 = vshll.u32 %v2816, 16
      %v3739 = vsel %vm716, %v3735, %v3737
      %v3740 = vshrl.u32 %v2816, 16
      %v3742 = vrot.slane %v3740, 7
      %v3743 = vrot.slane %v3742, 1
      %v3745 = vshll.u32 %v2830, 16
      %v3747 = vsel %vm716, %v3743, %v3745
      %v3748 = vshrl.u32 %v2830, 16
      %v3750 = vrot.slane %v3748, 7
      %v3751 = vrot.slane %v3750, 1
      %v3753 = vshll.u32 %v3345, 16
      %v3755 = vsel %vm716, %v3751, %v3753
      %v3756 = vld [vmem:[%s1 + $0x10] sm:$0xf]
      %v3757 = vcombine.low %v3354, %v3362
      %v3758 = vcombine.low %v3370, %v3378
      %v3759 = vcombine.low %v3386, %v3395
      %v3760 = vcombine.low %v3403, %v3411
      %v3762 = vunpack.c.l.s4 1966171168
      %v3763 = vunpack.c.0.s8 %v3762
      %v3764 = vlaneseq
      %v3765 = vshrl.u32 %v3764, 7
      %v3766 = vsub.s32 %v3763, %v3765
      %v3767 = vrot.slane %v3757, %v3766
      %v3769 = vunpack.c.l.s4 1966171168
      %v3770 = vunpack.c.0.s8 %v3769
      %v3771 = vlaneseq
      %v3772 = vshrl.u32 %v3771, 7
      %v3773 = vsub.s32 %v3770, %v3772
      %v3774 = vrot.slane %v3758, %v3773
      %v3776 = vunpack.c.l.s4 1966171168
      %v3777 = vunpack.c.0.s8 %v3776
      %v3778 = vlaneseq
      %v3779 = vshrl.u32 %v3778, 7
      %v3780 = vsub.s32 %v3777, %v3779
      %v3781 = vrot.slane %v3759, %v3780
      %v3783 = vunpack.c.l.s4 1966171168
      %v3784 = vunpack.c.0.s8 %v3783
      %v3785 = vlaneseq
      %v3786 = vshrl.u32 %v3785, 7
      %v3787 = vsub.s32 %v3784, %v3786
      %v3788 = vrot.slane %v3760, %v3787
      %v3789 = vcombine.low %v3767, %v3774
      %v3790 = vcombine.low %v3781, %v3788
      %v3792 = vunpack.c.l.s4 1966171168
      %v3793 = vunpack.c.0.s8 %v3792
      %v3794 = vlaneseq
      %v3795 = vshrl.u32 %v3794, 7
      %v3796 = vsub.s32 %v3793, %v3795
      %v3797 = vrot.slane %v3789, %v3796
      %v3799 = vunpack.c.l.s4 1966171168
      %v3800 = vunpack.c.0.s8 %v3799
      %v3801 = vlaneseq
      %v3802 = vshrl.u32 %v3801, 7
      %v3803 = vsub.s32 %v3800, %v3802
      %v3804 = vrot.slane %v3790, %v3803
      %v3805 = vcombine.low %v3797, %v3804
      %v3806 = vcombine.low %v3419, %v3427
      %v3807 = vcombine.low %v3436, %v3444
      %v3808 = vcombine.low %v3452, %v3460
      %v3809 = vcombine.low %v3468, %v3477
      %v3811 = vunpack.c.l.s4 1966171168
      %v3812 = vunpack.c.0.s8 %v3811
      %v3813 = vlaneseq
      %v3814 = vshrl.u32 %v3813, 7
      %v3815 = vsub.s32 %v3812, %v3814
      %v3816 = vrot.slane %v3806, %v3815
      %v3818 = vunpack.c.l.s4 1966171168
      %v3819 = vunpack.c.0.s8 %v3818
      %v3820 = vlaneseq
      %v3821 = vshrl.u32 %v3820, 7
      %v3822 = vsub.s32 %v3819, %v3821
      %v3823 = vrot.slane %v3807, %v3822
      %v3825 = vunpack.c.l.s4 1966171168
      %v3826 = vunpack.c.0.s8 %v3825
      %v3827 = vlaneseq
      %v3828 = vshrl.u32 %v3827, 7
      %v3829 = vsub.s32 %v3826, %v3828
      %v3830 = vrot.slane %v3808, %v3829
      %v3832 = vunpack.c.l.s4 1966171168
      %v3833 = vunpack.c.0.s8 %v3832
      %v3834 = vlaneseq
      %v3835 = vshrl.u32 %v3834, 7
      %v3836 = vsub.s32 %v3833, %v3835
      %v3837 = vrot.slane %v3809, %v3836
      %v3838 = vcombine.low %v3816, %v3823
      %v3839 = vcombine.low %v3830, %v3837
      %v3841 = vunpack.c.l.s4 1966171168
      %v3842 = vunpack.c.0.s8 %v3841
      %v3843 = vlaneseq
      %v3844 = vshrl.u32 %v3843, 7
      %v3845 = vsub.s32 %v3842, %v3844
      %v3846 = vrot.slane %v3838, %v3845
      %v3848 = vunpack.c.l.s4 1966171168
      %v3849 = vunpack.c.0.s8 %v3848
      %v3850 = vlaneseq
      %v3851 = vshrl.u32 %v3850, 7
      %v3852 = vsub.s32 %v3849, %v3851
      %v3853 = vrot.slane %v3839, %v3852
      %v3854 = vcombine.low %v3846, %v3853
      %v3855 = vcombine.low %v3485, %v3493
      %v3856 = vcombine.low %v3501, %v3509
      %v3857 = vcombine.low %v3518, %v3526
      %v3858 = vcombine.low %v3534, %v3542
      %v3860 = vunpack.c.l.s4 1966171168
      %v3861 = vunpack.c.0.s8 %v3860
      %v3862 = vlaneseq
      %v3863 = vshrl.u32 %v3862, 7
      %v3864 = vsub.s32 %v3861, %v3863
      %v3865 = vrot.slane %v3855, %v3864
      %v3867 = vunpack.c.l.s4 1966171168
      %v3868 = vunpack.c.0.s8 %v3867
      %v3869 = vlaneseq
      %v3870 = vshrl.u32 %v3869, 7
      %v3871 = vsub.s32 %v3868, %v3870
      %v3872 = vrot.slane %v3856, %v3871
      %v3874 = vunpack.c.l.s4 1966171168
      %v3875 = vunpack.c.0.s8 %v3874
      %v3876 = vlaneseq
      %v3877 = vshrl.u32 %v3876, 7
      %v3878 = vsub.s32 %v3875, %v3877
      %v3879 = vrot.slane %v3857, %v3878
      %v3881 = vunpack.c.l.s4 1966171168
      %v3882 = vunpack.c.0.s8 %v3881
      %v3883 = vlaneseq
      %v3884 = vshrl.u32 %v3883, 7
      %v3885 = vsub.s32 %v3882, %v3884
      %v3886 = vrot.slane %v3858, %v3885
      %v3887 = vcombine.low %v3865, %v3872
      %v3888 = vcombine.low %v3879, %v3886
      %v3890 = vunpack.c.l.s4 1966171168
      %v3891 = vunpack.c.0.s8 %v3890
      %v3892 = vlaneseq
      %v3893 = vshrl.u32 %v3892, 7
      %v3894 = vsub.s32 %v3891, %v3893
      %v3895 = vrot.slane %v3887, %v3894
      %v3897 = vunpack.c.l.s4 1966171168
      %v3898 = vunpack.c.0.s8 %v3897
      %v3899 = vlaneseq
      %v3900 = vshrl.u32 %v3899, 7
      %v3901 = vsub.s32 %v3898, %v3900
      %v3902 = vrot.slane %v3888, %v3901
      %v3903 = vcombine.low %v3895, %v3902
      %v3904 = vcombine.low %v3550, %v3559
      %v3905 = vcombine.low %v3567, %v3575
      %v3906 = vcombine.low %v3583, %v3591
      %v3907 = vcombine.low %v3600, %v3608
      %v3909 = vunpack.c.l.s4 1966171168
      %v3910 = vunpack.c.0.s8 %v3909
      %v3911 = vlaneseq
      %v3912 = vshrl.u32 %v3911, 7
      %v3913 = vsub.s32 %v3910, %v3912
      %v3914 = vrot.slane %v3904, %v3913
      %v3916 = vunpack.c.l.s4 1966171168
      %v3917 = vunpack.c.0.s8 %v3916
      %v3918 = vlaneseq
      %v3919 = vshrl.u32 %v3918, 7
      %v3920 = vsub.s32 %v3917, %v3919
      %v3921 = vrot.slane %v3905, %v3920
      %v3923 = vunpack.c.l.s4 1966171168
      %v3924 = vunpack.c.0.s8 %v3923
      %v3925 = vlaneseq
      %v3926 = vshrl.u32 %v3925, 7
      %v3927 = vsub.s32 %v3924, %v3926
      %v3928 = vrot.slane %v3906, %v3927
      %v3930 = vunpack.c.l.s4 1966171168
      %v3931 = vunpack.c.0.s8 %v3930
      %v3932 = vlaneseq
      %v3933 = vshrl.u32 %v3932, 7
      %v3934 = vsub.s32 %v3931, %v3933
      %v3935 = vrot.slane %v3907, %v3934
      %v3936 = vcombine.low %v3914, %v3921
      %v3937 = vcombine.low %v3928, %v3935
      %v3939 = vunpack.c.l.s4 1966171168
      %v3940 = vunpack.c.0.s8 %v3939
      %v3941 = vlaneseq
      %v3942 = vshrl.u32 %v3941, 7
      %v3943 = vsub.s32 %v3940, %v3942
      %v3944 = vrot.slane %v3936, %v3943
      %v3946 = vunpack.c.l.s4 1966171168
      %v3947 = vunpack.c.0.s8 %v3946
      %v3948 = vlaneseq
      %v3949 = vshrl.u32 %v3948, 7
      %v3950 = vsub.s32 %v3947, %v3949
      %v3951 = vrot.slane %v3937, %v3950
      %v3952 = vcombine.low %v3944, %v3951
      %v3953 = vcombine.low %v3616, %v3624
      %v3954 = vcombine.low %v3632, %v3641
      %v3955 = vcombine.low %v3649, %v3657
      %v3956 = vcombine.low %v3665, %v3673
      %v3958 = vunpack.c.l.s4 1966171168
      %v3959 = vunpack.c.0.s8 %v3958
      %v3960 = vlaneseq
      %v3961 = vshrl.u32 %v3960, 7
      %v3962 = vsub.s32 %v3959, %v3961
      %v3963 = vrot.slane %v3953, %v3962
      %v3965 = vunpack.c.l.s4 1966171168
      %v3966 = vunpack.c.0.s8 %v3965
      %v3967 = vlaneseq
      %v3968 = vshrl.u32 %v3967, 7
      %v3969 = vsub.s32 %v3966, %v3968
      %v3970 = vrot.slane %v3954, %v3969
      %v3972 = vunpack.c.l.s4 1966171168
      %v3973 = vunpack.c.0.s8 %v3972
      %v3974 = vlaneseq
      %v3975 = vshrl.u32 %v3974, 7
      %v3976 = vsub.s32 %v3973, %v3975
      %v3977 = vrot.slane %v3955, %v3976
      %v3979 = vunpack.c.l.s4 1966171168
      %v3980 = vunpack.c.0.s8 %v3979
      %v3981 = vlaneseq
      %v3982 = vshrl.u32 %v3981, 7
      %v3983 = vsub.s32 %v3980, %v3982
      %v3984 = vrot.slane %v3956, %v3983
      %v3985 = vcombine.low %v3963, %v3970
      %v3986 = vcombine.low %v3977, %v3984
      %v3988 = vunpack.c.l.s4 1966171168
      %v3989 = vunpack.c.0.s8 %v3988
      %v3990 = vlaneseq
      %v3991 = vshrl.u32 %v3990, 7
      %v3992 = vsub.s32 %v3989, %v3991
      %v3993 = vrot.slane %v3985, %v3992
      %v3995 = vunpack.c.l.s4 1966171168
      %v3996 = vunpack.c.0.s8 %v3995
      %v3997 = vlaneseq
      %v3998 = vshrl.u32 %v3997, 7
      %v3999 = vsub.s32 %v3996, %v3998
      %v4000 = vrot.slane %v3986, %v3999
      %v4001 = vcombine.low %v3993, %v4000
      %v4002 = vcombine.low %v3682, %v3690
      %v4003 = vcombine.low %v3698, %v3706
      %v4004 = vcombine.low %v3714, %v3723
      %v4005 = vcombine.low %v3731, %v3739
      %v4007 = vunpack.c.l.s4 1966171168
      %v4008 = vunpack.c.0.s8 %v4007
      %v4009 = vlaneseq
      %v4010 = vshrl.u32 %v4009, 7
      %v4011 = vsub.s32 %v4008, %v4010
      %v4012 = vrot.slane %v4002, %v4011
      %v4014 = vunpack.c.l.s4 1966171168
      %v4015 = vunpack.c.0.s8 %v4014
      %v4016 = vlaneseq
      %v4017 = vshrl.u32 %v4016, 7
      %v4018 = vsub.s32 %v4015, %v4017
      %v4019 = vrot.slane %v4003, %v4018
      %v4021 = vunpack.c.l.s4 1966171168
      %v4022 = vunpack.c.0.s8 %v4021
      %v4023 = vlaneseq
      %v4024 = vshrl.u32 %v4023, 7
      %v4025 = vsub.s32 %v4022, %v4024
      %v4026 = vrot.slane %v4004, %v4025
      %v4028 = vunpack.c.l.s4 1966171168
      %v4029 = vunpack.c.0.s8 %v4028
      %v4030 = vlaneseq
      %v4031 = vshrl.u32 %v4030, 7
      %v4032 = vsub.s32 %v4029, %v4031
      %v4033 = vrot.slane %v4005, %v4032
      %v4034 = vcombine.low %v4012, %v4019
      %v4035 = vcombine.low %v4026, %v4033
      %v4037 = vunpack.c.l.s4 1966171168
      %v4038 = vunpack.c.0.s8 %v4037
      %v4039 = vlaneseq
      %v4040 = vshrl.u32 %v4039, 7
      %v4041 = vsub.s32 %v4038, %v4040
      %v4042 = vrot.slane %v4034, %v4041
      %v4044 = vunpack.c.l.s4 1966171168
      %v4045 = vunpack.c.0.s8 %v4044
      %v4046 = vlaneseq
      %v4047 = vshrl.u32 %v4046, 7
      %v4048 = vsub.s32 %v4045, %v4047
      %v4049 = vrot.slane %v4035, %v4048
      %v4050 = vcombine.low %v4042, %v4049
      %v4051 = vcombine.low %v3747, %v3755
      %v4053 = vunpack.c.l.s4 1966171168
      %v4054 = vunpack.c.0.s8 %v4053
      %v4055 = vlaneseq
      %v4056 = vshrl.u32 %v4055, 7
      %v4057 = vsub.s32 %v4054, %v4056
      %v4058 = vrot.slane %v4051, %v4057
      %v4060 = vunpack.c.l.s4 1966171168
      %v4061 = vunpack.c.0.s8 %v4060
      %v4062 = vlaneseq
      %v4063 = vshrl.u32 %v4062, 7
      %v4064 = vsub.s32 %v4061, %v4063
      %v4065 = vrot.slane %v4058, %v4064
      %v4067 = vsel %vm1437, %v3805, 0
      %v4070 = vsel %vm1437, %v3854, 0
      %v4073 = vsel %vm1437, %v3903, 0
      %v4076 = vsel %vm1437, %v3952, 0
      %v4079 = vsel %vm1437, %v4001, 0
      %v4082 = vsel %vm1437, %v4050, 0
      %v4085 = vsel %vm1437, %v4065, 0
      %v4088 = vsel %vm1459, %v3756, 0
      %4090 = vmatprep.subr.bf16.mxu0 0
      %4091 = vmatpush1.bf16.msra.mxu0 %v4088
      %4092 = vmatprep.subr.bf16.mxu0 0
      %4093 = vmatpush1.bf16.msra.mxu0 0
      %4094 = vmatprep.subr.bf16.mxu0 0
      %4095 = vmatpush1.bf16.msra.mxu0 0
      %4096 = vmatprep.subr.bf16.mxu0 0
      %4097 = vmatpush1.bf16.msra.mxu0 0
      %4098 = vmatprep.subr.bf16.mxu0 0
      %4099 = vmatpush1.bf16.msra.mxu0 0
      %4100 = vmatprep.subr.bf16.mxu0 0
      %4101 = vmatpush1.bf16.msra.mxu0 0
      %4102 = vmatprep.subr.bf16.mxu0 0
      %4103 = vmatpush1.bf16.msra.mxu0 0
      %4104 = vmatprep.subr.bf16.mxu0 0
      %4105 = vmatpush1.bf16.msra.mxu0 0
      %4106 = vmatprep.subr.bf16.mxu0 0
      %4107 = vmatpush1.bf16.msra.mxu0 0
      %4108 = vmatprep.subr.bf16.mxu0 0
      %4109 = vmatpush1.bf16.msra.mxu0 0
      %4110 = vmatprep.subr.bf16.mxu0 0
      %4111 = vmatpush1.bf16.msra.mxu0 0
      %4112 = vmatprep.subr.bf16.mxu0 0
      %4113 = vmatpush1.bf16.msra.mxu0 0
      %4114 = vmatprep.subr.bf16.mxu0 0
      %4115 = vmatpush1.bf16.msra.mxu0 0
      %4116 = vmatprep.subr.bf16.mxu0 0
      %4117 = vmatpush1.bf16.msra.mxu0 0
      %4118 = vmatprep.subr.bf16.mxu0 0
      %4119 = vmatpush1.bf16.msra.mxu0 0
      %4120 = vmatprep.subr.bf16.mxu0 0
      %4121 = vmatpush1.bf16.msra.mxu0 0
      %4122 = vmatprep.mubr.bf16.mxu0 0
      %4123 = vmatmul.mubr.bf16.gmra.mrb[0].mxu0 %v4067
      %v4124 = vpop.f32.mrb[0].mxu0
      %v4125 = vadd.f32 0.0, %v4124
      %v4126 = vpop.f32.mrb[0].mxu0
      %v4127 = vpop.f32.mrb[0].mxu0
      %v4128 = vadd.f32 0.0, %v4127
      %v4129 = vpop.f32.mrb[0].mxu0
      %4130 = vmatprep.mubr.bf16.mxu0 0
      %4131 = vmatmul.mubr.bf16.gmra.mrb[0].mxu0 %v4070
      %v4132 = vpop.f32.mrb[0].mxu0
      %v4133 = vadd.f32 0.0, %v4132
      %v4134 = vpop.f32.mrb[0].mxu0
      %v4135 = vpop.f32.mrb[0].mxu0
      %v4136 = vadd.f32 0.0, %v4135
      %v4137 = vpop.f32.mrb[0].mxu0
      %4138 = vmatprep.mubr.bf16.mxu0 0
      %4139 = vmatmul.mubr.bf16.gmra.mrb[0].mxu0 %v4073
      %v4140 = vpop.f32.mrb[0].mxu0
      %v4141 = vadd.f32 0.0, %v4140
      %v4142 = vpop.f32.mrb[0].mxu0
      %v4143 = vpop.f32.mrb[0].mxu0
      %v4144 = vadd.f32 0.0, %v4143
      %v4145 = vpop.f32.mrb[0].mxu0
      %4146 = vmatprep.mubr.bf16.mxu0 0
      %4147 = vmatmul.mubr.bf16.gmra.mrb[0].mxu0 %v4076
      %v4148 = vpop.f32.mrb[0].mxu0
      %v4149 = vadd.f32 0.0, %v4148
      %v4150 = vpop.f32.mrb[0].mxu0
      %v4151 = vpop.f32.mrb[0].mxu0
      %v4152 = vadd.f32 0.0, %v4151
      %v4153 = vpop.f32.mrb[0].mxu0
      %4154 = vmatprep.mubr.bf16.mxu0 0
      %4155 = vmatmul.mubr.bf16.gmra.mrb[0].mxu0 %v4079
      %v4156 = vpop.f32.mrb[0].mxu0
      %v4157 = vadd.f32 0.0, %v4156
      %v4158 = vpop.f32.mrb[0].mxu0
      %v4159 = vpop.f32.mrb[0].mxu0
      %v4160 = vadd.f32 0.0, %v4159
      %v4161 = vpop.f32.mrb[0].mxu0
      %4162 = vmatprep.mubr.bf16.mxu0 0
      %4163 = vmatmul.mubr.bf16.gmra.mrb[0].mxu0 %v4082
      %v4164 = vpop.f32.mrb[0].mxu0
      %v4165 = vadd.f32 0.0, %v4164
      %v4166 = vpop.f32.mrb[0].mxu0
      %v4167 = vpop.f32.mrb[0].mxu0
      %v4168 = vadd.f32 0.0, %v4167
      %v4169 = vpop.f32.mrb[0].mxu0
      %4170 = vmatprep.mubr.bf16.mxu0 0
      %4171 = vmatmul.mubr.bf16.gmra.mrb[0].mxu0 %v4085
      %v4172 = vpop.f32.mrb[0].mxu0
      %v4173 = vadd.f32 0.0, %v4172
      %v4174 = vpop.f32.mrb[0].mxu0
      %v4175 = vpop.f32.mrb[0].mxu0
      %v4176 = vpop.f32.mrb[0].mxu0
      %4177 = vdwg.mxu0
      %v4178 = vadd.f32 %v3253, %v4125
      %v4179 = vadd.f32 %v3254, %v4128
      %v4180 = vadd.f32 %v3255, %v4133
      %v4181 = vadd.f32 %v3256, %v4136
      %v4182 = vadd.f32 %v3257, %v4141
      %v4183 = vadd.f32 %v3258, %v4144
      %v4184 = vadd.f32 %v3259, %v4149
      %v4185 = vadd.f32 %v3260, %v4152
      %v4186 = vadd.f32 %v3261, %v4157
      %v4187 = vadd.f32 %v3262, %v4160
      %v4188 = vadd.f32 %v3263, %v4165
      %v4189 = vadd.f32 %v3264, %v4168
      %v4190 = vadd.f32 %v3265, %v4173
      %v4191 = vld [vmem:[%s1 + $0x14] sm:$0xf]
      %v4192 = vcombine.low %v2472, %v2473
      %v4193 = vcombine.low %v2474, %v2488
      %v4194 = vcombine.low %v3273, %v2510
      %v4195 = vcombine.low %v2511, %v2512
      %v4197 = vunpack.c.l.s4 1966171168
      %v4198 = vunpack.c.0.s8 %v4197
      %v4199 = vlaneseq
      %v4200 = vshrl.u32 %v4199, 7
      %v4201 = vsub.s32 %v4198, %v4200
      %v4202 = vrot.slane %v4192, %v4201
      %v4204 = vunpack.c.l.s4 1966171168
      %v4205 = vunpack.c.0.s8 %v4204
      %v4206 = vlaneseq
      %v4207 = vshrl.u32 %v4206, 7
      %v4208 = vsub.s32 %v4205, %v4207
      %v4209 = vrot.slane %v4193, %v4208
      %v4211 = vunpack.c.l.s4 1966171168
      %v4212 = vunpack.c.0.s8 %v4211
      %v4213 = vlaneseq
      %v4214 = vshrl.u32 %v4213, 7
      %v4215 = vsub.s32 %v4212, %v4214
      %v4216 = vrot.slane %v4194, %v4215
      %v4218 = vunpack.c.l.s4 1966171168
      %v4219 = vunpack.c.0.s8 %v4218
      %v4220 = vlaneseq
      %v4221 = vshrl.u32 %v4220, 7
      %v4222 = vsub.s32 %v4219, %v4221
      %v4223 = vrot.slane %v4195, %v4222
      %v4224 = vcombine.low %v4202, %v4209
      %v4225 = vcombine.low %v4216, %v4223
      %v4227 = vunpack.c.l.s4 1966171168
      %v4228 = vunpack.c.0.s8 %v4227
      %v4229 = vlaneseq
      %v4230 = vshrl.u32 %v4229, 7
      %v4231 = vsub.s32 %v4228, %v4230
      %v4232 = vrot.slane %v4224, %v4231
      %v4234 = vunpack.c.l.s4 1966171168
      %v4235 = vunpack.c.0.s8 %v4234
      %v4236 = vlaneseq
      %v4237 = vshrl.u32 %v4236, 7
      %v4238 = vsub.s32 %v4235, %v4237
      %v4239 = vrot.slane %v4225, %v4238
      %v4240 = vcombine.low %v4232, %v4239
      %v4241 = vcombine.low %v2526, %v3281
      %v4242 = vcombine.low %v2548, %v2549
      %v4243 = vcombine.low %v2550, %v2564
      %v4244 = vcombine.low %v3289, %v2586
      %v4246 = vunpack.c.l.s4 1966171168
      %v4247 = vunpack.c.0.s8 %v4246
      %v4248 = vlaneseq
      %v4249 = vshrl.u32 %v4248, 7
      %v4250 = vsub.s32 %v4247, %v4249
      %v4251 = vrot.slane %v4241, %v4250
      %v4253 = vunpack.c.l.s4 1966171168
      %v4254 = vunpack.c.0.s8 %v4253
      %v4255 = vlaneseq
      %v4256 = vshrl.u32 %v4255, 7
      %v4257 = vsub.s32 %v4254, %v4256
      %v4258 = vrot.slane %v4242, %v4257
      %v4260 = vunpack.c.l.s4 1966171168
      %v4261 = vunpack.c.0.s8 %v4260
      %v4262 = vlaneseq
      %v4263 = vshrl.u32 %v4262, 7
      %v4264 = vsub.s32 %v4261, %v4263
      %v4265 = vrot.slane %v4243, %v4264
      %v4267 = vunpack.c.l.s4 1966171168
      %v4268 = vunpack.c.0.s8 %v4267
      %v4269 = vlaneseq
      %v4270 = vshrl.u32 %v4269, 7
      %v4271 = vsub.s32 %v4268, %v4270
      %v4272 = vrot.slane %v4244, %v4271
      %v4273 = vcombine.low %v4251, %v4258
      %v4274 = vcombine.low %v4265, %v4272
      %v4276 = vunpack.c.l.s4 1966171168
      %v4277 = vunpack.c.0.s8 %v4276
      %v4278 = vlaneseq
      %v4279 = vshrl.u32 %v4278, 7
      %v4280 = vsub.s32 %v4277, %v4279
      %v4281 = vrot.slane %v4273, %v4280
      %v4283 = vunpack.c.l.s4 1966171168
      %v4284 = vunpack.c.0.s8 %v4283
      %v4285 = vlaneseq
      %v4286 = vshrl.u32 %v4285, 7
      %v4287 = vsub.s32 %v4284, %v4286
      %v4288 = vrot.slane %v4274, %v4287
      %v4289 = vcombine.low %v4281, %v4288
      %v4290 = vcombine.low %v2587, %v2588
      %v4291 = vcombine.low %v2602, %v3297
      %v4292 = vcombine.low %v2624, %v2625
      %v4293 = vcombine.low %v2626, %v2640
      %v4295 = vunpack.c.l.s4 1966171168
      %v4296 = vunpack.c.0.s8 %v4295
      %v4297 = vlaneseq
      %v4298 = vshrl.u32 %v4297, 7
      %v4299 = vsub.s32 %v4296, %v4298
      %v4300 = vrot.slane %v4290, %v4299
      %v4302 = vunpack.c.l.s4 1966171168
      %v4303 = vunpack.c.0.s8 %v4302
      %v4304 = vlaneseq
      %v4305 = vshrl.u32 %v4304, 7
      %v4306 = vsub.s32 %v4303, %v4305
      %v4307 = vrot.slane %v4291, %v4306
      %v4309 = vunpack.c.l.s4 1966171168
      %v4310 = vunpack.c.0.s8 %v4309
      %v4311 = vlaneseq
      %v4312 = vshrl.u32 %v4311, 7
      %v4313 = vsub.s32 %v4310, %v4312
      %v4314 = vrot.slane %v4292, %v4313
      %v4316 = vunpack.c.l.s4 1966171168
      %v4317 = vunpack.c.0.s8 %v4316
      %v4318 = vlaneseq
      %v4319 = vshrl.u32 %v4318, 7
      %v4320 = vsub.s32 %v4317, %v4319
      %v4321 = vrot.slane %v4293, %v4320
      %v4322 = vcombine.low %v4300, %v4307
      %v4323 = vcombine.low %v4314, %v4321
      %v4325 = vunpack.c.l.s4 1966171168
      %v4326 = vunpack.c.0.s8 %v4325
      %v4327 = vlaneseq
      %v4328 = vshrl.u32 %v4327, 7
      %v4329 = vsub.s32 %v4326, %v4328
      %v4330 = vrot.slane %v4322, %v4329
      %v4332 = vunpack.c.l.s4 1966171168
      %v4333 = vunpack.c.0.s8 %v4332
      %v4334 = vlaneseq
      %v4335 = vshrl.u32 %v4334, 7
      %v4336 = vsub.s32 %v4333, %v4335
      %v4337 = vrot.slane %v4323, %v4336
      %v4338 = vcombine.low %v4330, %v4337
      %v4339 = vcombine.low %v3305, %v2662
      %v4340 = vcombine.low %v2663, %v2664
      %v4341 = vcombine.low %v2678, %v3313
      %v4342 = vcombine.low %v2700, %v2701
      %v4344 = vunpack.c.l.s4 1966171168
      %v4345 = vunpack.c.0.s8 %v4344
      %v4346 = vlaneseq
      %v4347 = vshrl.u32 %v4346, 7
      %v4348 = vsub.s32 %v4345, %v4347
      %v4349 = vrot.slane %v4339, %v4348
      %v4351 = vunpack.c.l.s4 1966171168
      %v4352 = vunpack.c.0.s8 %v4351
      %v4353 = vlaneseq
      %v4354 = vshrl.u32 %v4353, 7
      %v4355 = vsub.s32 %v4352, %v4354
      %v4356 = vrot.slane %v4340, %v4355
      %v4358 = vunpack.c.l.s4 1966171168
      %v4359 = vunpack.c.0.s8 %v4358
      %v4360 = vlaneseq
      %v4361 = vshrl.u32 %v4360, 7
      %v4362 = vsub.s32 %v4359, %v4361
      %v4363 = vrot.slane %v4341, %v4362
      %v4365 = vunpack.c.l.s4 1966171168
      %v4366 = vunpack.c.0.s8 %v4365
      %v4367 = vlaneseq
      %v4368 = vshrl.u32 %v4367, 7
      %v4369 = vsub.s32 %v4366, %v4368
      %v4370 = vrot.slane %v4342, %v4369
      %v4371 = vcombine.low %v4349, %v4356
      %v4372 = vcombine.low %v4363, %v4370
      %v4374 = vunpack.c.l.s4 1966171168
      %v4375 = vunpack.c.0.s8 %v4374
      %v4376 = vlaneseq
      %v4377 = vshrl.u32 %v4376, 7
      %v4378 = vsub.s32 %v4375, %v4377
      %v4379 = vrot.slane %v4371, %v4378
      %v4381 = vunpack.c.l.s4 1966171168
      %v4382 = vunpack.c.0.s8 %v4381
      %v4383 = vlaneseq
      %v4384 = vshrl.u32 %v4383, 7
      %v4385 = vsub.s32 %v4382, %v4384
      %v4386 = vrot.slane %v4372, %v4385
      %v4387 = vcombine.low %v4379, %v4386
      %v4388 = vcombine.low %v2702, %v2716
      %v4389 = vcombine.low %v3321, %v2738
      %v4390 = vcombine.low %v2739, %v2740
      %v4391 = vcombine.low %v2754, %v3329
      %v4393 = vunpack.c.l.s4 1966171168
      %v4394 = vunpack.c.0.s8 %v4393
      %v4395 = vlaneseq
      %v4396 = vshrl.u32 %v4395, 7
      %v4397 = vsub.s32 %v4394, %v4396
      %v4398 = vrot.slane %v4388, %v4397
      %v4400 = vunpack.c.l.s4 1966171168
      %v4401 = vunpack.c.0.s8 %v4400
      %v4402 = vlaneseq
      %v4403 = vshrl.u32 %v4402, 7
      %v4404 = vsub.s32 %v4401, %v4403
      %v4405 = vrot.slane %v4389, %v4404
      %v4407 = vunpack.c.l.s4 1966171168
      %v4408 = vunpack.c.0.s8 %v4407
      %v4409 = vlaneseq
      %v4410 = vshrl.u32 %v4409, 7
      %v4411 = vsub.s32 %v4408, %v4410
      %v4412 = vrot.slane %v4390, %v4411
      %v4414 = vunpack.c.l.s4 1966171168
      %v4415 = vunpack.c.0.s8 %v4414
      %v4416 = vlaneseq
      %v4417 = vshrl.u32 %v4416, 7
      %v4418 = vsub.s32 %v4415, %v4417
      %v4419 = vrot.slane %v4391, %v4418
      %v4420 = vcombine.low %v4398, %v4405
      %v4421 = vcombine.low %v4412, %v4419
      %v4423 = vunpack.c.l.s4 1966171168
      %v4424 = vunpack.c.0.s8 %v4423
      %v4425 = vlaneseq
      %v4426 = vshrl.u32 %v4425, 7
      %v4427 = vsub.s32 %v4424, %v4426
      %v4428 = vrot.slane %v4420, %v4427
      %v4430 = vunpack.c.l.s4 1966171168
      %v4431 = vunpack.c.0.s8 %v4430
      %v4432 = vlaneseq
      %v4433 = vshrl.u32 %v4432, 7
      %v4434 = vsub.s32 %v4431, %v4433
      %v4435 = vrot.slane %v4421, %v4434
      %v4436 = vcombine.low %v4428, %v4435
      %v4437 = vcombine.low %v2776, %v2777
      %v4438 = vcombine.low %v2778, %v2792
      %v4439 = vcombine.low %v3337, %v2814
      %v4440 = vcombine.low %v2815, %v2816
      %v4442 = vunpack.c.l.s4 1966171168
      %v4443 = vunpack.c.0.s8 %v4442
      %v4444 = vlaneseq
      %v4445 = vshrl.u32 %v4444, 7
      %v4446 = vsub.s32 %v4443, %v4445
      %v4447 = vrot.slane %v4437, %v4446
      %v4449 = vunpack.c.l.s4 1966171168
      %v4450 = vunpack.c.0.s8 %v4449
      %v4451 = vlaneseq
      %v4452 = vshrl.u32 %v4451, 7
      %v4453 = vsub.s32 %v4450, %v4452
      %v4454 = vrot.slane %v4438, %v4453
      %v4456 = vunpack.c.l.s4 1966171168
      %v4457 = vunpack.c.0.s8 %v4456
      %v4458 = vlaneseq
      %v4459 = vshrl.u32 %v4458, 7
      %v4460 = vsub.s32 %v4457, %v4459
      %v4461 = vrot.slane %v4439, %v4460
      %v4463 = vunpack.c.l.s4 1966171168
      %v4464 = vunpack.c.0.s8 %v4463
      %v4465 = vlaneseq
      %v4466 = vshrl.u32 %v4465, 7
      %v4467 = vsub.s32 %v4464, %v4466
      %v4468 = vrot.slane %v4440, %v4467
      %v4469 = vcombine.low %v4447, %v4454
      %v4470 = vcombine.low %v4461, %v4468
      %v4472 = vunpack.c.l.s4 1966171168
      %v4473 = vunpack.c.0.s8 %v4472
      %v4474 = vlaneseq
      %v4475 = vshrl.u32 %v4474, 7
      %v4476 = vsub.s32 %v4473, %v4475
      %v4477 = vrot.slane %v4469, %v4476
      %v4479 = vunpack.c.l.s4 1966171168
      %v4480 = vunpack.c.0.s8 %v4479
      %v4481 = vlaneseq
      %v4482 = vshrl.u32 %v4481, 7
      %v4483 = vsub.s32 %v4480, %v4482
      %v4484 = vrot.slane %v4470, %v4483
      %v4485 = vcombine.low %v4477, %v4484
      %v4486 = vcombine.low %v2830, %v3345
      %v4488 = vunpack.c.l.s4 1966171168
      %v4489 = vunpack.c.0.s8 %v4488
      %v4490 = vlaneseq
      %v4491 = vshrl.u32 %v4490, 7
      %v4492 = vsub.s32 %v4489, %v4491
      %v4493 = vrot.slane %v4486, %v4492
      %v4495 = vunpack.c.l.s4 1966171168
      %v4496 = vunpack.c.0.s8 %v4495
      %v4497 = vlaneseq
      %v4498 = vshrl.u32 %v4497, 7
      %v4499 = vsub.s32 %v4496, %v4498
      %v4500 = vrot.slane %v4493, %v4499
      %v4502 = vsel %vm1437, %v4240, 0
      %v4505 = vsel %vm1437, %v4289, 0
      %v4508 = vsel %vm1437, %v4338, 0
      %v4511 = vsel %vm1437, %v4387, 0
      %v4514 = vsel %vm1437, %v4436, 0
      %v4517 = vsel %vm1437, %v4485, 0
      %v4520 = vsel %vm1437, %v4500, 0
      %v4523 = vsel %vm1459, %v4191, 0
      %4525 = vmatprep.subr.bf16.mxu0 0
      %4526 = vmatpush1.bf16.msra.mxu0 %v4523
      %4527 = vmatprep.subr.bf16.mxu0 0
      %4528 = vmatpush1.bf16.msra.mxu0 0
      %4529 = vmatprep.subr.bf16.mxu0 0
      %4530 = vmatpush1.bf16.msra.mxu0 0
      %4531 = vmatprep.subr.bf16.mxu0 0
      %4532 = vmatpush1.bf16.msra.mxu0 0
      %4533 = vmatprep.subr.bf16.mxu0 0
      %4534 = vmatpush1.bf16.msra.mxu0 0
      %4535 = vmatprep.subr.bf16.mxu0 0
      %4536 = vmatpush1.bf16.msra.mxu0 0
      %4537 = vmatprep.subr.bf16.mxu0 0
      %4538 = vmatpush1.bf16.msra.mxu0 0
      %4539 = vmatprep.subr.bf16.mxu0 0
      %4540 = vmatpush1.bf16.msra.mxu0 0
      %4541 = vmatprep.subr.bf16.mxu0 0
      %4542 = vmatpush1.bf16.msra.mxu0 0
      %4543 = vmatprep.subr.bf16.mxu0 0
      %4544 = vmatpush1.bf16.msra.mxu0 0
      %4545 = vmatprep.subr.bf16.mxu0 0
      %4546 = vmatpush1.bf16.msra.mxu0 0
      %4547 = vmatprep.subr.bf16.mxu0 0
      %4548 = vmatpush1.bf16.msra.mxu0 0
      %4549 = vmatprep.subr.bf16.mxu0 0
      %4550 = vmatpush1.bf16.msra.mxu0 0
      %4551 = vmatprep.subr.bf16.mxu0 0
      %4552 = vmatpush1.bf16.msra.mxu0 0
      %4553 = vmatprep.subr.bf16.mxu0 0
      %4554 = vmatpush1.bf16.msra.mxu0 0
      %4555 = vmatprep.subr.bf16.mxu0 0
      %4556 = vmatpush1.bf16.msra.mxu0 0
      %4557 = vmatprep.mubr.bf16.mxu0 0
      %4558 = vmatmul.mubr.bf16.gmra.mrb[0].mxu0 %v4502
      %v4559 = vpop.f32.mrb[0].mxu0
      %v4560 = vadd.f32 0.0, %v4559
      %v4561 = vpop.f32.mrb[0].mxu0
      %v4562 = vpop.f32.mrb[0].mxu0
      %v4563 = vadd.f32 0.0, %v4562
      %v4564 = vpop.f32.mrb[0].mxu0
      %4565 = vmatprep.mubr.bf16.mxu0 0
      %4566 = vmatmul.mubr.bf16.gmra.mrb[0].mxu0 %v4505
      %v4567 = vpop.f32.mrb[0].mxu0
      %v4568 = vadd.f32 0.0, %v4567
      %v4569 = vpop.f32.mrb[0].mxu0
      %v4570 = vpop.f32.mrb[0].mxu0
      %v4571 = vadd.f32 0.0, %v4570
      %v4572 = vpop.f32.mrb[0].mxu0
      %4573 = vmatprep.mubr.bf16.mxu0 0
      %4574 = vmatmul.mubr.bf16.gmra.mrb[0].mxu0 %v4508
      %v4575 = vpop.f32.mrb[0].mxu0
      %v4576 = vadd.f32 0.0, %v4575
      %v4577 = vpop.f32.mrb[0].mxu0
      %v4578 = vpop.f32.mrb[0].mxu0
      %v4579 = vadd.f32 0.0, %v4578
      %v4580 = vpop.f32.mrb[0].mxu0
      %4581 = vmatprep.mubr.bf16.mxu0 0
      %4582 = vmatmul.mubr.bf16.gmra.mrb[0].mxu0 %v4511
      %v4583 = vpop.f32.mrb[0].mxu0
      %v4584 = vadd.f32 0.0, %v4583
      %v4585 = vpop.f32.mrb[0].mxu0
      %v4586 = vpop.f32.mrb[0].mxu0
      %v4587 = vadd.f32 0.0, %v4586
      %v4588 = vpop.f32.mrb[0].mxu0
      %4589 = vmatprep.mubr.bf16.mxu0 0
      %4590 = vmatmul.mubr.bf16.gmra.mrb[0].mxu0 %v4514
      %v4591 = vpop.f32.mrb[0].mxu0
      %v4592 = vadd.f32 0.0, %v4591
      %v4593 = vpop.f32.mrb[0].mxu0
      %v4594 = vpop.f32.mrb[0].mxu0
      %v4595 = vadd.f32 0.0, %v4594
      %v4596 = vpop.f32.mrb[0].mxu0
      %4597 = vmatprep.mubr.bf16.mxu0 0
      %4598 = vmatmul.mubr.bf16.gmra.mrb[0].mxu0 %v4517
      %v4599 = vpop.f32.mrb[0].mxu0
      %v4600 = vadd.f32 0.0, %v4599
      %v4601 = vpop.f32.mrb[0].mxu0
      %v4602 = vpop.f32.mrb[0].mxu0
      %v4603 = vadd.f32 0.0, %v4602
      %v4604 = vpop.f32.mrb[0].mxu0
      %4605 = vmatprep.mubr.bf16.mxu0 0
      %4606 = vmatmul.mubr.bf16.gmra.mrb[0].mxu0 %v4520
      %v4607 = vpop.f32.mrb[0].mxu0
      %v4608 = vadd.f32 0.0, %v4607
      %v4609 = vpop.f32.mrb[0].mxu0
      %v4610 = vpop.f32.mrb[0].mxu0
      %v4611 = vpop.f32.mrb[0].mxu0
      %4612 = vdwg.mxu0
      %v4613 = vadd.f32 %v4178, %v4560
      %v4614 = vadd.f32 %v4179, %v4563
      %v4615 = vadd.f32 %v4180, %v4568
      %v4616 = vadd.f32 %v4181, %v4571
      %v4617 = vadd.f32 %v4182, %v4576
      %v4618 = vadd.f32 %v4183, %v4579
      %v4619 = vadd.f32 %v4184, %v4584
      %v4620 = vadd.f32 %v4185, %v4587
      %v4621 = vadd.f32 %v4186, %v4592
      %v4622 = vadd.f32 %v4187, %v4595
      %v4623 = vadd.f32 %v4188, %v4600
      %v4624 = vadd.f32 %v4189, %v4603
      %v4625 = vadd.f32 %v4190, %v4608
      %s4626 = sadd.s32 %s197, 2
      %s4627 = smul.u32 %s4626, 2
      %s4628 = smul.addr %s4627, 4
      %s4629 = scalar_lea.vmem %s184, %s4628
      %v4630 = vld [vmem:[%s4629] sm:$0xf]
      %v4631 = vld [vmem:[%s4629 + $0x4] sm:$0x3]
      %v4632 = vld [vmem:[%s4629 + $0x8] sm:$0xf]
      %v4633 = vld [vmem:[%s4629 + $0xc] sm:$0x3]
      %v4634 = vld [vmem:[%s4629 + $0x10] sm:$0xf]
      %v4635 = vld [vmem:[%s4629 + $0x14] sm:$0x3]
      %v4636 = vld [vmem:[%s4629 + $0x18] sm:$0xf]
      %v4637 = vld [vmem:[%s4629 + $0x1c] sm:$0x3]
      %v4638 = vld [vmem:[%s4629 + $0x20] sm:$0xf]
      %v4639 = vld [vmem:[%s4629 + $0x24] sm:$0x3]
      %v4640 = vld [vmem:[%s4629 + $0x28] sm:$0xf]
      %v4641 = vld [vmem:[%s4629 + $0x2c] sm:$0x3]
      %v4642 = vld [vmem:[%s4629 + $0x30] sm:$0xf]
      %v4643 = vld [vmem:[%s4629 + $0x34] sm:$0x3]
      %v4644 = vld [vmem:[%s4629 + $0x38] sm:$0xf]
      %v4645 = vld [vmem:[%s4629 + $0x3c] sm:$0x3]
      %v4646 = vld [vmem:[%s4629 + $0x40] sm:$0xf]
      %v4647 = vld [vmem:[%s4629 + $0x44] sm:$0x3]
      %v4648 = vld [vmem:[%s4629 + $0x48] sm:$0xf]
      %v4649 = vld [vmem:[%s4629 + $0x4c] sm:$0x3]
      %v4671 = vunpack.c.l.s4 1966171168
      %v4672 = vunpack.c.0.s8 %v4671
      %v4673 = vlaneseq
      %v4674 = vshrl.u32 %v4673, 7
      %v4675 = vsub.s32 %v4672, %v4674
      %v4676 = vrot.slane %v4630, %v4675
      %v4677 = vcombine.high %v4676, %v4676
      %v4679 = vunpack.c.l.s4 1966171168
      %v4680 = vunpack.c.0.s8 %v4679
      %v4681 = vlaneseq
      %v4682 = vshrl.u32 %v4681, 7
      %v4683 = vsub.s32 %v4680, %v4682
      %v4684 = vrot.slane %v4676, %v4683
      %v4686 = vunpack.c.l.s4 1966171168
      %v4687 = vunpack.c.0.s8 %v4686
      %v4688 = vlaneseq
      %v4689 = vshrl.u32 %v4688, 7
      %v4690 = vsub.s32 %v4687, %v4689
      %v4691 = vrot.slane %v4677, %v4690
      %v4692 = vcombine.high %v4684, %v4684
      %v4693 = vcombine.high %v4691, %v4691
      %v4695 = vunpack.c.l.s4 1966171168
      %v4696 = vunpack.c.0.s8 %v4695
      %v4697 = vlaneseq
      %v4698 = vshrl.u32 %v4697, 7
      %v4699 = vsub.s32 %v4696, %v4698
      %v4700 = vrot.slane %v4631, %v4699
      %v4702 = vunpack.c.l.s4 1966171168
      %v4703 = vunpack.c.0.s8 %v4702
      %v4704 = vlaneseq
      %v4705 = vshrl.u32 %v4704, 7
      %v4706 = vsub.s32 %v4703, %v4705
      %v4707 = vrot.slane %v4700, %v4706
      %v4709 = vunpack.c.l.s4 1966171168
      %v4710 = vunpack.c.0.s8 %v4709
      %v4711 = vlaneseq
      %v4712 = vshrl.u32 %v4711, 7
      %v4713 = vsub.s32 %v4710, %v4712
      %v4714 = vrot.slane %v4632, %v4713
      %v4715 = vcombine.high %v4714, %v4714
      %v4717 = vunpack.c.l.s4 1966171168
      %v4718 = vunpack.c.0.s8 %v4717
      %v4719 = vlaneseq
      %v4720 = vshrl.u32 %v4719, 7
      %v4721 = vsub.s32 %v4718, %v4720
      %v4722 = vrot.slane %v4714, %v4721
      %v4724 = vunpack.c.l.s4 1966171168
      %v4725 = vunpack.c.0.s8 %v4724
      %v4726 = vlaneseq
      %v4727 = vshrl.u32 %v4726, 7
      %v4728 = vsub.s32 %v4725, %v4727
      %v4729 = vrot.slane %v4715, %v4728
      %v4730 = vcombine.high %v4722, %v4722
      %v4731 = vcombine.high %v4729, %v4729
      %v4733 = vunpack.c.l.s4 1966171168
      %v4734 = vunpack.c.0.s8 %v4733
      %v4735 = vlaneseq
      %v4736 = vshrl.u32 %v4735, 7
      %v4737 = vsub.s32 %v4734, %v4736
      %v4738 = vrot.slane %v4633, %v4737
      %v4740 = vunpack.c.l.s4 1966171168
      %v4741 = vunpack.c.0.s8 %v4740
      %v4742 = vlaneseq
      %v4743 = vshrl.u32 %v4742, 7
      %v4744 = vsub.s32 %v4741, %v4743
      %v4745 = vrot.slane %v4738, %v4744
      %v4747 = vunpack.c.l.s4 1966171168
      %v4748 = vunpack.c.0.s8 %v4747
      %v4749 = vlaneseq
      %v4750 = vshrl.u32 %v4749, 7
      %v4751 = vsub.s32 %v4748, %v4750
      %v4752 = vrot.slane %v4634, %v4751
      %v4753 = vcombine.high %v4752, %v4752
      %v4755 = vunpack.c.l.s4 1966171168
      %v4756 = vunpack.c.0.s8 %v4755
      %v4757 = vlaneseq
      %v4758 = vshrl.u32 %v4757, 7
      %v4759 = vsub.s32 %v4756, %v4758
      %v4760 = vrot.slane %v4752, %v4759
      %v4762 = vunpack.c.l.s4 1966171168
      %v4763 = vunpack.c.0.s8 %v4762
      %v4764 = vlaneseq
      %v4765 = vshrl.u32 %v4764, 7
      %v4766 = vsub.s32 %v4763, %v4765
      %v4767 = vrot.slane %v4753, %v4766
      %v4768 = vcombine.high %v4760, %v4760
      %v4769 = vcombine.high %v4767, %v4767
      %v4771 = vunpack.c.l.s4 1966171168
      %v4772 = vunpack.c.0.s8 %v4771
      %v4773 = vlaneseq
      %v4774 = vshrl.u32 %v4773, 7
      %v4775 = vsub.s32 %v4772, %v4774
      %v4776 = vrot.slane %v4635, %v4775
      %v4778 = vunpack.c.l.s4 1966171168
      %v4779 = vunpack.c.0.s8 %v4778
      %v4780 = vlaneseq
      %v4781 = vshrl.u32 %v4780, 7
      %v4782 = vsub.s32 %v4779, %v4781
      %v4783 = vrot.slane %v4776, %v4782
      %v4785 = vunpack.c.l.s4 1966171168
      %v4786 = vunpack.c.0.s8 %v4785
      %v4787 = vlaneseq
      %v4788 = vshrl.u32 %v4787, 7
      %v4789 = vsub.s32 %v4786, %v4788
      %v4790 = vrot.slane %v4636, %v4789
      %v4791 = vcombine.high %v4790, %v4790
      %v4793 = vunpack.c.l.s4 1966171168
      %v4794 = vunpack.c.0.s8 %v4793
      %v4795 = vlaneseq
      %v4796 = vshrl.u32 %v4795, 7
      %v4797 = vsub.s32 %v4794, %v4796
      %v4798 = vrot.slane %v4790, %v4797
      %v4800 = vunpack.c.l.s4 1966171168
      %v4801 = vunpack.c.0.s8 %v4800
      %v4802 = vlaneseq
      %v4803 = vshrl.u32 %v4802, 7
      %v4804 = vsub.s32 %v4801, %v4803
      %v4805 = vrot.slane %v4791, %v4804
      %v4806 = vcombine.high %v4798, %v4798
      %v4807 = vcombine.high %v4805, %v4805
      %v4809 = vunpack.c.l.s4 1966171168
      %v4810 = vunpack.c.0.s8 %v4809
      %v4811 = vlaneseq
      %v4812 = vshrl.u32 %v4811, 7
      %v4813 = vsub.s32 %v4810, %v4812
      %v4814 = vrot.slane %v4637, %v4813
      %v4816 = vunpack.c.l.s4 1966171168
      %v4817 = vunpack.c.0.s8 %v4816
      %v4818 = vlaneseq
      %v4819 = vshrl.u32 %v4818, 7
      %v4820 = vsub.s32 %v4817, %v4819
      %v4821 = vrot.slane %v4814, %v4820
      %v4823 = vunpack.c.l.s4 1966171168
      %v4824 = vunpack.c.0.s8 %v4823
      %v4825 = vlaneseq
      %v4826 = vshrl.u32 %v4825, 7
      %v4827 = vsub.s32 %v4824, %v4826
      %v4828 = vrot.slane %v4638, %v4827
      %v4829 = vcombine.high %v4828, %v4828
      %v4831 = vunpack.c.l.s4 1966171168
      %v4832 = vunpack.c.0.s8 %v4831
      %v4833 = vlaneseq
      %v4834 = vshrl.u32 %v4833, 7
      %v4835 = vsub.s32 %v4832, %v4834
      %v4836 = vrot.slane %v4828, %v4835
      %v4838 = vunpack.c.l.s4 1966171168
      %v4839 = vunpack.c.0.s8 %v4838
      %v4840 = vlaneseq
      %v4841 = vshrl.u32 %v4840, 7
      %v4842 = vsub.s32 %v4839, %v4841
      %v4843 = vrot.slane %v4829, %v4842
      %v4844 = vcombine.high %v4836, %v4836
      %v4845 = vcombine.high %v4843, %v4843
      %v4847 = vunpack.c.l.s4 1966171168
      %v4848 = vunpack.c.0.s8 %v4847
      %v4849 = vlaneseq
      %v4850 = vshrl.u32 %v4849, 7
      %v4851 = vsub.s32 %v4848, %v4850
      %v4852 = vrot.slane %v4639, %v4851
      %v4854 = vunpack.c.l.s4 1966171168
      %v4855 = vunpack.c.0.s8 %v4854
      %v4856 = vlaneseq
      %v4857 = vshrl.u32 %v4856, 7
      %v4858 = vsub.s32 %v4855, %v4857
      %v4859 = vrot.slane %v4852, %v4858
      %v4861 = vunpack.c.l.s4 1966171168
      %v4862 = vunpack.c.0.s8 %v4861
      %v4863 = vlaneseq
      %v4864 = vshrl.u32 %v4863, 7
      %v4865 = vsub.s32 %v4862, %v4864
      %v4866 = vrot.slane %v4640, %v4865
      %v4867 = vcombine.high %v4866, %v4866
      %v4869 = vunpack.c.l.s4 1966171168
      %v4870 = vunpack.c.0.s8 %v4869
      %v4871 = vlaneseq
      %v4872 = vshrl.u32 %v4871, 7
      %v4873 = vsub.s32 %v4870, %v4872
      %v4874 = vrot.slane %v4866, %v4873
      %v4876 = vunpack.c.l.s4 1966171168
      %v4877 = vunpack.c.0.s8 %v4876
      %v4878 = vlaneseq
      %v4879 = vshrl.u32 %v4878, 7
      %v4880 = vsub.s32 %v4877, %v4879
      %v4881 = vrot.slane %v4867, %v4880
      %v4882 = vcombine.high %v4874, %v4874
      %v4883 = vcombine.high %v4881, %v4881
      %v4885 = vunpack.c.l.s4 1966171168
      %v4886 = vunpack.c.0.s8 %v4885
      %v4887 = vlaneseq
      %v4888 = vshrl.u32 %v4887, 7
      %v4889 = vsub.s32 %v4886, %v4888
      %v4890 = vrot.slane %v4641, %v4889
      %v4892 = vunpack.c.l.s4 1966171168
      %v4893 = vunpack.c.0.s8 %v4892
      %v4894 = vlaneseq
      %v4895 = vshrl.u32 %v4894, 7
      %v4896 = vsub.s32 %v4893, %v4895
      %v4897 = vrot.slane %v4890, %v4896
      %v4899 = vunpack.c.l.s4 1966171168
      %v4900 = vunpack.c.0.s8 %v4899
      %v4901 = vlaneseq
      %v4902 = vshrl.u32 %v4901, 7
      %v4903 = vsub.s32 %v4900, %v4902
      %v4904 = vrot.slane %v4642, %v4903
      %v4905 = vcombine.high %v4904, %v4904
      %v4907 = vunpack.c.l.s4 1966171168
      %v4908 = vunpack.c.0.s8 %v4907
      %v4909 = vlaneseq
      %v4910 = vshrl.u32 %v4909, 7
      %v4911 = vsub.s32 %v4908, %v4910
      %v4912 = vrot.slane %v4904, %v4911
      %v4914 = vunpack.c.l.s4 1966171168
      %v4915 = vunpack.c.0.s8 %v4914
      %v4916 = vlaneseq
      %v4917 = vshrl.u32 %v4916, 7
      %v4918 = vsub.s32 %v4915, %v4917
      %v4919 = vrot.slane %v4905, %v4918
      %v4920 = vcombine.high %v4912, %v4912
      %v4921 = vcombine.high %v4919, %v4919
      %v4923 = vunpack.c.l.s4 1966171168
      %v4924 = vunpack.c.0.s8 %v4923
      %v4925 = vlaneseq
      %v4926 = vshrl.u32 %v4925, 7
      %v4927 = vsub.s32 %v4924, %v4926
      %v4928 = vrot.slane %v4643, %v4927
      %v4930 = vunpack.c.l.s4 1966171168
      %v4931 = vunpack.c.0.s8 %v4930
      %v4932 = vlaneseq
      %v4933 = vshrl.u32 %v4932, 7
      %v4934 = vsub.s32 %v4931, %v4933
      %v4935 = vrot.slane %v4928, %v4934
      %v4937 = vunpack.c.l.s4 1966171168
      %v4938 = vunpack.c.0.s8 %v4937
      %v4939 = vlaneseq
      %v4940 = vshrl.u32 %v4939, 7
      %v4941 = vsub.s32 %v4938, %v4940
      %v4942 = vrot.slane %v4644, %v4941
      %v4943 = vcombine.high %v4942, %v4942
      %v4945 = vunpack.c.l.s4 1966171168
      %v4946 = vunpack.c.0.s8 %v4945
      %v4947 = vlaneseq
      %v4948 = vshrl.u32 %v4947, 7
      %v4949 = vsub.s32 %v4946, %v4948
      %v4950 = vrot.slane %v4942, %v4949
      %v4952 = vunpack.c.l.s4 1966171168
      %v4953 = vunpack.c.0.s8 %v4952
      %v4954 = vlaneseq
      %v4955 = vshrl.u32 %v4954, 7
      %v4956 = vsub.s32 %v4953, %v4955
      %v4957 = vrot.slane %v4943, %v4956
      %v4958 = vcombine.high %v4950, %v4950
      %v4959 = vcombine.high %v4957, %v4957
      %v4961 = vunpack.c.l.s4 1966171168
      %v4962 = vunpack.c.0.s8 %v4961
      %v4963 = vlaneseq
      %v4964 = vshrl.u32 %v4963, 7
      %v4965 = vsub.s32 %v4962, %v4964
      %v4966 = vrot.slane %v4645, %v4965
      %v4968 = vunpack.c.l.s4 1966171168
      %v4969 = vunpack.c.0.s8 %v4968
      %v4970 = vlaneseq
      %v4971 = vshrl.u32 %v4970, 7
      %v4972 = vsub.s32 %v4969, %v4971
      %v4973 = vrot.slane %v4966, %v4972
      %v4975 = vunpack.c.l.s4 1966171168
      %v4976 = vunpack.c.0.s8 %v4975
      %v4977 = vlaneseq
      %v4978 = vshrl.u32 %v4977, 7
      %v4979 = vsub.s32 %v4976, %v4978
      %v4980 = vrot.slane %v4646, %v4979
      %v4981 = vcombine.high %v4980, %v4980
      %v4983 = vunpack.c.l.s4 1966171168
      %v4984 = vunpack.c.0.s8 %v4983
      %v4985 = vlaneseq
      %v4986 = vshrl.u32 %v4985, 7
      %v4987 = vsub.s32 %v4984, %v4986
      %v4988 = vrot.slane %v4980, %v4987
      %v4990 = vunpack.c.l.s4 1966171168
      %v4991 = vunpack.c.0.s8 %v4990
      %v4992 = vlaneseq
      %v4993 = vshrl.u32 %v4992, 7
      %v4994 = vsub.s32 %v4991, %v4993
      %v4995 = vrot.slane %v4981, %v4994
      %v4996 = vcombine.high %v4988, %v4988
      %v4997 = vcombine.high %v4995, %v4995
      %v4999 = vunpack.c.l.s4 1966171168
      %v5000 = vunpack.c.0.s8 %v4999
      %v5001 = vlaneseq
      %v5002 = vshrl.u32 %v5001, 7
      %v5003 = vsub.s32 %v5000, %v5002
      %v5004 = vrot.slane %v4647, %v5003
      %v5006 = vunpack.c.l.s4 1966171168
      %v5007 = vunpack.c.0.s8 %v5006
      %v5008 = vlaneseq
      %v5009 = vshrl.u32 %v5008, 7
      %v5010 = vsub.s32 %v5007, %v5009
      %v5011 = vrot.slane %v5004, %v5010
      %v5013 = vunpack.c.l.s4 1966171168
      %v5014 = vunpack.c.0.s8 %v5013
      %v5015 = vlaneseq
      %v5016 = vshrl.u32 %v5015, 7
      %v5017 = vsub.s32 %v5014, %v5016
      %v5018 = vrot.slane %v4648, %v5017
      %v5019 = vcombine.high %v5018, %v5018
      %v5021 = vunpack.c.l.s4 1966171168
      %v5022 = vunpack.c.0.s8 %v5021
      %v5023 = vlaneseq
      %v5024 = vshrl.u32 %v5023, 7
      %v5025 = vsub.s32 %v5022, %v5024
      %v5026 = vrot.slane %v5018, %v5025
      %v5028 = vunpack.c.l.s4 1966171168
      %v5029 = vunpack.c.0.s8 %v5028
      %v5030 = vlaneseq
      %v5031 = vshrl.u32 %v5030, 7
      %v5032 = vsub.s32 %v5029, %v5031
      %v5033 = vrot.slane %v5019, %v5032
      %v5034 = vcombine.high %v5026, %v5026
      %v5035 = vcombine.high %v5033, %v5033
      %v5037 = vunpack.c.l.s4 1966171168
      %v5038 = vunpack.c.0.s8 %v5037
      %v5039 = vlaneseq
      %v5040 = vshrl.u32 %v5039, 7
      %v5041 = vsub.s32 %v5038, %v5040
      %v5042 = vrot.slane %v4649, %v5041
      %v5044 = vunpack.c.l.s4 1966171168
      %v5045 = vunpack.c.0.s8 %v5044
      %v5046 = vlaneseq
      %v5047 = vshrl.u32 %v5046, 7
      %v5048 = vsub.s32 %v5045, %v5047
      %v5049 = vrot.slane %v5042, %v5048
      %v5050 = vld [vmem:[%s1 + $0x18] sm:$0xf]
      %v5051 = vcombine.low %v4684, %v4691
      %v5052 = vcombine.low %v4692, %v4693
      %v5053 = vcombine.low %v4707, %v4722
      %v5054 = vcombine.low %v4729, %v4730
      %v5056 = vunpack.c.l.s4 1966171168
      %v5057 = vunpack.c.0.s8 %v5056
      %v5058 = vlaneseq
      %v5059 = vshrl.u32 %v5058, 7
      %v5060 = vsub.s32 %v5057, %v5059
      %v5061 = vrot.slane %v5051, %v5060
      %v5063 = vunpack.c.l.s4 1966171168
      %v5064 = vunpack.c.0.s8 %v5063
      %v5065 = vlaneseq
      %v5066 = vshrl.u32 %v5065, 7
      %v5067 = vsub.s32 %v5064, %v5066
      %v5068 = vrot.slane %v5052, %v5067
      %v5070 = vunpack.c.l.s4 1966171168
      %v5071 = vunpack.c.0.s8 %v5070
      %v5072 = vlaneseq
      %v5073 = vshrl.u32 %v5072, 7
      %v5074 = vsub.s32 %v5071, %v5073
      %v5075 = vrot.slane %v5053, %v5074
      %v5077 = vunpack.c.l.s4 1966171168
      %v5078 = vunpack.c.0.s8 %v5077
      %v5079 = vlaneseq
      %v5080 = vshrl.u32 %v5079, 7
      %v5081 = vsub.s32 %v5078, %v5080
      %v5082 = vrot.slane %v5054, %v5081
      %v5083 = vcombine.low %v5061, %v5068
      %v5084 = vcombine.low %v5075, %v5082
      %v5086 = vunpack.c.l.s4 1966171168
      %v5087 = vunpack.c.0.s8 %v5086
      %v5088 = vlaneseq
      %v5089 = vshrl.u32 %v5088, 7
      %v5090 = vsub.s32 %v5087, %v5089
      %v5091 = vrot.slane %v5083, %v5090
      %v5093 = vunpack.c.l.s4 1966171168
      %v5094 = vunpack.c.0.s8 %v5093
      %v5095 = vlaneseq
      %v5096 = vshrl.u32 %v5095, 7
      %v5097 = vsub.s32 %v5094, %v5096
      %v5098 = vrot.slane %v5084, %v5097
      %v5099 = vcombine.low %v5091, %v5098
      %v5100 = vcombine.low %v4731, %v4745
      %v5101 = vcombine.low %v4760, %v4767
      %v5102 = vcombine.low %v4768, %v4769
      %v5103 = vcombine.low %v4783, %v4798
      %v5105 = vunpack.c.l.s4 1966171168
      %v5106 = vunpack.c.0.s8 %v5105
      %v5107 = vlaneseq
      %v5108 = vshrl.u32 %v5107, 7
      %v5109 = vsub.s32 %v5106, %v5108
      %v5110 = vrot.slane %v5100, %v5109
      %v5112 = vunpack.c.l.s4 1966171168
      %v5113 = vunpack.c.0.s8 %v5112
      %v5114 = vlaneseq
      %v5115 = vshrl.u32 %v5114, 7
      %v5116 = vsub.s32 %v5113, %v5115
      %v5117 = vrot.slane %v5101, %v5116
      %v5119 = vunpack.c.l.s4 1966171168
      %v5120 = vunpack.c.0.s8 %v5119
      %v5121 = vlaneseq
      %v5122 = vshrl.u32 %v5121, 7
      %v5123 = vsub.s32 %v5120, %v5122
      %v5124 = vrot.slane %v5102, %v5123
      %v5126 = vunpack.c.l.s4 1966171168
      %v5127 = vunpack.c.0.s8 %v5126
      %v5128 = vlaneseq
      %v5129 = vshrl.u32 %v5128, 7
      %v5130 = vsub.s32 %v5127, %v5129
      %v5131 = vrot.slane %v5103, %v5130
      %v5132 = vcombine.low %v5110, %v5117
      %v5133 = vcombine.low %v5124, %v5131
      %v5135 = vunpack.c.l.s4 1966171168
      %v5136 = vunpack.c.0.s8 %v5135
      %v5137 = vlaneseq
      %v5138 = vshrl.u32 %v5137, 7
      %v5139 = vsub.s32 %v5136, %v5138
      %v5140 = vrot.slane %v5132, %v5139
      %v5142 = vunpack.c.l.s4 1966171168
      %v5143 = vunpack.c.0.s8 %v5142
      %v5144 = vlaneseq
      %v5145 = vshrl.u32 %v5144, 7
      %v5146 = vsub.s32 %v5143, %v5145
      %v5147 = vrot.slane %v5133, %v5146
      %v5148 = vcombine.low %v5140, %v5147
      %v5149 = vcombine.low %v4805, %v4806
      %v5150 = vcombine.low %v4807, %v4821
      %v5151 = vcombine.low %v4836, %v4843
      %v5152 = vcombine.low %v4844, %v4845
      %v5154 = vunpack.c.l.s4 1966171168
      %v5155 = vunpack.c.0.s8 %v5154
      %v5156 = vlaneseq
      %v5157 = vshrl.u32 %v5156, 7
      %v5158 = vsub.s32 %v5155, %v5157
      %v5159 = vrot.slane %v5149, %v5158
      %v5161 = vunpack.c.l.s4 1966171168
      %v5162 = vunpack.c.0.s8 %v5161
      %v5163 = vlaneseq
      %v5164 = vshrl.u32 %v5163, 7
      %v5165 = vsub.s32 %v5162, %v5164
      %v5166 = vrot.slane %v5150, %v5165
      %v5168 = vunpack.c.l.s4 1966171168
      %v5169 = vunpack.c.0.s8 %v5168
      %v5170 = vlaneseq
      %v5171 = vshrl.u32 %v5170, 7
      %v5172 = vsub.s32 %v5169, %v5171
      %v5173 = vrot.slane %v5151, %v5172
      %v5175 = vunpack.c.l.s4 1966171168
      %v5176 = vunpack.c.0.s8 %v5175
      %v5177 = vlaneseq
      %v5178 = vshrl.u32 %v5177, 7
      %v5179 = vsub.s32 %v5176, %v5178
      %v5180 = vrot.slane %v5152, %v5179
      %v5181 = vcombine.low %v5159, %v5166
      %v5182 = vcombine.low %v5173, %v5180
      %v5184 = vunpack.c.l.s4 1966171168
      %v5185 = vunpack.c.0.s8 %v5184
      %v5186 = vlaneseq
      %v5187 = vshrl.u32 %v5186, 7
      %v5188 = vsub.s32 %v5185, %v5187
      %v5189 = vrot.slane %v5181, %v5188
      %v5191 = vunpack.c.l.s4 1966171168
      %v5192 = vunpack.c.0.s8 %v5191
      %v5193 = vlaneseq
      %v5194 = vshrl.u32 %v5193, 7
      %v5195 = vsub.s32 %v5192, %v5194
      %v5196 = vrot.slane %v5182, %v5195
      %v5197 = vcombine.low %v5189, %v5196
      %v5198 = vcombine.low %v4859, %v4874
      %v5199 = vcombine.low %v4881, %v4882
      %v5200 = vcombine.low %v4883, %v4897
      %v5201 = vcombine.low %v4912, %v4919
      %v5203 = vunpack.c.l.s4 1966171168
      %v5204 = vunpack.c.0.s8 %v5203
      %v5205 = vlaneseq
      %v5206 = vshrl.u32 %v5205, 7
      %v5207 = vsub.s32 %v5204, %v5206
      %v5208 = vrot.slane %v5198, %v5207
      %v5210 = vunpack.c.l.s4 1966171168
      %v5211 = vunpack.c.0.s8 %v5210
      %v5212 = vlaneseq
      %v5213 = vshrl.u32 %v5212, 7
      %v5214 = vsub.s32 %v5211, %v5213
      %v5215 = vrot.slane %v5199, %v5214
      %v5217 = vunpack.c.l.s4 1966171168
      %v5218 = vunpack.c.0.s8 %v5217
      %v5219 = vlaneseq
      %v5220 = vshrl.u32 %v5219, 7
      %v5221 = vsub.s32 %v5218, %v5220
      %v5222 = vrot.slane %v5200, %v5221
      %v5224 = vunpack.c.l.s4 1966171168
      %v5225 = vunpack.c.0.s8 %v5224
      %v5226 = vlaneseq
      %v5227 = vshrl.u32 %v5226, 7
      %v5228 = vsub.s32 %v5225, %v5227
      %v5229 = vrot.slane %v5201, %v5228
      %v5230 = vcombine.low %v5208, %v5215
      %v5231 = vcombine.low %v5222, %v5229
      %v5233 = vunpack.c.l.s4 1966171168
      %v5234 = vunpack.c.0.s8 %v5233
      %v5235 = vlaneseq
      %v5236 = vshrl.u32 %v5235, 7
      %v5237 = vsub.s32 %v5234, %v5236
      %v5238 = vrot.slane %v5230, %v5237
      %v5240 = vunpack.c.l.s4 1966171168
      %v5241 = vunpack.c.0.s8 %v5240
      %v5242 = vlaneseq
      %v5243 = vshrl.u32 %v5242, 7
      %v5244 = vsub.s32 %v5241, %v5243
      %v5245 = vrot.slane %v5231, %v5244
      %v5246 = vcombine.low %v5238, %v5245
      %v5247 = vcombine.low %v4920, %v4921
      %v5248 = vcombine.low %v4935, %v4950
      %v5249 = vcombine.low %v4957, %v4958
      %v5250 = vcombine.low %v4959, %v4973
      %v5252 = vunpack.c.l.s4 1966171168
      %v5253 = vunpack.c.0.s8 %v5252
      %v5254 = vlaneseq
      %v5255 = vshrl.u32 %v5254, 7
      %v5256 = vsub.s32 %v5253, %v5255
      %v5257 = vrot.slane %v5247, %v5256
      %v5259 = vunpack.c.l.s4 1966171168
      %v5260 = vunpack.c.0.s8 %v5259
      %v5261 = vlaneseq
      %v5262 = vshrl.u32 %v5261, 7
      %v5263 = vsub.s32 %v5260, %v5262
      %v5264 = vrot.slane %v5248, %v5263
      %v5266 = vunpack.c.l.s4 1966171168
      %v5267 = vunpack.c.0.s8 %v5266
      %v5268 = vlaneseq
      %v5269 = vshrl.u32 %v5268, 7
      %v5270 = vsub.s32 %v5267, %v5269
      %v5271 = vrot.slane %v5249, %v5270
      %v5273 = vunpack.c.l.s4 1966171168
      %v5274 = vunpack.c.0.s8 %v5273
      %v5275 = vlaneseq
      %v5276 = vshrl.u32 %v5275, 7
      %v5277 = vsub.s32 %v5274, %v5276
      %v5278 = vrot.slane %v5250, %v5277
      %v5279 = vcombine.low %v5257, %v5264
      %v5280 = vcombine.low %v5271, %v5278
      %v5282 = vunpack.c.l.s4 1966171168
      %v5283 = vunpack.c.0.s8 %v5282
      %v5284 = vlaneseq
      %v5285 = vshrl.u32 %v5284, 7
      %v5286 = vsub.s32 %v5283, %v5285
      %v5287 = vrot.slane %v5279, %v5286
      %v5289 = vunpack.c.l.s4 1966171168
      %v5290 = vunpack.c.0.s8 %v5289
      %v5291 = vlaneseq
      %v5292 = vshrl.u32 %v5291, 7
      %v5293 = vsub.s32 %v5290, %v5292
      %v5294 = vrot.slane %v5280, %v5293
      %v5295 = vcombine.low %v5287, %v5294
      %v5296 = vcombine.low %v4988, %v4995
      %v5297 = vcombine.low %v4996, %v4997
      %v5298 = vcombine.low %v5011, %v5026
      %v5299 = vcombine.low %v5033, %v5034
      %v5301 = vunpack.c.l.s4 1966171168
      %v5302 = vunpack.c.0.s8 %v5301
      %v5303 = vlaneseq
      %v5304 = vshrl.u32 %v5303, 7
      %v5305 = vsub.s32 %v5302, %v5304
      %v5306 = vrot.slane %v5296, %v5305
      %v5308 = vunpack.c.l.s4 1966171168
      %v5309 = vunpack.c.0.s8 %v5308
      %v5310 = vlaneseq
      %v5311 = vshrl.u32 %v5310, 7
      %v5312 = vsub.s32 %v5309, %v5311
      %v5313 = vrot.slane %v5297, %v5312
      %v5315 = vunpack.c.l.s4 1966171168
      %v5316 = vunpack.c.0.s8 %v5315
      %v5317 = vlaneseq
      %v5318 = vshrl.u32 %v5317, 7
      %v5319 = vsub.s32 %v5316, %v5318
      %v5320 = vrot.slane %v5298, %v5319
      %v5322 = vunpack.c.l.s4 1966171168
      %v5323 = vunpack.c.0.s8 %v5322
      %v5324 = vlaneseq
      %v5325 = vshrl.u32 %v5324, 7
      %v5326 = vsub.s32 %v5323, %v5325
      %v5327 = vrot.slane %v5299, %v5326
      %v5328 = vcombine.low %v5306, %v5313
      %v5329 = vcombine.low %v5320, %v5327
      %v5331 = vunpack.c.l.s4 1966171168
      %v5332 = vunpack.c.0.s8 %v5331
      %v5333 = vlaneseq
      %v5334 = vshrl.u32 %v5333, 7
      %v5335 = vsub.s32 %v5332, %v5334
      %v5336 = vrot.slane %v5328, %v5335
      %v5338 = vunpack.c.l.s4 1966171168
      %v5339 = vunpack.c.0.s8 %v5338
      %v5340 = vlaneseq
      %v5341 = vshrl.u32 %v5340, 7
      %v5342 = vsub.s32 %v5339, %v5341
      %v5343 = vrot.slane %v5329, %v5342
      %v5344 = vcombine.low %v5336, %v5343
      %v5345 = vcombine.low %v5035, %v5049
      %v5347 = vunpack.c.l.s4 1966171168
      %v5348 = vunpack.c.0.s8 %v5347
      %v5349 = vlaneseq
      %v5350 = vshrl.u32 %v5349, 7
      %v5351 = vsub.s32 %v5348, %v5350
      %v5352 = vrot.slane %v5345, %v5351
      %v5354 = vunpack.c.l.s4 1966171168
      %v5355 = vunpack.c.0.s8 %v5354
      %v5356 = vlaneseq
      %v5357 = vshrl.u32 %v5356, 7
      %v5358 = vsub.s32 %v5355, %v5357
      %v5359 = vrot.slane %v5352, %v5358
      %v5361 = vsel %vm1437, %v5099, 0
      %v5364 = vsel %vm1437, %v5148, 0
      %v5367 = vsel %vm1437, %v5197, 0
      %v5370 = vsel %vm1437, %v5246, 0
      %v5373 = vsel %vm1437, %v5295, 0
      %v5376 = vsel %vm1437, %v5344, 0
      %v5379 = vsel %vm1437, %v5359, 0
      %v5382 = vsel %vm1459, %v5050, 0
      %5384 = vmatprep.subr.bf16.mxu0 0
      %5385 = vmatpush1.bf16.msra.mxu0 %v5382
      %5386 = vmatprep.subr.bf16.mxu0 0
      %5387 = vmatpush1.bf16.msra.mxu0 0
      %5388 = vmatprep.subr.bf16.mxu0 0
      %5389 = vmatpush1.bf16.msra.mxu0 0
      %5390 = vmatprep.subr.bf16.mxu0 0
      %5391 = vmatpush1.bf16.msra.mxu0 0
      %5392 = vmatprep.subr.bf16.mxu0 0
      %5393 = vmatpush1.bf16.msra.mxu0 0
      %5394 = vmatprep.subr.bf16.mxu0 0
      %5395 = vmatpush1.bf16.msra.mxu0 0
      %5396 = vmatprep.subr.bf16.mxu0 0
      %5397 = vmatpush1.bf16.msra.mxu0 0
      %5398 = vmatprep.subr.bf16.mxu0 0
      %5399 = vmatpush1.bf16.msra.mxu0 0
      %5400 = vmatprep.subr.bf16.mxu0 0
      %5401 = vmatpush1.bf16.msra.mxu0 0
      %5402 = vmatprep.subr.bf16.mxu0 0
      %5403 = vmatpush1.bf16.msra.mxu0 0
      %5404 = vmatprep.subr.bf16.mxu0 0
      %5405 = vmatpush1.bf16.msra.mxu0 0
      %5406 = vmatprep.subr.bf16.mxu0 0
      %5407 = vmatpush1.bf16.msra.mxu0 0
      %5408 = vmatprep.subr.bf16.mxu0 0
      %5409 = vmatpush1.bf16.msra.mxu0 0
      %5410 = vmatprep.subr.bf16.mxu0 0
      %5411 = vmatpush1.bf16.msra.mxu0 0
      %5412 = vmatprep.subr.bf16.mxu0 0
      %5413 = vmatpush1.bf16.msra.mxu0 0
      %5414 = vmatprep.subr.bf16.mxu0 0
      %5415 = vmatpush1.bf16.msra.mxu0 0
      %5416 = vmatprep.mubr.bf16.mxu0 0
      %5417 = vmatmul.mubr.bf16.gmra.mrb[0].mxu0 %v5361
      %v5418 = vpop.f32.mrb[0].mxu0
      %v5419 = vadd.f32 0.0, %v5418
      %v5420 = vpop.f32.mrb[0].mxu0
      %v5421 = vpop.f32.mrb[0].mxu0
      %v5422 = vadd.f32 0.0, %v5421
      %v5423 = vpop.f32.mrb[0].mxu0
      %5424 = vmatprep.mubr.bf16.mxu0 0
      %5425 = vmatmul.mubr.bf16.gmra.mrb[0].mxu0 %v5364
      %v5426 = vpop.f32.mrb[0].mxu0
      %v5427 = vadd.f32 0.0, %v5426
      %v5428 = vpop.f32.mrb[0].mxu0
      %v5429 = vpop.f32.mrb[0].mxu0
      %v5430 = vadd.f32 0.0, %v5429
      %v5431 = vpop.f32.mrb[0].mxu0
      %5432 = vmatprep.mubr.bf16.mxu0 0
      %5433 = vmatmul.mubr.bf16.gmra.mrb[0].mxu0 %v5367
      %v5434 = vpop.f32.mrb[0].mxu0
      %v5435 = vadd.f32 0.0, %v5434
      %v5436 = vpop.f32.mrb[0].mxu0
      %v5437 = vpop.f32.mrb[0].mxu0
      %v5438 = vadd.f32 0.0, %v5437
      %v5439 = vpop.f32.mrb[0].mxu0
      %5440 = vmatprep.mubr.bf16.mxu0 0
      %5441 = vmatmul.mubr.bf16.gmra.mrb[0].mxu0 %v5370
      %v5442 = vpop.f32.mrb[0].mxu0
      %v5443 = vadd.f32 0.0, %v5442
      %v5444 = vpop.f32.mrb[0].mxu0
      %v5445 = vpop.f32.mrb[0].mxu0
      %v5446 = vadd.f32 0.0, %v5445
      %v5447 = vpop.f32.mrb[0].mxu0
      %5448 = vmatprep.mubr.bf16.mxu0 0
      %5449 = vmatmul.mubr.bf16.gmra.mrb[0].mxu0 %v5373
      %v5450 = vpop.f32.mrb[0].mxu0
      %v5451 = vadd.f32 0.0, %v5450
      %v5452 = vpop.f32.mrb[0].mxu0
      %v5453 = vpop.f32.mrb[0].mxu0
      %v5454 = vadd.f32 0.0, %v5453
      %v5455 = vpop.f32.mrb[0].mxu0
      %5456 = vmatprep.mubr.bf16.mxu0 0
      %5457 = vmatmul.mubr.bf16.gmra.mrb[0].mxu0 %v5376
      %v5458 = vpop.f32.mrb[0].mxu0
      %v5459 = vadd.f32 0.0, %v5458
      %v5460 = vpop.f32.mrb[0].mxu0
      %v5461 = vpop.f32.mrb[0].mxu0
      %v5462 = vadd.f32 0.0, %v5461
      %v5463 = vpop.f32.mrb[0].mxu0
      %5464 = vmatprep.mubr.bf16.mxu0 0
      %5465 = vmatmul.mubr.bf16.gmra.mrb[0].mxu0 %v5379
      %v5466 = vpop.f32.mrb[0].mxu0
      %v5467 = vadd.f32 0.0, %v5466
      %v5468 = vpop.f32.mrb[0].mxu0
      %v5469 = vpop.f32.mrb[0].mxu0
      %v5470 = vpop.f32.mrb[0].mxu0
      %5471 = vdwg.mxu0
      %v5472 = vadd.f32 %v4613, %v5419
      %v5473 = vadd.f32 %v4614, %v5422
      %v5474 = vadd.f32 %v4615, %v5427
      %v5475 = vadd.f32 %v4616, %v5430
      %v5476 = vadd.f32 %v4617, %v5435
      %v5477 = vadd.f32 %v4618, %v5438
      %v5478 = vadd.f32 %v4619, %v5443
      %v5479 = vadd.f32 %v4620, %v5446
      %v5480 = vadd.f32 %v4621, %v5451
      %v5481 = vadd.f32 %v4622, %v5454
      %v5482 = vadd.f32 %v4623, %v5459
      %v5483 = vadd.f32 %v4624, %v5462
      %v5484 = vadd.f32 %v4625, %v5467
      %v5485 = vcombine.high %v4700, %v4700
      %v5487 = vunpack.c.l.s4 1966171168
      %v5488 = vunpack.c.0.s8 %v5487
      %v5489 = vlaneseq
      %v5490 = vshrl.u32 %v5489, 7
      %v5491 = vsub.s32 %v5488, %v5490
      %v5492 = vrot.slane %v5485, %v5491
      %v5493 = vcombine.high %v4738, %v4738
      %v5495 = vunpack.c.l.s4 1966171168
      %v5496 = vunpack.c.0.s8 %v5495
      %v5497 = vlaneseq
      %v5498 = vshrl.u32 %v5497, 7
      %v5499 = vsub.s32 %v5496, %v5498
      %v5500 = vrot.slane %v5493, %v5499
      %v5501 = vcombine.high %v4776, %v4776
      %v5503 = vunpack.c.l.s4 1966171168
      %v5504 = vunpack.c.0.s8 %v5503
      %v5505 = vlaneseq
      %v5506 = vshrl.u32 %v5505, 7
      %v5507 = vsub.s32 %v5504, %v5506
      %v5508 = vrot.slane %v5501, %v5507
      %v5509 = vcombine.high %v4814, %v4814
      %v5511 = vunpack.c.l.s4 1966171168
      %v5512 = vunpack.c.0.s8 %v5511
      %v5513 = vlaneseq
      %v5514 = vshrl.u32 %v5513, 7
      %v5515 = vsub.s32 %v5512, %v5514
      %v5516 = vrot.slane %v5509, %v5515
      %v5517 = vcombine.high %v4852, %v4852
      %v5519 = vunpack.c.l.s4 1966171168
      %v5520 = vunpack.c.0.s8 %v5519
      %v5521 = vlaneseq
      %v5522 = vshrl.u32 %v5521, 7
      %v5523 = vsub.s32 %v5520, %v5522
      %v5524 = vrot.slane %v5517, %v5523
      %v5525 = vcombine.high %v4890, %v4890
      %v5527 = vunpack.c.l.s4 1966171168
      %v5528 = vunpack.c.0.s8 %v5527
      %v5529 = vlaneseq
      %v5530 = vshrl.u32 %v5529, 7
      %v5531 = vsub.s32 %v5528, %v5530
      %v5532 = vrot.slane %v5525, %v5531
      %v5533 = vcombine.high %v4928, %v4928
      %v5535 = vunpack.c.l.s4 1966171168
      %v5536 = vunpack.c.0.s8 %v5535
      %v5537 = vlaneseq
      %v5538 = vshrl.u32 %v5537, 7
      %v5539 = vsub.s32 %v5536, %v5538
      %v5540 = vrot.slane %v5533, %v5539
      %v5541 = vcombine.high %v4966, %v4966
      %v5543 = vunpack.c.l.s4 1966171168
      %v5544 = vunpack.c.0.s8 %v5543
      %v5545 = vlaneseq
      %v5546 = vshrl.u32 %v5545, 7
      %v5547 = vsub.s32 %v5544, %v5546
      %v5548 = vrot.slane %v5541, %v5547
      %v5549 = vcombine.high %v5004, %v5004
      %v5551 = vunpack.c.l.s4 1966171168
      %v5552 = vunpack.c.0.s8 %v5551
      %v5553 = vlaneseq
      %v5554 = vshrl.u32 %v5553, 7
      %v5555 = vsub.s32 %v5552, %v5554
      %v5556 = vrot.slane %v5549, %v5555
      %v5557 = vcombine.high %v5042, %v5042
      %v5559 = vunpack.c.l.s4 1966171168
      %v5560 = vunpack.c.0.s8 %v5559
      %v5561 = vlaneseq
      %v5562 = vshrl.u32 %v5561, 7
      %v5563 = vsub.s32 %v5560, %v5562
      %v5564 = vrot.slane %v5557, %v5563
      %v5566 = vshrl.u32 %v4684, 16
      %v5568 = vrot.slane %v5566, 7
      %v5569 = vrot.slane %v5568, 1
      %v5571 = vshll.u32 %v4691, 16
      %v5573 = vsel %vm716, %v5569, %v5571
      %v5574 = vshrl.u32 %v4691, 16
      %v5576 = vrot.slane %v5574, 7
      %v5577 = vrot.slane %v5576, 1
      %v5579 = vshll.u32 %v4692, 16
      %v5581 = vsel %vm716, %v5577, %v5579
      %v5582 = vshrl.u32 %v4692, 16
      %v5584 = vrot.slane %v5582, 7
      %v5585 = vrot.slane %v5584, 1
      %v5587 = vshll.u32 %v4693, 16
      %v5589 = vsel %vm716, %v5585, %v5587
      %v5590 = vshrl.u32 %v4693, 16
      %v5592 = vrot.slane %v5590, 7
      %v5593 = vrot.slane %v5592, 1
      %v5595 = vshll.u32 %v4707, 16
      %v5597 = vsel %vm716, %v5593, %v5595
      %v5598 = vshrl.u32 %v4707, 16
      %v5600 = vrot.slane %v5598, 7
      %v5601 = vrot.slane %v5600, 1
      %v5603 = vshll.u32 %v5492, 16
      %v5605 = vsel %vm716, %v5601, %v5603
      %v5607 = vshrl.u32 %v4722, 16
      %v5609 = vrot.slane %v5607, 7
      %v5610 = vrot.slane %v5609, 1
      %v5612 = vshll.u32 %v4729, 16
      %v5614 = vsel %vm716, %v5610, %v5612
      %v5615 = vshrl.u32 %v4729, 16
      %v5617 = vrot.slane %v5615, 7
      %v5618 = vrot.slane %v5617, 1
      %v5620 = vshll.u32 %v4730, 16
      %v5622 = vsel %vm716, %v5618, %v5620
      %v5623 = vshrl.u32 %v4730, 16
      %v5625 = vrot.slane %v5623, 7
      %v5626 = vrot.slane %v5625, 1
      %v5628 = vshll.u32 %v4731, 16
      %v5630 = vsel %vm716, %v5626, %v5628
      %v5631 = vshrl.u32 %v4731, 16
      %v5633 = vrot.slane %v5631, 7
      %v5634 = vrot.slane %v5633, 1
      %v5636 = vshll.u32 %v4745, 16
      %v5638 = vsel %vm716, %v5634, %v5636
      %v5639 = vshrl.u32 %v4745, 16
      %v5641 = vrot.slane %v5639, 7
      %v5642 = vrot.slane %v5641, 1
      %v5644 = vshll.u32 %v5500, 16
      %v5646 = vsel %vm716, %v5642, %v5644
      %v5648 = vshrl.u32 %v4760, 16
      %v5650 = vrot.slane %v5648, 7
      %v5651 = vrot.slane %v5650, 1
      %v5653 = vshll.u32 %v4767, 16
      %v5655 = vsel %vm716, %v5651, %v5653
      %v5656 = vshrl.u32 %v4767, 16
      %v5658 = vrot.slane %v5656, 7
      %v5659 = vrot.slane %v5658, 1
      %v5661 = vshll.u32 %v4768, 16
      %v5663 = vsel %vm716, %v5659, %v5661
      %v5664 = vshrl.u32 %v4768, 16
      %v5666 = vrot.slane %v5664, 7
      %v5667 = vrot.slane %v5666, 1
      %v5669 = vshll.u32 %v4769, 16
      %v5671 = vsel %vm716, %v5667, %v5669
      %v5672 = vshrl.u32 %v4769, 16
      %v5674 = vrot.slane %v5672, 7
      %v5675 = vrot.slane %v5674, 1
      %v5677 = vshll.u32 %v4783, 16
      %v5679 = vsel %vm716, %v5675, %v5677
      %v5680 = vshrl.u32 %v4783, 16
      %v5682 = vrot.slane %v5680, 7
      %v5683 = vrot.slane %v5682, 1
      %v5685 = vshll.u32 %v5508, 16
      %v5687 = vsel %vm716, %v5683, %v5685
      %v5689 = vshrl.u32 %v4798, 16
      %v5691 = vrot.slane %v5689, 7
      %v5692 = vrot.slane %v5691, 1
      %v5694 = vshll.u32 %v4805, 16
      %v5696 = vsel %vm716, %v5692, %v5694
      %v5697 = vshrl.u32 %v4805, 16
      %v5699 = vrot.slane %v5697, 7
      %v5700 = vrot.slane %v5699, 1
      %v5702 = vshll.u32 %v4806, 16
      %v5704 = vsel %vm716, %v5700, %v5702
      %v5705 = vshrl.u32 %v4806, 16
      %v5707 = vrot.slane %v5705, 7
      %v5708 = vrot.slane %v5707, 1
      %v5710 = vshll.u32 %v4807, 16
      %v5712 = vsel %vm716, %v5708, %v5710
      %v5713 = vshrl.u32 %v4807, 16
      %v5715 = vrot.slane %v5713, 7
      %v5716 = vrot.slane %v5715, 1
      %v5718 = vshll.u32 %v4821, 16
      %v5720 = vsel %vm716, %v5716, %v5718
      %v5721 = vshrl.u32 %v4821, 16
      %v5723 = vrot.slane %v5721, 7
      %v5724 = vrot.slane %v5723, 1
      %v5726 = vshll.u32 %v5516, 16
      %v5728 = vsel %vm716, %v5724, %v5726
      %v5730 = vshrl.u32 %v4836, 16
      %v5732 = vrot.slane %v5730, 7
      %v5733 = vrot.slane %v5732, 1
      %v5735 = vshll.u32 %v4843, 16
      %v5737 = vsel %vm716, %v5733, %v5735
      %v5738 = vshrl.u32 %v4843, 16
      %v5740 = vrot.slane %v5738, 7
      %v5741 = vrot.slane %v5740, 1
      %v5743 = vshll.u32 %v4844, 16
      %v5745 = vsel %vm716, %v5741, %v5743
      %v5746 = vshrl.u32 %v4844, 16
      %v5748 = vrot.slane %v5746, 7
      %v5749 = vrot.slane %v5748, 1
      %v5751 = vshll.u32 %v4845, 16
      %v5753 = vsel %vm716, %v5749, %v5751
      %v5754 = vshrl.u32 %v4845, 16
      %v5756 = vrot.slane %v5754, 7
      %v5757 = vrot.slane %v5756, 1
      %v5759 = vshll.u32 %v4859, 16
      %v5761 = vsel %vm716, %v5757, %v5759
      %v5762 = vshrl.u32 %v4859, 16
      %v5764 = vrot.slane %v5762, 7
      %v5765 = vrot.slane %v5764, 1
      %v5767 = vshll.u32 %v5524, 16
      %v5769 = vsel %vm716, %v5765, %v5767
      %v5771 = vshrl.u32 %v4874, 16
      %v5773 = vrot.slane %v5771, 7
      %v5774 = vrot.slane %v5773, 1
      %v5776 = vshll.u32 %v4881, 16
      %v5778 = vsel %vm716, %v5774, %v5776
      %v5779 = vshrl.u32 %v4881, 16
      %v5781 = vrot.slane %v5779, 7
      %v5782 = vrot.slane %v5781, 1
      %v5784 = vshll.u32 %v4882, 16
      %v5786 = vsel %vm716, %v5782, %v5784
      %v5787 = vshrl.u32 %v4882, 16
      %v5789 = vrot.slane %v5787, 7
      %v5790 = vrot.slane %v5789, 1
      %v5792 = vshll.u32 %v4883, 16
      %v5794 = vsel %vm716, %v5790, %v5792
      %v5795 = vshrl.u32 %v4883, 16
      %v5797 = vrot.slane %v5795, 7
      %v5798 = vrot.slane %v5797, 1
      %v5800 = vshll.u32 %v4897, 16
      %v5802 = vsel %vm716, %v5798, %v5800
      %v5803 = vshrl.u32 %v4897, 16
      %v5805 = vrot.slane %v5803, 7
      %v5806 = vrot.slane %v5805, 1
      %v5808 = vshll.u32 %v5532, 16
      %v5810 = vsel %vm716, %v5806, %v5808
      %v5812 = vshrl.u32 %v4912, 16
      %v5814 = vrot.slane %v5812, 7
      %v5815 = vrot.slane %v5814, 1
      %v5817 = vshll.u32 %v4919, 16
      %v5819 = vsel %vm716, %v5815, %v5817
      %v5820 = vshrl.u32 %v4919, 16
      %v5822 = vrot.slane %v5820, 7
      %v5823 = vrot.slane %v5822, 1
      %v5825 = vshll.u32 %v4920, 16
      %v5827 = vsel %vm716, %v5823, %v5825
      %v5828 = vshrl.u32 %v4920, 16
      %v5830 = vrot.slane %v5828, 7
      %v5831 = vrot.slane %v5830, 1
      %v5833 = vshll.u32 %v4921, 16
      %v5835 = vsel %vm716, %v5831, %v5833
      %v5836 = vshrl.u32 %v4921, 16
      %v5838 = vrot.slane %v5836, 7
      %v5839 = vrot.slane %v5838, 1
      %v5841 = vshll.u32 %v4935, 16
      %v5843 = vsel %vm716, %v5839, %v5841
      %v5844 = vshrl.u32 %v4935, 16
      %v5846 = vrot.slane %v5844, 7
      %v5847 = vrot.slane %v5846, 1
      %v5849 = vshll.u32 %v5540, 16
      %v5851 = vsel %vm716, %v5847, %v5849
      %v5853 = vshrl.u32 %v4950, 16
      %v5855 = vrot.slane %v5853, 7
      %v5856 = vrot.slane %v5855, 1
      %v5858 = vshll.u32 %v4957, 16
      %v5860 = vsel %vm716, %v5856, %v5858
      %v5861 = vshrl.u32 %v4957, 16
      %v5863 = vrot.slane %v5861, 7
      %v5864 = vrot.slane %v5863, 1
      %v5866 = vshll.u32 %v4958, 16
      %v5868 = vsel %vm716, %v5864, %v5866
      %v5869 = vshrl.u32 %v4958, 16
      %v5871 = vrot.slane %v5869, 7
      %v5872 = vrot.slane %v5871, 1
      %v5874 = vshll.u32 %v4959, 16
      %v5876 = vsel %vm716, %v5872, %v5874
      %v5877 = vshrl.u32 %v4959, 16
      %v5879 = vrot.slane %v5877, 7
      %v5880 = vrot.slane %v5879, 1
      %v5882 = vshll.u32 %v4973, 16
      %v5884 = vsel %vm716, %v5880, %v5882
      %v5885 = vshrl.u32 %v4973, 16
      %v5887 = vrot.slane %v5885, 7
      %v5888 = vrot.slane %v5887, 1
      %v5890 = vshll.u32 %v5548, 16
      %v5892 = vsel %vm716, %v5888, %v5890
      %v5894 = vshrl.u32 %v4988, 16
      %v5896 = vrot.slane %v5894, 7
      %v5897 = vrot.slane %v5896, 1
      %v5899 = vshll.u32 %v4995, 16
      %v5901 = vsel %vm716, %v5897, %v5899
      %v5902 = vshrl.u32 %v4995, 16
      %v5904 = vrot.slane %v5902, 7
      %v5905 = vrot.slane %v5904, 1
      %v5907 = vshll.u32 %v4996, 16
      %v5909 = vsel %vm716, %v5905, %v5907
      %v5910 = vshrl.u32 %v4996, 16
      %v5912 = vrot.slane %v5910, 7
      %v5913 = vrot.slane %v5912, 1
      %v5915 = vshll.u32 %v4997, 16
      %v5917 = vsel %vm716, %v5913, %v5915
      %v5918 = vshrl.u32 %v4997, 16
      %v5920 = vrot.slane %v5918, 7
      %v5921 = vrot.slane %v5920, 1
      %v5923 = vshll.u32 %v5011, 16
      %v5925 = vsel %vm716, %v5921, %v5923
      %v5926 = vshrl.u32 %v5011, 16
      %v5928 = vrot.slane %v5926, 7
      %v5929 = vrot.slane %v5928, 1
      %v5931 = vshll.u32 %v5556, 16
      %v5933 = vsel %vm716, %v5929, %v5931
      %v5935 = vshrl.u32 %v5026, 16
      %v5937 = vrot.slane %v5935, 7
      %v5938 = vrot.slane %v5937, 1
      %v5940 = vshll.u32 %v5033, 16
      %v5942 = vsel %vm716, %v5938, %v5940
      %v5943 = vshrl.u32 %v5033, 16
      %v5945 = vrot.slane %v5943, 7
      %v5946 = vrot.slane %v5945, 1
      %v5948 = vshll.u32 %v5034, 16
      %v5950 = vsel %vm716, %v5946, %v5948
      %v5951 = vshrl.u32 %v5034, 16
      %v5953 = vrot.slane %v5951, 7
      %v5954 = vrot.slane %v5953, 1
      %v5956 = vshll.u32 %v5035, 16
      %v5958 = vsel %vm716, %v5954, %v5956
      %v5959 = vshrl.u32 %v5035, 16
      %v5961 = vrot.slane %v5959, 7
      %v5962 = vrot.slane %v5961, 1
      %v5964 = vshll.u32 %v5049, 16
      %v5966 = vsel %vm716, %v5962, %v5964
      %v5967 = vshrl.u32 %v5049, 16
      %v5969 = vrot.slane %v5967, 7
      %v5970 = vrot.slane %v5969, 1
      %v5972 = vshll.u32 %v5564, 16
      %v5974 = vsel %vm716, %v5970, %v5972
      %v5975 = vld [vmem:[%s1 + $0x1c] sm:$0xf]
      %v5976 = vcombine.low %v5573, %v5581
      %v5977 = vcombine.low %v5589, %v5597
      %v5978 = vcombine.low %v5605, %v5614
      %v5979 = vcombine.low %v5622, %v5630
      %v5981 = vunpack.c.l.s4 1966171168
      %v5982 = vunpack.c.0.s8 %v5981
      %v5983 = vlaneseq
      %v5984 = vshrl.u32 %v5983, 7
      %v5985 = vsub.s32 %v5982, %v5984
      %v5986 = vrot.slane %v5976, %v5985
      %v5988 = vunpack.c.l.s4 1966171168
      %v5989 = vunpack.c.0.s8 %v5988
      %v5990 = vlaneseq
      %v5991 = vshrl.u32 %v5990, 7
      %v5992 = vsub.s32 %v5989, %v5991
      %v5993 = vrot.slane %v5977, %v5992
      %v5995 = vunpack.c.l.s4 1966171168
      %v5996 = vunpack.c.0.s8 %v5995
      %v5997 = vlaneseq
      %v5998 = vshrl.u32 %v5997, 7
      %v5999 = vsub.s32 %v5996, %v5998
      %v6000 = vrot.slane %v5978, %v5999
      %v6002 = vunpack.c.l.s4 1966171168
      %v6003 = vunpack.c.0.s8 %v6002
      %v6004 = vlaneseq
      %v6005 = vshrl.u32 %v6004, 7
      %v6006 = vsub.s32 %v6003, %v6005
      %v6007 = vrot.slane %v5979, %v6006
      %v6008 = vcombine.low %v5986, %v5993
      %v6009 = vcombine.low %v6000, %v6007
      %v6011 = vunpack.c.l.s4 1966171168
      %v6012 = vunpack.c.0.s8 %v6011
      %v6013 = vlaneseq
      %v6014 = vshrl.u32 %v6013, 7
      %v6015 = vsub.s32 %v6012, %v6014
      %v6016 = vrot.slane %v6008, %v6015
      %v6018 = vunpack.c.l.s4 1966171168
      %v6019 = vunpack.c.0.s8 %v6018
      %v6020 = vlaneseq
      %v6021 = vshrl.u32 %v6020, 7
      %v6022 = vsub.s32 %v6019, %v6021
      %v6023 = vrot.slane %v6009, %v6022
      %v6024 = vcombine.low %v6016, %v6023
      %v6025 = vcombine.low %v5638, %v5646
      %v6026 = vcombine.low %v5655, %v5663
      %v6027 = vcombine.low %v5671, %v5679
      %v6028 = vcombine.low %v5687, %v5696
      %v6030 = vunpack.c.l.s4 1966171168
      %v6031 = vunpack.c.0.s8 %v6030
      %v6032 = vlaneseq
      %v6033 = vshrl.u32 %v6032, 7
      %v6034 = vsub.s32 %v6031, %v6033
      %v6035 = vrot.slane %v6025, %v6034
      %v6037 = vunpack.c.l.s4 1966171168
      %v6038 = vunpack.c.0.s8 %v6037
      %v6039 = vlaneseq
      %v6040 = vshrl.u32 %v6039, 7
      %v6041 = vsub.s32 %v6038, %v6040
      %v6042 = vrot.slane %v6026, %v6041
      %v6044 = vunpack.c.l.s4 1966171168
      %v6045 = vunpack.c.0.s8 %v6044
      %v6046 = vlaneseq
      %v6047 = vshrl.u32 %v6046, 7
      %v6048 = vsub.s32 %v6045, %v6047
      %v6049 = vrot.slane %v6027, %v6048
      %v6051 = vunpack.c.l.s4 1966171168
      %v6052 = vunpack.c.0.s8 %v6051
      %v6053 = vlaneseq
      %v6054 = vshrl.u32 %v6053, 7
      %v6055 = vsub.s32 %v6052, %v6054
      %v6056 = vrot.slane %v6028, %v6055
      %v6057 = vcombine.low %v6035, %v6042
      %v6058 = vcombine.low %v6049, %v6056
      %v6060 = vunpack.c.l.s4 1966171168
      %v6061 = vunpack.c.0.s8 %v6060
      %v6062 = vlaneseq
      %v6063 = vshrl.u32 %v6062, 7
      %v6064 = vsub.s32 %v6061, %v6063
      %v6065 = vrot.slane %v6057, %v6064
      %v6067 = vunpack.c.l.s4 1966171168
      %v6068 = vunpack.c.0.s8 %v6067
      %v6069 = vlaneseq
      %v6070 = vshrl.u32 %v6069, 7
      %v6071 = vsub.s32 %v6068, %v6070
      %v6072 = vrot.slane %v6058, %v6071
      %v6073 = vcombine.low %v6065, %v6072
      %v6074 = vcombine.low %v5704, %v5712
      %v6075 = vcombine.low %v5720, %v5728
      %v6076 = vcombine.low %v5737, %v5745
      %v6077 = vcombine.low %v5753, %v5761
      %v6079 = vunpack.c.l.s4 1966171168
      %v6080 = vunpack.c.0.s8 %v6079
      %v6081 = vlaneseq
      %v6082 = vshrl.u32 %v6081, 7
      %v6083 = vsub.s32 %v6080, %v6082
      %v6084 = vrot.slane %v6074, %v6083
      %v6086 = vunpack.c.l.s4 1966171168
      %v6087 = vunpack.c.0.s8 %v6086
      %v6088 = vlaneseq
      %v6089 = vshrl.u32 %v6088, 7
      %v6090 = vsub.s32 %v6087, %v6089
      %v6091 = vrot.slane %v6075, %v6090
      %v6093 = vunpack.c.l.s4 1966171168
      %v6094 = vunpack.c.0.s8 %v6093
      %v6095 = vlaneseq
      %v6096 = vshrl.u32 %v6095, 7
      %v6097 = vsub.s32 %v6094, %v6096
      %v6098 = vrot.slane %v6076, %v6097
      %v6100 = vunpack.c.l.s4 1966171168
      %v6101 = vunpack.c.0.s8 %v6100
      %v6102 = vlaneseq
      %v6103 = vshrl.u32 %v6102, 7
      %v6104 = vsub.s32 %v6101, %v6103
      %v6105 = vrot.slane %v6077, %v6104
      %v6106 = vcombine.low %v6084, %v6091
      %v6107 = vcombine.low %v6098, %v6105
      %v6109 = vunpack.c.l.s4 1966171168
      %v6110 = vunpack.c.0.s8 %v6109
      %v6111 = vlaneseq
      %v6112 = vshrl.u32 %v6111, 7
      %v6113 = vsub.s32 %v6110, %v6112
      %v6114 = vrot.slane %v6106, %v6113
      %v6116 = vunpack.c.l.s4 1966171168
      %v6117 = vunpack.c.0.s8 %v6116
      %v6118 = vlaneseq
      %v6119 = vshrl.u32 %v6118, 7
      %v6120 = vsub.s32 %v6117, %v6119
      %v6121 = vrot.slane %v6107, %v6120
      %v6122 = vcombine.low %v6114, %v6121
      %v6123 = vcombine.low %v5769, %v5778
      %v6124 = vcombine.low %v5786, %v5794
      %v6125 = vcombine.low %v5802, %v5810
      %v6126 = vcombine.low %v5819, %v5827
      %v6128 = vunpack.c.l.s4 1966171168
      %v6129 = vunpack.c.0.s8 %v6128
      %v6130 = vlaneseq
      %v6131 = vshrl.u32 %v6130, 7
      %v6132 = vsub.s32 %v6129, %v6131
      %v6133 = vrot.slane %v6123, %v6132
      %v6135 = vunpack.c.l.s4 1966171168
      %v6136 = vunpack.c.0.s8 %v6135
      %v6137 = vlaneseq
      %v6138 = vshrl.u32 %v6137, 7
      %v6139 = vsub.s32 %v6136, %v6138
      %v6140 = vrot.slane %v6124, %v6139
      %v6142 = vunpack.c.l.s4 1966171168
      %v6143 = vunpack.c.0.s8 %v6142
      %v6144 = vlaneseq
      %v6145 = vshrl.u32 %v6144, 7
      %v6146 = vsub.s32 %v6143, %v6145
      %v6147 = vrot.slane %v6125, %v6146
      %v6149 = vunpack.c.l.s4 1966171168
      %v6150 = vunpack.c.0.s8 %v6149
      %v6151 = vlaneseq
      %v6152 = vshrl.u32 %v6151, 7
      %v6153 = vsub.s32 %v6150, %v6152
      %v6154 = vrot.slane %v6126, %v6153
      %v6155 = vcombine.low %v6133, %v6140
      %v6156 = vcombine.low %v6147, %v6154
      %v6158 = vunpack.c.l.s4 1966171168
      %v6159 = vunpack.c.0.s8 %v6158
      %v6160 = vlaneseq
      %v6161 = vshrl.u32 %v6160, 7
      %v6162 = vsub.s32 %v6159, %v6161
      %v6163 = vrot.slane %v6155, %v6162
      %v6165 = vunpack.c.l.s4 1966171168
      %v6166 = vunpack.c.0.s8 %v6165
      %v6167 = vlaneseq
      %v6168 = vshrl.u32 %v6167, 7
      %v6169 = vsub.s32 %v6166, %v6168
      %v6170 = vrot.slane %v6156, %v6169
      %v6171 = vcombine.low %v6163, %v6170
      %v6172 = vcombine.low %v5835, %v5843
      %v6173 = vcombine.low %v5851, %v5860
      %v6174 = vcombine.low %v5868, %v5876
      %v6175 = vcombine.low %v5884, %v5892
      %v6177 = vunpack.c.l.s4 1966171168
      %v6178 = vunpack.c.0.s8 %v6177
      %v6179 = vlaneseq
      %v6180 = vshrl.u32 %v6179, 7
      %v6181 = vsub.s32 %v6178, %v6180
      %v6182 = vrot.slane %v6172, %v6181
      %v6184 = vunpack.c.l.s4 1966171168
      %v6185 = vunpack.c.0.s8 %v6184
      %v6186 = vlaneseq
      %v6187 = vshrl.u32 %v6186, 7
      %v6188 = vsub.s32 %v6185, %v6187
      %v6189 = vrot.slane %v6173, %v6188
      %v6191 = vunpack.c.l.s4 1966171168
      %v6192 = vunpack.c.0.s8 %v6191
      %v6193 = vlaneseq
      %v6194 = vshrl.u32 %v6193, 7
      %v6195 = vsub.s32 %v6192, %v6194
      %v6196 = vrot.slane %v6174, %v6195
      %v6198 = vunpack.c.l.s4 1966171168
      %v6199 = vunpack.c.0.s8 %v6198
      %v6200 = vlaneseq
      %v6201 = vshrl.u32 %v6200, 7
      %v6202 = vsub.s32 %v6199, %v6201
      %v6203 = vrot.slane %v6175, %v6202
      %v6204 = vcombine.low %v6182, %v6189
      %v6205 = vcombine.low %v6196, %v6203
      %v6207 = vunpack.c.l.s4 1966171168
      %v6208 = vunpack.c.0.s8 %v6207
      %v6209 = vlaneseq
      %v6210 = vshrl.u32 %v6209, 7
      %v6211 = vsub.s32 %v6208, %v6210
      %v6212 = vrot.slane %v6204, %v6211
      %v6214 = vunpack.c.l.s4 1966171168
      %v6215 = vunpack.c.0.s8 %v6214
      %v6216 = vlaneseq
      %v6217 = vshrl.u32 %v6216, 7
      %v6218 = vsub.s32 %v6215, %v6217
      %v6219 = vrot.slane %v6205, %v6218
      %v6220 = vcombine.low %v6212, %v6219
      %v6221 = vcombine.low %v5901, %v5909
      %v6222 = vcombine.low %v5917, %v5925
      %v6223 = vcombine.low %v5933, %v5942
      %v6224 = vcombine.low %v5950, %v5958
      %v6226 = vunpack.c.l.s4 1966171168
      %v6227 = vunpack.c.0.s8 %v6226
      %v6228 = vlaneseq
      %v6229 = vshrl.u32 %v6228, 7
      %v6230 = vsub.s32 %v6227, %v6229
      %v6231 = vrot.slane %v6221, %v6230
      %v6233 = vunpack.c.l.s4 1966171168
      %v6234 = vunpack.c.0.s8 %v6233
      %v6235 = vlaneseq
      %v6236 = vshrl.u32 %v6235, 7
      %v6237 = vsub.s32 %v6234, %v6236
      %v6238 = vrot.slane %v6222, %v6237
      %v6240 = vunpack.c.l.s4 1966171168
      %v6241 = vunpack.c.0.s8 %v6240
      %v6242 = vlaneseq
      %v6243 = vshrl.u32 %v6242, 7
      %v6244 = vsub.s32 %v6241, %v6243
      %v6245 = vrot.slane %v6223, %v6244
      %v6247 = vunpack.c.l.s4 1966171168
      %v6248 = vunpack.c.0.s8 %v6247
      %v6249 = vlaneseq
      %v6250 = vshrl.u32 %v6249, 7
      %v6251 = vsub.s32 %v6248, %v6250
      %v6252 = vrot.slane %v6224, %v6251
      %v6253 = vcombine.low %v6231, %v6238
      %v6254 = vcombine.low %v6245, %v6252
      %v6256 = vunpack.c.l.s4 1966171168
      %v6257 = vunpack.c.0.s8 %v6256
      %v6258 = vlaneseq
      %v6259 = vshrl.u32 %v6258, 7
      %v6260 = vsub.s32 %v6257, %v6259
      %v6261 = vrot.slane %v6253, %v6260
      %v6263 = vunpack.c.l.s4 1966171168
      %v6264 = vunpack.c.0.s8 %v6263
      %v6265 = vlaneseq
      %v6266 = vshrl.u32 %v6265, 7
      %v6267 = vsub.s32 %v6264, %v6266
      %v6268 = vrot.slane %v6254, %v6267
      %v6269 = vcombine.low %v6261, %v6268
      %v6270 = vcombine.low %v5966, %v5974
      %v6272 = vunpack.c.l.s4 1966171168
      %v6273 = vunpack.c.0.s8 %v6272
      %v6274 = vlaneseq
      %v6275 = vshrl.u32 %v6274, 7
      %v6276 = vsub.s32 %v6273, %v6275
      %v6277 = vrot.slane %v6270, %v6276
      %v6279 = vunpack.c.l.s4 1966171168
      %v6280 = vunpack.c.0.s8 %v6279
      %v6281 = vlaneseq
      %v6282 = vshrl.u32 %v6281, 7
      %v6283 = vsub.s32 %v6280, %v6282
      %v6284 = vrot.slane %v6277, %v6283
      %v6286 = vsel %vm1437, %v6024, 0
      %v6289 = vsel %vm1437, %v6073, 0
      %v6292 = vsel %vm1437, %v6122, 0
      %v6295 = vsel %vm1437, %v6171, 0
      %v6298 = vsel %vm1437, %v6220, 0
      %v6301 = vsel %vm1437, %v6269, 0
      %v6304 = vsel %vm1437, %v6284, 0
      %v6307 = vsel %vm1459, %v5975, 0
      %6309 = vmatprep.subr.bf16.mxu0 0
      %6310 = vmatpush1.bf16.msra.mxu0 %v6307
      %6311 = vmatprep.subr.bf16.mxu0 0
      %6312 = vmatpush1.bf16.msra.mxu0 0
      %6313 = vmatprep.subr.bf16.mxu0 0
      %6314 = vmatpush1.bf16.msra.mxu0 0
      %6315 = vmatprep.subr.bf16.mxu0 0
      %6316 = vmatpush1.bf16.msra.mxu0 0
      %6317 = vmatprep.subr.bf16.mxu0 0
      %6318 = vmatpush1.bf16.msra.mxu0 0
      %6319 = vmatprep.subr.bf16.mxu0 0
      %6320 = vmatpush1.bf16.msra.mxu0 0
      %6321 = vmatprep.subr.bf16.mxu0 0
      %6322 = vmatpush1.bf16.msra.mxu0 0
      %6323 = vmatprep.subr.bf16.mxu0 0
      %6324 = vmatpush1.bf16.msra.mxu0 0
      %6325 = vmatprep.subr.bf16.mxu0 0
      %6326 = vmatpush1.bf16.msra.mxu0 0
      %6327 = vmatprep.subr.bf16.mxu0 0
      %6328 = vmatpush1.bf16.msra.mxu0 0
      %6329 = vmatprep.subr.bf16.mxu0 0
      %6330 = vmatpush1.bf16.msra.mxu0 0
      %6331 = vmatprep.subr.bf16.mxu0 0
      %6332 = vmatpush1.bf16.msra.mxu0 0
      %6333 = vmatprep.subr.bf16.mxu0 0
      %6334 = vmatpush1.bf16.msra.mxu0 0
      %6335 = vmatprep.subr.bf16.mxu0 0
      %6336 = vmatpush1.bf16.msra.mxu0 0
      %6337 = vmatprep.subr.bf16.mxu0 0
      %6338 = vmatpush1.bf16.msra.mxu0 0
      %6339 = vmatprep.subr.bf16.mxu0 0
      %6340 = vmatpush1.bf16.msra.mxu0 0
      %6341 = vmatprep.mubr.bf16.mxu0 0
      %6342 = vmatmul.mubr.bf16.gmra.mrb[0].mxu0 %v6286
      %v6343 = vpop.f32.mrb[0].mxu0
      %v6344 = vadd.f32 0.0, %v6343
      %v6345 = vpop.f32.mrb[0].mxu0
      %v6346 = vpop.f32.mrb[0].mxu0
      %v6347 = vadd.f32 0.0, %v6346
      %v6348 = vpop.f32.mrb[0].mxu0
      %6349 = vmatprep.mubr.bf16.mxu0 0
      %6350 = vmatmul.mubr.bf16.gmra.mrb[0].mxu0 %v6289
      %v6351 = vpop.f32.mrb[0].mxu0
      %v6352 = vadd.f32 0.0, %v6351
      %v6353 = vpop.f32.mrb[0].mxu0
      %v6354 = vpop.f32.mrb[0].mxu0
      %v6355 = vadd.f32 0.0, %v6354
      %v6356 = vpop.f32.mrb[0].mxu0
      %6357 = vmatprep.mubr.bf16.mxu0 0
      %6358 = vmatmul.mubr.bf16.gmra.mrb[0].mxu0 %v6292
      %v6359 = vpop.f32.mrb[0].mxu0
      %v6360 = vadd.f32 0.0, %v6359
      %v6361 = vpop.f32.mrb[0].mxu0
      %v6362 = vpop.f32.mrb[0].mxu0
      %v6363 = vadd.f32 0.0, %v6362
      %v6364 = vpop.f32.mrb[0].mxu0
      %6365 = vmatprep.mubr.bf16.mxu0 0
      %6366 = vmatmul.mubr.bf16.gmra.mrb[0].mxu0 %v6295
      %v6367 = vpop.f32.mrb[0].mxu0
      %v6368 = vadd.f32 0.0, %v6367
      %v6369 = vpop.f32.mrb[0].mxu0
      %v6370 = vpop.f32.mrb[0].mxu0
      %v6371 = vadd.f32 0.0, %v6370
      %v6372 = vpop.f32.mrb[0].mxu0
      %6373 = vmatprep.mubr.bf16.mxu0 0
      %6374 = vmatmul.mubr.bf16.gmra.mrb[0].mxu0 %v6298
      %v6375 = vpop.f32.mrb[0].mxu0
      %v6376 = vadd.f32 0.0, %v6375
      %v6377 = vpop.f32.mrb[0].mxu0
      %v6378 = vpop.f32.mrb[0].mxu0
      %v6379 = vadd.f32 0.0, %v6378
      %v6380 = vpop.f32.mrb[0].mxu0
      %6381 = vmatprep.mubr.bf16.mxu0 0
      %6382 = vmatmul.mubr.bf16.gmra.mrb[0].mxu0 %v6301
      %v6383 = vpop.f32.mrb[0].mxu0
      %v6384 = vadd.f32 0.0, %v6383
      %v6385 = vpop.f32.mrb[0].mxu0
      %v6386 = vpop.f32.mrb[0].mxu0
      %v6387 = vadd.f32 0.0, %v6386
      %v6388 = vpop.f32.mrb[0].mxu0
      %6389 = vmatprep.mubr.bf16.mxu0 0
      %6390 = vmatmul.mubr.bf16.gmra.mrb[0].mxu0 %v6304
      %v6391 = vpop.f32.mrb[0].mxu0
      %v6392 = vadd.f32 0.0, %v6391
      %v6393 = vpop.f32.mrb[0].mxu0
      %v6394 = vpop.f32.mrb[0].mxu0
      %v6395 = vpop.f32.mrb[0].mxu0
      %6396 = vdwg.mxu0
      %v6397 = vadd.f32 %v5472, %v6344
      %v6398 = vadd.f32 %v5473, %v6347
      %v6399 = vadd.f32 %v5474, %v6352
      %v6400 = vadd.f32 %v5475, %v6355
      %v6401 = vadd.f32 %v5476, %v6360
      %v6402 = vadd.f32 %v5477, %v6363
      %v6403 = vadd.f32 %v5478, %v6368
      %v6404 = vadd.f32 %v5479, %v6371
      %v6405 = vadd.f32 %v5480, %v6376
      %v6406 = vadd.f32 %v5481, %v6379
      %v6407 = vadd.f32 %v5482, %v6384
      %v6408 = vadd.f32 %v5483, %v6387
      %v6409 = vadd.f32 %v5484, %v6392
      %v6410 = vld [vmem:[%s1 + $0x20] sm:$0xf]
      %v6411 = vcombine.low %v4691, %v4692
      %v6412 = vcombine.low %v4693, %v4707
      %v6413 = vcombine.low %v5492, %v4729
      %v6414 = vcombine.low %v4730, %v4731
      %v6416 = vunpack.c.l.s4 1966171168
      %v6417 = vunpack.c.0.s8 %v6416
      %v6418 = vlaneseq
      %v6419 = vshrl.u32 %v6418, 7
      %v6420 = vsub.s32 %v6417, %v6419
      %v6421 = vrot.slane %v6411, %v6420
      %v6423 = vunpack.c.l.s4 1966171168
      %v6424 = vunpack.c.0.s8 %v6423
      %v6425 = vlaneseq
      %v6426 = vshrl.u32 %v6425, 7
      %v6427 = vsub.s32 %v6424, %v6426
      %v6428 = vrot.slane %v6412, %v6427
      %v6430 = vunpack.c.l.s4 1966171168
      %v6431 = vunpack.c.0.s8 %v6430
      %v6432 = vlaneseq
      %v6433 = vshrl.u32 %v6432, 7
      %v6434 = vsub.s32 %v6431, %v6433
      %v6435 = vrot.slane %v6413, %v6434
      %v6437 = vunpack.c.l.s4 1966171168
      %v6438 = vunpack.c.0.s8 %v6437
      %v6439 = vlaneseq
      %v6440 = vshrl.u32 %v6439, 7
      %v6441 = vsub.s32 %v6438, %v6440
      %v6442 = vrot.slane %v6414, %v6441
      %v6443 = vcombine.low %v6421, %v6428
      %v6444 = vcombine.low %v6435, %v6442
      %v6446 = vunpack.c.l.s4 1966171168
      %v6447 = vunpack.c.0.s8 %v6446
      %v6448 = vlaneseq
      %v6449 = vshrl.u32 %v6448, 7
      %v6450 = vsub.s32 %v6447, %v6449
      %v6451 = vrot.slane %v6443, %v6450
      %v6453 = vunpack.c.l.s4 1966171168
      %v6454 = vunpack.c.0.s8 %v6453
      %v6455 = vlaneseq
      %v6456 = vshrl.u32 %v6455, 7
      %v6457 = vsub.s32 %v6454, %v6456
      %v6458 = vrot.slane %v6444, %v6457
      %v6459 = vcombine.low %v6451, %v6458
      %v6460 = vcombine.low %v4745, %v5500
      %v6461 = vcombine.low %v4767, %v4768
      %v6462 = vcombine.low %v4769, %v4783
      %v6463 = vcombine.low %v5508, %v4805
      %v6465 = vunpack.c.l.s4 1966171168
      %v6466 = vunpack.c.0.s8 %v6465
      %v6467 = vlaneseq
      %v6468 = vshrl.u32 %v6467, 7
      %v6469 = vsub.s32 %v6466, %v6468
      %v6470 = vrot.slane %v6460, %v6469
      %v6472 = vunpack.c.l.s4 1966171168
      %v6473 = vunpack.c.0.s8 %v6472
      %v6474 = vlaneseq
      %v6475 = vshrl.u32 %v6474, 7
      %v6476 = vsub.s32 %v6473, %v6475
      %v6477 = vrot.slane %v6461, %v6476
      %v6479 = vunpack.c.l.s4 1966171168
      %v6480 = vunpack.c.0.s8 %v6479
      %v6481 = vlaneseq
      %v6482 = vshrl.u32 %v6481, 7
      %v6483 = vsub.s32 %v6480, %v6482
      %v6484 = vrot.slane %v6462, %v6483
      %v6486 = vunpack.c.l.s4 1966171168
      %v6487 = vunpack.c.0.s8 %v6486
      %v6488 = vlaneseq
      %v6489 = vshrl.u32 %v6488, 7
      %v6490 = vsub.s32 %v6487, %v6489
      %v6491 = vrot.slane %v6463, %v6490
      %v6492 = vcombine.low %v6470, %v6477
      %v6493 = vcombine.low %v6484, %v6491
      %v6495 = vunpack.c.l.s4 1966171168
      %v6496 = vunpack.c.0.s8 %v6495
      %v6497 = vlaneseq
      %v6498 = vshrl.u32 %v6497, 7
      %v6499 = vsub.s32 %v6496, %v6498
      %v6500 = vrot.slane %v6492, %v6499
      %v6502 = vunpack.c.l.s4 1966171168
      %v6503 = vunpack.c.0.s8 %v6502
      %v6504 = vlaneseq
      %v6505 = vshrl.u32 %v6504, 7
      %v6506 = vsub.s32 %v6503, %v6505
      %v6507 = vrot.slane %v6493, %v6506
      %v6508 = vcombine.low %v6500, %v6507
      %v6509 = vcombine.low %v4806, %v4807
      %v6510 = vcombine.low %v4821, %v5516
      %v6511 = vcombine.low %v4843, %v4844
      %v6512 = vcombine.low %v4845, %v4859
      %v6514 = vunpack.c.l.s4 1966171168
      %v6515 = vunpack.c.0.s8 %v6514
      %v6516 = vlaneseq
      %v6517 = vshrl.u32 %v6516, 7
      %v6518 = vsub.s32 %v6515, %v6517
      %v6519 = vrot.slane %v6509, %v6518
      %v6521 = vunpack.c.l.s4 1966171168
      %v6522 = vunpack.c.0.s8 %v6521
      %v6523 = vlaneseq
      %v6524 = vshrl.u32 %v6523, 7
      %v6525 = vsub.s32 %v6522, %v6524
      %v6526 = vrot.slane %v6510, %v6525
      %v6528 = vunpack.c.l.s4 1966171168
      %v6529 = vunpack.c.0.s8 %v6528
      %v6530 = vlaneseq
      %v6531 = vshrl.u32 %v6530, 7
      %v6532 = vsub.s32 %v6529, %v6531
      %v6533 = vrot.slane %v6511, %v6532
      %v6535 = vunpack.c.l.s4 1966171168
      %v6536 = vunpack.c.0.s8 %v6535
      %v6537 = vlaneseq
      %v6538 = vshrl.u32 %v6537, 7
      %v6539 = vsub.s32 %v6536, %v6538
      %v6540 = vrot.slane %v6512, %v6539
      %v6541 = vcombine.low %v6519, %v6526
      %v6542 = vcombine.low %v6533, %v6540
      %v6544 = vunpack.c.l.s4 1966171168
      %v6545 = vunpack.c.0.s8 %v6544
      %v6546 = vlaneseq
      %v6547 = vshrl.u32 %v6546, 7
      %v6548 = vsub.s32 %v6545, %v6547
      %v6549 = vrot.slane %v6541, %v6548
      %v6551 = vunpack.c.l.s4 1966171168
      %v6552 = vunpack.c.0.s8 %v6551
      %v6553 = vlaneseq
      %v6554 = vshrl.u32 %v6553, 7
      %v6555 = vsub.s32 %v6552, %v6554
      %v6556 = vrot.slane %v6542, %v6555
      %v6557 = vcombine.low %v6549, %v6556
      %v6558 = vcombine.low %v5524, %v4881
      %v6559 = vcombine.low %v4882, %v4883
      %v6560 = vcombine.low %v4897, %v5532
      %v6561 = vcombine.low %v4919, %v4920
      %v6563 = vunpack.c.l.s4 1966171168
      %v6564 = vunpack.c.0.s8 %v6563
      %v6565 = vlaneseq
      %v6566 = vshrl.u32 %v6565, 7
      %v6567 = vsub.s32 %v6564, %v6566
      %v6568 = vrot.slane %v6558, %v6567
      %v6570 = vunpack.c.l.s4 1966171168
      %v6571 = vunpack.c.0.s8 %v6570
      %v6572 = vlaneseq
      %v6573 = vshrl.u32 %v6572, 7
      %v6574 = vsub.s32 %v6571, %v6573
      %v6575 = vrot.slane %v6559, %v6574
      %v6577 = vunpack.c.l.s4 1966171168
      %v6578 = vunpack.c.0.s8 %v6577
      %v6579 = vlaneseq
      %v6580 = vshrl.u32 %v6579, 7
      %v6581 = vsub.s32 %v6578, %v6580
      %v6582 = vrot.slane %v6560, %v6581
      %v6584 = vunpack.c.l.s4 1966171168
      %v6585 = vunpack.c.0.s8 %v6584
      %v6586 = vlaneseq
      %v6587 = vshrl.u32 %v6586, 7
      %v6588 = vsub.s32 %v6585, %v6587
      %v6589 = vrot.slane %v6561, %v6588
      %v6590 = vcombine.low %v6568, %v6575
      %v6591 = vcombine.low %v6582, %v6589
      %v6593 = vunpack.c.l.s4 1966171168
      %v6594 = vunpack.c.0.s8 %v6593
      %v6595 = vlaneseq
      %v6596 = vshrl.u32 %v6595, 7
      %v6597 = vsub.s32 %v6594, %v6596
      %v6598 = vrot.slane %v6590, %v6597
      %v6600 = vunpack.c.l.s4 1966171168
      %v6601 = vunpack.c.0.s8 %v6600
      %v6602 = vlaneseq
      %v6603 = vshrl.u32 %v6602, 7
      %v6604 = vsub.s32 %v6601, %v6603
      %v6605 = vrot.slane %v6591, %v6604
      %v6606 = vcombine.low %v6598, %v6605
      %v6607 = vcombine.low %v4921, %v4935
      %v6608 = vcombine.low %v5540, %v4957
      %v6609 = vcombine.low %v4958, %v4959
      %v6610 = vcombine.low %v4973, %v5548
      %v6612 = vunpack.c.l.s4 1966171168
      %v6613 = vunpack.c.0.s8 %v6612
      %v6614 = vlaneseq
      %v6615 = vshrl.u32 %v6614, 7
      %v6616 = vsub.s32 %v6613, %v6615
      %v6617 = vrot.slane %v6607, %v6616
      %v6619 = vunpack.c.l.s4 1966171168
      %v6620 = vunpack.c.0.s8 %v6619
      %v6621 = vlaneseq
      %v6622 = vshrl.u32 %v6621, 7
      %v6623 = vsub.s32 %v6620, %v6622
      %v6624 = vrot.slane %v6608, %v6623
      %v6626 = vunpack.c.l.s4 1966171168
      %v6627 = vunpack.c.0.s8 %v6626
      %v6628 = vlaneseq
      %v6629 = vshrl.u32 %v6628, 7
      %v6630 = vsub.s32 %v6627, %v6629
      %v6631 = vrot.slane %v6609, %v6630
      %v6633 = vunpack.c.l.s4 1966171168
      %v6634 = vunpack.c.0.s8 %v6633
      %v6635 = vlaneseq
      %v6636 = vshrl.u32 %v6635, 7
      %v6637 = vsub.s32 %v6634, %v6636
      %v6638 = vrot.slane %v6610, %v6637
      %v6639 = vcombine.low %v6617, %v6624
      %v6640 = vcombine.low %v6631, %v6638
      %v6642 = vunpack.c.l.s4 1966171168
      %v6643 = vunpack.c.0.s8 %v6642
      %v6644 = vlaneseq
      %v6645 = vshrl.u32 %v6644, 7
      %v6646 = vsub.s32 %v6643, %v6645
      %v6647 = vrot.slane %v6639, %v6646
      %v6649 = vunpack.c.l.s4 1966171168
      %v6650 = vunpack.c.0.s8 %v6649
      %v6651 = vlaneseq
      %v6652 = vshrl.u32 %v6651, 7
      %v6653 = vsub.s32 %v6650, %v6652
      %v6654 = vrot.slane %v6640, %v6653
      %v6655 = vcombine.low %v6647, %v6654
      %v6656 = vcombine.low %v4995, %v4996
      %v6657 = vcombine.low %v4997, %v5011
      %v6658 = vcombine.low %v5556, %v5033
      %v6659 = vcombine.low %v5034, %v5035
      %v6661 = vunpack.c.l.s4 1966171168
      %v6662 = vunpack.c.0.s8 %v6661
      %v6663 = vlaneseq
      %v6664 = vshrl.u32 %v6663, 7
      %v6665 = vsub.s32 %v6662, %v6664
      %v6666 = vrot.slane %v6656, %v6665
      %v6668 = vunpack.c.l.s4 1966171168
      %v6669 = vunpack.c.0.s8 %v6668
      %v6670 = vlaneseq
      %v6671 = vshrl.u32 %v6670, 7
      %v6672 = vsub.s32 %v6669, %v6671
      %v6673 = vrot.slane %v6657, %v6672
      %v6675 = vunpack.c.l.s4 1966171168
      %v6676 = vunpack.c.0.s8 %v6675
      %v6677 = vlaneseq
      %v6678 = vshrl.u32 %v6677, 7
      %v6679 = vsub.s32 %v6676, %v6678
      %v6680 = vrot.slane %v6658, %v6679
      %v6682 = vunpack.c.l.s4 1966171168
      %v6683 = vunpack.c.0.s8 %v6682
      %v6684 = vlaneseq
      %v6685 = vshrl.u32 %v6684, 7
      %v6686 = vsub.s32 %v6683, %v6685
      %v6687 = vrot.slane %v6659, %v6686
      %v6688 = vcombine.low %v6666, %v6673
      %v6689 = vcombine.low %v6680, %v6687
      %v6691 = vunpack.c.l.s4 1966171168
      %v6692 = vunpack.c.0.s8 %v6691
      %v6693 = vlaneseq
      %v6694 = vshrl.u32 %v6693, 7
      %v6695 = vsub.s32 %v6692, %v6694
      %v6696 = vrot.slane %v6688, %v6695
      %v6698 = vunpack.c.l.s4 1966171168
      %v6699 = vunpack.c.0.s8 %v6698
      %v6700 = vlaneseq
      %v6701 = vshrl.u32 %v6700, 7
      %v6702 = vsub.s32 %v6699, %v6701
      %v6703 = vrot.slane %v6689, %v6702
      %v6704 = vcombine.low %v6696, %v6703
      %v6705 = vcombine.low %v5049, %v5564
      %v6707 = vunpack.c.l.s4 1966171168
      %v6708 = vunpack.c.0.s8 %v6707
      %v6709 = vlaneseq
      %v6710 = vshrl.u32 %v6709, 7
      %v6711 = vsub.s32 %v6708, %v6710
      %v6712 = vrot.slane %v6705, %v6711
      %v6714 = vunpack.c.l.s4 1966171168
      %v6715 = vunpack.c.0.s8 %v6714
      %v6716 = vlaneseq
      %v6717 = vshrl.u32 %v6716, 7
      %v6718 = vsub.s32 %v6715, %v6717
      %v6719 = vrot.slane %v6712, %v6718
      %v6721 = vsel %vm1437, %v6459, 0
      %v6724 = vsel %vm1437, %v6508, 0
      %v6727 = vsel %vm1437, %v6557, 0
      %v6730 = vsel %vm1437, %v6606, 0
      %v6733 = vsel %vm1437, %v6655, 0
      %v6736 = vsel %vm1437, %v6704, 0
      %v6739 = vsel %vm1437, %v6719, 0
      %v6742 = vsel %vm1459, %v6410, 0
      %6744 = vmatprep.subr.bf16.mxu0 0
      %6745 = vmatpush1.bf16.msra.mxu0 %v6742
      %6746 = vmatprep.subr.bf16.mxu0 0
      %6747 = vmatpush1.bf16.msra.mxu0 0
      %6748 = vmatprep.subr.bf16.mxu0 0
      %6749 = vmatpush1.bf16.msra.mxu0 0
      %6750 = vmatprep.subr.bf16.mxu0 0
      %6751 = vmatpush1.bf16.msra.mxu0 0
      %6752 = vmatprep.subr.bf16.mxu0 0
      %6753 = vmatpush1.bf16.msra.mxu0 0
      %6754 = vmatprep.subr.bf16.mxu0 0
      %6755 = vmatpush1.bf16.msra.mxu0 0
      %6756 = vmatprep.subr.bf16.mxu0 0
      %6757 = vmatpush1.bf16.msra.mxu0 0
      %6758 = vmatprep.subr.bf16.mxu0 0
      %6759 = vmatpush1.bf16.msra.mxu0 0
      %6760 = vmatprep.subr.bf16.mxu0 0
      %6761 = vmatpush1.bf16.msra.mxu0 0
      %6762 = vmatprep.subr.bf16.mxu0 0
      %6763 = vmatpush1.bf16.msra.mxu0 0
      %6764 = vmatprep.subr.bf16.mxu0 0
      %6765 = vmatpush1.bf16.msra.mxu0 0
      %6766 = vmatprep.subr.bf16.mxu0 0
      %6767 = vmatpush1.bf16.msra.mxu0 0
      %6768 = vmatprep.subr.bf16.mxu0 0
      %6769 = vmatpush1.bf16.msra.mxu0 0
      %6770 = vmatprep.subr.bf16.mxu0 0
      %6771 = vmatpush1.bf16.msra.mxu0 0
      %6772 = vmatprep.subr.bf16.mxu0 0
      %6773 = vmatpush1.bf16.msra.mxu0 0
      %6774 = vmatprep.subr.bf16.mxu0 0
      %6775 = vmatpush1.bf16.msra.mxu0 0
      %6776 = vmatprep.mubr.bf16.mxu0 0
      %6777 = vmatmul.mubr.bf16.gmra.mrb[0].mxu0 %v6721
      %v6778 = vpop.f32.mrb[0].mxu0
      %v6779 = vadd.f32 0.0, %v6778
      %v6780 = vpop.f32.mrb[0].mxu0
      %v6781 = vpop.f32.mrb[0].mxu0
      %v6782 = vadd.f32 0.0, %v6781
      %v6783 = vpop.f32.mrb[0].mxu0
      %6784 = vmatprep.mubr.bf16.mxu0 0
      %6785 = vmatmul.mubr.bf16.gmra.mrb[0].mxu0 %v6724
      %v6786 = vpop.f32.mrb[0].mxu0
      %v6787 = vadd.f32 0.0, %v6786
      %v6788 = vpop.f32.mrb[0].mxu0
      %v6789 = vpop.f32.mrb[0].mxu0
      %v6790 = vadd.f32 0.0, %v6789
      %v6791 = vpop.f32.mrb[0].mxu0
      %6792 = vmatprep.mubr.bf16.mxu0 0
      %6793 = vmatmul.mubr.bf16.gmra.mrb[0].mxu0 %v6727
      %v6794 = vpop.f32.mrb[0].mxu0
      %v6795 = vadd.f32 0.0, %v6794
      %v6796 = vpop.f32.mrb[0].mxu0
      %v6797 = vpop.f32.mrb[0].mxu0
      %v6798 = vadd.f32 0.0, %v6797
      %v6799 = vpop.f32.mrb[0].mxu0
      %6800 = vmatprep.mubr.bf16.mxu0 0
      %6801 = vmatmul.mubr.bf16.gmra.mrb[0].mxu0 %v6730
      %v6802 = vpop.f32.mrb[0].mxu0
      %v6803 = vadd.f32 0.0, %v6802
      %v6804 = vpop.f32.mrb[0].mxu0
      %v6805 = vpop.f32.mrb[0].mxu0
      %v6806 = vadd.f32 0.0, %v6805
      %v6807 = vpop.f32.mrb[0].mxu0
      %6808 = vmatprep.mubr.bf16.mxu0 0
      %6809 = vmatmul.mubr.bf16.gmra.mrb[0].mxu0 %v6733
      %v6810 = vpop.f32.mrb[0].mxu0
      %v6811 = vadd.f32 0.0, %v6810
      %v6812 = vpop.f32.mrb[0].mxu0
      %v6813 = vpop.f32.mrb[0].mxu0
      %v6814 = vadd.f32 0.0, %v6813
      %v6815 = vpop.f32.mrb[0].mxu0
      %6816 = vmatprep.mubr.bf16.mxu0 0
      %6817 = vmatmul.mubr.bf16.gmra.mrb[0].mxu0 %v6736
      %v6818 = vpop.f32.mrb[0].mxu0
      %v6819 = vadd.f32 0.0, %v6818
      %v6820 = vpop.f32.mrb[0].mxu0
      %v6821 = vpop.f32.mrb[0].mxu0
      %v6822 = vadd.f32 0.0, %v6821
      %v6823 = vpop.f32.mrb[0].mxu0
      %6824 = vmatprep.mubr.bf16.mxu0 0
      %6825 = vmatmul.mubr.bf16.gmra.mrb[0].mxu0 %v6739
      %v6826 = vpop.f32.mrb[0].mxu0
      %v6827 = vadd.f32 0.0, %v6826
      %v6828 = vpop.f32.mrb[0].mxu0
      %v6829 = vpop.f32.mrb[0].mxu0
      %v6830 = vpop.f32.mrb[0].mxu0
      %6831 = vdwg.mxu0
      %v6832 = vadd.f32 %v6397, %v6779
      %v6833 = vadd.f32 %v6398, %v6782
      %v6834 = vadd.f32 %v6399, %v6787
      %v6835 = vadd.f32 %v6400, %v6790
      %v6836 = vadd.f32 %v6401, %v6795
      %v6837 = vadd.f32 %v6402, %v6798
      %v6838 = vadd.f32 %v6403, %v6803
      %v6839 = vadd.f32 %v6404, %v6806
      %v6840 = vadd.f32 %v6405, %v6811
      %v6841 = vadd.f32 %v6406, %v6814
      %v6842 = vadd.f32 %v6407, %v6819
      %v6843 = vadd.f32 %v6408, %v6822
      %v6844 = vadd.f32 %v6409, %v6827
      %v6845 = vld [vmem:[%s2] sm:$0x1]
      %v6847 = vlaneseq
      %v6848 = vshrl.u32 %v6847, 7
      %v6849 = vsub.s32 0, %v6848
      %v6850 = vrot.slane %v6845, %v6849
      %v6852 = vadd.f32 %v6832, %v6850
      %v6853 = vadd.f32 %v6833, %v6850
      %v6854 = vadd.f32 %v6834, %v6850
      %v6855 = vadd.f32 %v6835, %v6850
      %v6856 = vadd.f32 %v6836, %v6850
      %v6857 = vadd.f32 %v6837, %v6850
      %v6858 = vadd.f32 %v6838, %v6850
      %v6859 = vadd.f32 %v6839, %v6850
      %v6860 = vadd.f32 %v6840, %v6850
      %v6861 = vadd.f32 %v6841, %v6850
      %v6862 = vadd.f32 %v6842, %v6850
      %v6863 = vadd.f32 %v6843, %v6850
      %v6864 = vadd.f32 %v6844, %v6850
      %v6865 = vmax.f32 %v6852, 0.0
      %v6866 = vmax.f32 %v6853, 0.0
      %v6867 = vmax.f32 %v6854, 0.0
      %v6868 = vmax.f32 %v6855, 0.0
      %v6869 = vmax.f32 %v6856, 0.0
      %v6870 = vmax.f32 %v6857, 0.0
      %v6871 = vmax.f32 %v6858, 0.0
      %v6872 = vmax.f32 %v6859, 0.0
      %v6873 = vmax.f32 %v6860, 0.0
      %v6874 = vmax.f32 %v6861, 0.0
      %v6875 = vmax.f32 %v6862, 0.0
      %v6876 = vmax.f32 %v6863, 0.0
      %v6877 = vmax.f32 %v6864, 0.0
      %v6878 = vpack.c.bf16 %v6866, %v6865
      %v6879 = vpack.c.bf16 %v6868, %v6867
      %v6880 = vpack.c.bf16 %v6870, %v6869
      %v6881 = vpack.c.bf16 %v6872, %v6871
      %v6882 = vpack.c.bf16 %v6874, %v6873
      %v6883 = vpack.c.bf16 %v6876, %v6875
      %v6884 = vpack.c.bf16 %v6877, %v6877
      %v6892 = vcombine.high %v6878, %v6878
      %v6894 = vunpack.c.l.s4 1966171168
      %v6895 = vunpack.c.0.s8 %v6894
      %v6896 = vlaneseq
      %v6897 = vshrl.u32 %v6896, 7
      %v6898 = vsub.s32 %v6895, %v6897
      %v6899 = vrot.slane %v6878, %v6898
      %v6901 = vunpack.c.l.s4 1966171168
      %v6902 = vunpack.c.0.s8 %v6901
      %v6903 = vlaneseq
      %v6904 = vshrl.u32 %v6903, 7
      %v6905 = vsub.s32 %v6902, %v6904
      %v6906 = vrot.slane %v6892, %v6905
      %v6907 = vcombine.high %v6899, %v6899
      %v6908 = vcombine.high %v6906, %v6906
      %v6910 = vunpack.c.l.s4 1966171168
      %v6911 = vunpack.c.0.s8 %v6910
      %v6912 = vlaneseq
      %v6913 = vshrl.u32 %v6912, 7
      %v6914 = vsub.s32 %v6911, %v6913
      %v6915 = vrot.slane %v6899, %v6914
      %v6917 = vunpack.c.l.s4 1966171168
      %v6918 = vunpack.c.0.s8 %v6917
      %v6919 = vlaneseq
      %v6920 = vshrl.u32 %v6919, 7
      %v6921 = vsub.s32 %v6918, %v6920
      %v6922 = vrot.slane %v6906, %v6921
      %v6924 = vunpack.c.l.s4 1966171168
      %v6925 = vunpack.c.0.s8 %v6924
      %v6926 = vlaneseq
      %v6927 = vshrl.u32 %v6926, 7
      %v6928 = vsub.s32 %v6925, %v6927
      %v6929 = vrot.slane %v6907, %v6928
      %v6931 = vunpack.c.l.s4 1966171168
      %v6932 = vunpack.c.0.s8 %v6931
      %v6933 = vlaneseq
      %v6934 = vshrl.u32 %v6933, 7
      %v6935 = vsub.s32 %v6932, %v6934
      %v6936 = vrot.slane %v6908, %v6935
      %v6937 = vcombine.high %v6915, %v6915
      %v6938 = vcombine.high %v6922, %v6922
      %v6939 = vcombine.high %v6929, %v6929
      %v6940 = vcombine.high %v6936, %v6936
      %v6941 = vcombine.high %v6879, %v6879
      %v6943 = vunpack.c.l.s4 1966171168
      %v6944 = vunpack.c.0.s8 %v6943
      %v6945 = vlaneseq
      %v6946 = vshrl.u32 %v6945, 7
      %v6947 = vsub.s32 %v6944, %v6946
      %v6948 = vrot.slane %v6879, %v6947
      %v6950 = vunpack.c.l.s4 1966171168
      %v6951 = vunpack.c.0.s8 %v6950
      %v6952 = vlaneseq
      %v6953 = vshrl.u32 %v6952, 7
      %v6954 = vsub.s32 %v6951, %v6953
      %v6955 = vrot.slane %v6941, %v6954
      %v6956 = vcombine.high %v6948, %v6948
      %v6957 = vcombine.high %v6955, %v6955
      %v6959 = vunpack.c.l.s4 1966171168
      %v6960 = vunpack.c.0.s8 %v6959
      %v6961 = vlaneseq
      %v6962 = vshrl.u32 %v6961, 7
      %v6963 = vsub.s32 %v6960, %v6962
      %v6964 = vrot.slane %v6948, %v6963
      %v6966 = vunpack.c.l.s4 1966171168
      %v6967 = vunpack.c.0.s8 %v6966
      %v6968 = vlaneseq
      %v6969 = vshrl.u32 %v6968, 7
      %v6970 = vsub.s32 %v6967, %v6969
      %v6971 = vrot.slane %v6955, %v6970
      %v6973 = vunpack.c.l.s4 1966171168
      %v6974 = vunpack.c.0.s8 %v6973
      %v6975 = vlaneseq
      %v6976 = vshrl.u32 %v6975, 7
      %v6977 = vsub.s32 %v6974, %v6976
      %v6978 = vrot.slane %v6956, %v6977
      %v6980 = vunpack.c.l.s4 1966171168
      %v6981 = vunpack.c.0.s8 %v6980
      %v6982 = vlaneseq
      %v6983 = vshrl.u32 %v6982, 7
      %v6984 = vsub.s32 %v6981, %v6983
      %v6985 = vrot.slane %v6957, %v6984
      %v6986 = vcombine.high %v6964, %v6964
      %v6987 = vcombine.high %v6971, %v6971
      %v6988 = vcombine.high %v6978, %v6978
      %v6989 = vcombine.high %v6985, %v6985
      %v6990 = vcombine.high %v6880, %v6880
      %v6992 = vunpack.c.l.s4 1966171168
      %v6993 = vunpack.c.0.s8 %v6992
      %v6994 = vlaneseq
      %v6995 = vshrl.u32 %v6994, 7
      %v6996 = vsub.s32 %v6993, %v6995
      %v6997 = vrot.slane %v6880, %v6996
      %v6999 = vunpack.c.l.s4 1966171168
      %v7000 = vunpack.c.0.s8 %v6999
      %v7001 = vlaneseq
      %v7002 = vshrl.u32 %v7001, 7
      %v7003 = vsub.s32 %v7000, %v7002
      %v7004 = vrot.slane %v6990, %v7003
      %v7005 = vcombine.high %v6997, %v6997
      %v7006 = vcombine.high %v7004, %v7004
      %v7008 = vunpack.c.l.s4 1966171168
      %v7009 = vunpack.c.0.s8 %v7008
      %v7010 = vlaneseq
      %v7011 = vshrl.u32 %v7010, 7
      %v7012 = vsub.s32 %v7009, %v7011
      %v7013 = vrot.slane %v6997, %v7012
      %v7015 = vunpack.c.l.s4 1966171168
      %v7016 = vunpack.c.0.s8 %v7015
      %v7017 = vlaneseq
      %v7018 = vshrl.u32 %v7017, 7
      %v7019 = vsub.s32 %v7016, %v7018
      %v7020 = vrot.slane %v7004, %v7019
      %v7022 = vunpack.c.l.s4 1966171168
      %v7023 = vunpack.c.0.s8 %v7022
      %v7024 = vlaneseq
      %v7025 = vshrl.u32 %v7024, 7
      %v7026 = vsub.s32 %v7023, %v7025
      %v7027 = vrot.slane %v7005, %v7026
      %v7029 = vunpack.c.l.s4 1966171168
      %v7030 = vunpack.c.0.s8 %v7029
      %v7031 = vlaneseq
      %v7032 = vshrl.u32 %v7031, 7
      %v7033 = vsub.s32 %v7030, %v7032
      %v7034 = vrot.slane %v7006, %v7033
      %v7035 = vcombine.high %v7013, %v7013
      %v7036 = vcombine.high %v7020, %v7020
      %v7037 = vcombine.high %v7027, %v7027
      %v7038 = vcombine.high %v7034, %v7034
      %v7039 = vcombine.high %v6881, %v6881
      %v7041 = vunpack.c.l.s4 1966171168
      %v7042 = vunpack.c.0.s8 %v7041
      %v7043 = vlaneseq
      %v7044 = vshrl.u32 %v7043, 7
      %v7045 = vsub.s32 %v7042, %v7044
      %v7046 = vrot.slane %v6881, %v7045
      %v7048 = vunpack.c.l.s4 1966171168
      %v7049 = vunpack.c.0.s8 %v7048
      %v7050 = vlaneseq
      %v7051 = vshrl.u32 %v7050, 7
      %v7052 = vsub.s32 %v7049, %v7051
      %v7053 = vrot.slane %v7039, %v7052
      %v7054 = vcombine.high %v7046, %v7046
      %v7055 = vcombine.high %v7053, %v7053
      %v7057 = vunpack.c.l.s4 1966171168
      %v7058 = vunpack.c.0.s8 %v7057
      %v7059 = vlaneseq
      %v7060 = vshrl.u32 %v7059, 7
      %v7061 = vsub.s32 %v7058, %v7060
      %v7062 = vrot.slane %v7046, %v7061
      %v7064 = vunpack.c.l.s4 1966171168
      %v7065 = vunpack.c.0.s8 %v7064
      %v7066 = vlaneseq
      %v7067 = vshrl.u32 %v7066, 7
      %v7068 = vsub.s32 %v7065, %v7067
      %v7069 = vrot.slane %v7053, %v7068
      %v7071 = vunpack.c.l.s4 1966171168
      %v7072 = vunpack.c.0.s8 %v7071
      %v7073 = vlaneseq
      %v7074 = vshrl.u32 %v7073, 7
      %v7075 = vsub.s32 %v7072, %v7074
      %v7076 = vrot.slane %v7054, %v7075
      %v7078 = vunpack.c.l.s4 1966171168
      %v7079 = vunpack.c.0.s8 %v7078
      %v7080 = vlaneseq
      %v7081 = vshrl.u32 %v7080, 7
      %v7082 = vsub.s32 %v7079, %v7081
      %v7083 = vrot.slane %v7055, %v7082
      %v7084 = vcombine.high %v7062, %v7062
      %v7085 = vcombine.high %v7069, %v7069
      %v7086 = vcombine.high %v7076, %v7076
      %v7087 = vcombine.high %v7083, %v7083
      %v7088 = vcombine.high %v6882, %v6882
      %v7090 = vunpack.c.l.s4 1966171168
      %v7091 = vunpack.c.0.s8 %v7090
      %v7092 = vlaneseq
      %v7093 = vshrl.u32 %v7092, 7
      %v7094 = vsub.s32 %v7091, %v7093
      %v7095 = vrot.slane %v6882, %v7094
      %v7097 = vunpack.c.l.s4 1966171168
      %v7098 = vunpack.c.0.s8 %v7097
      %v7099 = vlaneseq
      %v7100 = vshrl.u32 %v7099, 7
      %v7101 = vsub.s32 %v7098, %v7100
      %v7102 = vrot.slane %v7088, %v7101
      %v7103 = vcombine.high %v7095, %v7095
      %v7104 = vcombine.high %v7102, %v7102
      %v7106 = vunpack.c.l.s4 1966171168
      %v7107 = vunpack.c.0.s8 %v7106
      %v7108 = vlaneseq
      %v7109 = vshrl.u32 %v7108, 7
      %v7110 = vsub.s32 %v7107, %v7109
      %v7111 = vrot.slane %v7095, %v7110
      %v7113 = vunpack.c.l.s4 1966171168
      %v7114 = vunpack.c.0.s8 %v7113
      %v7115 = vlaneseq
      %v7116 = vshrl.u32 %v7115, 7
      %v7117 = vsub.s32 %v7114, %v7116
      %v7118 = vrot.slane %v7102, %v7117
      %v7120 = vunpack.c.l.s4 1966171168
      %v7121 = vunpack.c.0.s8 %v7120
      %v7122 = vlaneseq
      %v7123 = vshrl.u32 %v7122, 7
      %v7124 = vsub.s32 %v7121, %v7123
      %v7125 = vrot.slane %v7103, %v7124
      %v7127 = vunpack.c.l.s4 1966171168
      %v7128 = vunpack.c.0.s8 %v7127
      %v7129 = vlaneseq
      %v7130 = vshrl.u32 %v7129, 7
      %v7131 = vsub.s32 %v7128, %v7130
      %v7132 = vrot.slane %v7104, %v7131
      %v7133 = vcombine.high %v7111, %v7111
      %v7134 = vcombine.high %v7118, %v7118
      %v7135 = vcombine.high %v7125, %v7125
      %v7136 = vcombine.high %v7132, %v7132
      %v7137 = vcombine.high %v6883, %v6883
      %v7139 = vunpack.c.l.s4 1966171168
      %v7140 = vunpack.c.0.s8 %v7139
      %v7141 = vlaneseq
      %v7142 = vshrl.u32 %v7141, 7
      %v7143 = vsub.s32 %v7140, %v7142
      %v7144 = vrot.slane %v6883, %v7143
      %v7146 = vunpack.c.l.s4 1966171168
      %v7147 = vunpack.c.0.s8 %v7146
      %v7148 = vlaneseq
      %v7149 = vshrl.u32 %v7148, 7
      %v7150 = vsub.s32 %v7147, %v7149
      %v7151 = vrot.slane %v7137, %v7150
      %v7152 = vcombine.high %v7144, %v7144
      %v7153 = vcombine.high %v7151, %v7151
      %v7155 = vunpack.c.l.s4 1966171168
      %v7156 = vunpack.c.0.s8 %v7155
      %v7157 = vlaneseq
      %v7158 = vshrl.u32 %v7157, 7
      %v7159 = vsub.s32 %v7156, %v7158
      %v7160 = vrot.slane %v7144, %v7159
      %v7162 = vunpack.c.l.s4 1966171168
      %v7163 = vunpack.c.0.s8 %v7162
      %v7164 = vlaneseq
      %v7165 = vshrl.u32 %v7164, 7
      %v7166 = vsub.s32 %v7163, %v7165
      %v7167 = vrot.slane %v7151, %v7166
      %v7169 = vunpack.c.l.s4 1966171168
      %v7170 = vunpack.c.0.s8 %v7169
      %v7171 = vlaneseq
      %v7172 = vshrl.u32 %v7171, 7
      %v7173 = vsub.s32 %v7170, %v7172
      %v7174 = vrot.slane %v7152, %v7173
      %v7176 = vunpack.c.l.s4 1966171168
      %v7177 = vunpack.c.0.s8 %v7176
      %v7178 = vlaneseq
      %v7179 = vshrl.u32 %v7178, 7
      %v7180 = vsub.s32 %v7177, %v7179
      %v7181 = vrot.slane %v7153, %v7180
      %v7182 = vcombine.high %v7160, %v7160
      %v7183 = vcombine.high %v7167, %v7167
      %v7184 = vcombine.high %v7174, %v7174
      %v7185 = vcombine.high %v7181, %v7181
      %v7187 = vunpack.c.l.s4 1966171168
      %v7188 = vunpack.c.0.s8 %v7187
      %v7189 = vlaneseq
      %v7190 = vshrl.u32 %v7189, 7
      %v7191 = vsub.s32 %v7188, %v7190
      %v7192 = vrot.slane %v6884, %v7191
      %v7193 = vcombine.high %v7192, %v7192
      %v7195 = vunpack.c.l.s4 1966171168
      %v7196 = vunpack.c.0.s8 %v7195
      %v7197 = vlaneseq
      %v7198 = vshrl.u32 %v7197, 7
      %v7199 = vsub.s32 %v7196, %v7198
      %v7200 = vrot.slane %v7192, %v7199
      %v7202 = vunpack.c.l.s4 1966171168
      %v7203 = vunpack.c.0.s8 %v7202
      %v7204 = vlaneseq
      %v7205 = vshrl.u32 %v7204, 7
      %v7206 = vsub.s32 %v7203, %v7205
      %v7207 = vrot.slane %v7193, %v7206
      %v7208 = vcombine.low %v6915, %v6937
      %v7209 = vcombine.low %v6929, %v6939
      %v7211 = vunpack.c.l.s4 1935823168
      %v7212 = vunpack.c.0.s8 %v7211
      %v7213 = vlaneseq
      %v7214 = vshrl.u32 %v7213, 7
      %v7215 = vsub.s32 %v7212, %v7214
      %v7216 = vrot.slane %v7208, %v7215
      %v7218 = vunpack.c.l.s4 1935823168
      %v7219 = vunpack.c.0.s8 %v7218
      %v7220 = vlaneseq
      %v7221 = vshrl.u32 %v7220, 7
      %v7222 = vsub.s32 %v7219, %v7221
      %v7223 = vrot.slane %v7209, %v7222
      %v7224 = vcombine.low %v7216, %v7223
      %v7226 = vunpack.c.l.s4 1935823168
      %v7227 = vunpack.c.0.s8 %v7226
      %v7228 = vlaneseq
      %v7229 = vshrl.u32 %v7228, 7
      %v7230 = vsub.s32 %v7227, %v7229
      %v7231 = vrot.slane %v7224, %v7230
      %v7233 = vunpack.c.l.s4 1935823168
      %v7234 = vunpack.c.0.s8 %v7233
      %v7235 = vlaneseq
      %v7236 = vshrl.u32 %v7235, 7
      %v7237 = vsub.s32 %v7234, %v7236
      %v7238 = vrot.slane %v6922, %v7237
      %v7240 = vunpack.c.l.s4 1935823168
      %v7241 = vunpack.c.0.s8 %v7240
      %v7242 = vlaneseq
      %v7243 = vshrl.u32 %v7242, 7
      %v7244 = vsub.s32 %v7241, %v7243
      %v7245 = vrot.slane %v7238, %v7244
      %v7246 = vcombine.low %v6936, %v6940
      %v7247 = vcombine.low %v6938, %v6964
      %v7249 = vunpack.c.l.s4 1935823168
      %v7250 = vunpack.c.0.s8 %v7249
      %v7251 = vlaneseq
      %v7252 = vshrl.u32 %v7251, 7
      %v7253 = vsub.s32 %v7250, %v7252
      %v7254 = vrot.slane %v7246, %v7253
      %v7256 = vunpack.c.l.s4 1935823168
      %v7257 = vunpack.c.0.s8 %v7256
      %v7258 = vlaneseq
      %v7259 = vshrl.u32 %v7258, 7
      %v7260 = vsub.s32 %v7257, %v7259
      %v7261 = vrot.slane %v7247, %v7260
      %v7262 = vcombine.low %v7254, %v7261
      %v7264 = vunpack.c.l.s4 1935823168
      %v7265 = vunpack.c.0.s8 %v7264
      %v7266 = vlaneseq
      %v7267 = vshrl.u32 %v7266, 7
      %v7268 = vsub.s32 %v7265, %v7267
      %v7269 = vrot.slane %v7262, %v7268
      %v7271 = vunpack.c.l.s4 1935823168
      %v7272 = vunpack.c.0.s8 %v7271
      %v7273 = vlaneseq
      %v7274 = vshrl.u32 %v7273, 7
      %v7275 = vsub.s32 %v7272, %v7274
      %v7276 = vrot.slane %v6978, %v7275
      %v7278 = vunpack.c.l.s4 1935823168
      %v7279 = vunpack.c.0.s8 %v7278
      %v7280 = vlaneseq
      %v7281 = vshrl.u32 %v7280, 7
      %v7282 = vsub.s32 %v7279, %v7281
      %v7283 = vrot.slane %v7276, %v7282
      %v7284 = vcombine.low %v6986, %v6971
      %v7285 = vcombine.low %v6988, %v6985
      %v7287 = vunpack.c.l.s4 1935823168
      %v7288 = vunpack.c.0.s8 %v7287
      %v7289 = vlaneseq
      %v7290 = vshrl.u32 %v7289, 7
      %v7291 = vsub.s32 %v7288, %v7290
      %v7292 = vrot.slane %v7284, %v7291
      %v7294 = vunpack.c.l.s4 1935823168
      %v7295 = vunpack.c.0.s8 %v7294
      %v7296 = vlaneseq
      %v7297 = vshrl.u32 %v7296, 7
      %v7298 = vsub.s32 %v7295, %v7297
      %v7299 = vrot.slane %v7285, %v7298
      %v7300 = vcombine.low %v7292, %v7299
      %v7302 = vunpack.c.l.s4 1935823168
      %v7303 = vunpack.c.0.s8 %v7302
      %v7304 = vlaneseq
      %v7305 = vshrl.u32 %v7304, 7
      %v7306 = vsub.s32 %v7303, %v7305
      %v7307 = vrot.slane %v7300, %v7306
      %v7309 = vunpack.c.l.s4 1935823168
      %v7310 = vunpack.c.0.s8 %v7309
      %v7311 = vlaneseq
      %v7312 = vshrl.u32 %v7311, 7
      %v7313 = vsub.s32 %v7310, %v7312
      %v7314 = vrot.slane %v6987, %v7313
      %v7316 = vunpack.c.l.s4 1935823168
      %v7317 = vunpack.c.0.s8 %v7316
      %v7318 = vlaneseq
      %v7319 = vshrl.u32 %v7318, 7
      %v7320 = vsub.s32 %v7317, %v7319
      %v7321 = vrot.slane %v7314, %v7320
      %v7322 = vcombine.low %v6989, %v7027
      %v7323 = vcombine.low %v7013, %v7035
      %v7325 = vunpack.c.l.s4 1935823168
      %v7326 = vunpack.c.0.s8 %v7325
      %v7327 = vlaneseq
      %v7328 = vshrl.u32 %v7327, 7
      %v7329 = vsub.s32 %v7326, %v7328
      %v7330 = vrot.slane %v7322, %v7329
      %v7332 = vunpack.c.l.s4 1935823168
      %v7333 = vunpack.c.0.s8 %v7332
      %v7334 = vlaneseq
      %v7335 = vshrl.u32 %v7334, 7
      %v7336 = vsub.s32 %v7333, %v7335
      %v7337 = vrot.slane %v7323, %v7336
      %v7338 = vcombine.low %v7330, %v7337
      %v7340 = vunpack.c.l.s4 1935823168
      %v7341 = vunpack.c.0.s8 %v7340
      %v7342 = vlaneseq
      %v7343 = vshrl.u32 %v7342, 7
      %v7344 = vsub.s32 %v7341, %v7343
      %v7345 = vrot.slane %v7338, %v7344
      %v7347 = vunpack.c.l.s4 1935823168
      %v7348 = vunpack.c.0.s8 %v7347
      %v7349 = vlaneseq
      %v7350 = vshrl.u32 %v7349, 7
      %v7351 = vsub.s32 %v7348, %v7350
      %v7352 = vrot.slane %v7037, %v7351
      %v7354 = vunpack.c.l.s4 1935823168
      %v7355 = vunpack.c.0.s8 %v7354
      %v7356 = vlaneseq
      %v7357 = vshrl.u32 %v7356, 7
      %v7358 = vsub.s32 %v7355, %v7357
      %v7359 = vrot.slane %v7352, %v7358
      %v7360 = vcombine.low %v7020, %v7036
      %v7361 = vcombine.low %v7034, %v7038
      %v7363 = vunpack.c.l.s4 1935823168
      %v7364 = vunpack.c.0.s8 %v7363
      %v7365 = vlaneseq
      %v7366 = vshrl.u32 %v7365, 7
      %v7367 = vsub.s32 %v7364, %v7366
      %v7368 = vrot.slane %v7360, %v7367
      %v7370 = vunpack.c.l.s4 1935823168
      %v7371 = vunpack.c.0.s8 %v7370
      %v7372 = vlaneseq
      %v7373 = vshrl.u32 %v7372, 7
      %v7374 = vsub.s32 %v7371, %v7373
      %v7375 = vrot.slane %v7361, %v7374
      %v7376 = vcombine.low %v7368, %v7375
      %v7378 = vunpack.c.l.s4 1935823168
      %v7379 = vunpack.c.0.s8 %v7378
      %v7380 = vlaneseq
      %v7381 = vshrl.u32 %v7380, 7
      %v7382 = vsub.s32 %v7379, %v7381
      %v7383 = vrot.slane %v7376, %v7382
      %v7385 = vunpack.c.l.s4 1935823168
      %v7386 = vunpack.c.0.s8 %v7385
      %v7387 = vlaneseq
      %v7388 = vshrl.u32 %v7387, 7
      %v7389 = vsub.s32 %v7386, %v7388
      %v7390 = vrot.slane %v7062, %v7389
      %v7392 = vunpack.c.l.s4 1935823168
      %v7393 = vunpack.c.0.s8 %v7392
      %v7394 = vlaneseq
      %v7395 = vshrl.u32 %v7394, 7
      %v7396 = vsub.s32 %v7393, %v7395
      %v7397 = vrot.slane %v7390, %v7396
      %v7398 = vcombine.low %v7076, %v7086
      %v7399 = vcombine.low %v7084, %v7069
      %v7401 = vunpack.c.l.s4 1935823168
      %v7402 = vunpack.c.0.s8 %v7401
      %v7403 = vlaneseq
      %v7404 = vshrl.u32 %v7403, 7
      %v7405 = vsub.s32 %v7402, %v7404
      %v7406 = vrot.slane %v7398, %v7405
      %v7408 = vunpack.c.l.s4 1935823168
      %v7409 = vunpack.c.0.s8 %v7408
      %v7410 = vlaneseq
      %v7411 = vshrl.u32 %v7410, 7
      %v7412 = vsub.s32 %v7409, %v7411
      %v7413 = vrot.slane %v7399, %v7412
      %v7414 = vcombine.low %v7406, %v7413
      %v7416 = vunpack.c.l.s4 1935823168
      %v7417 = vunpack.c.0.s8 %v7416
      %v7418 = vlaneseq
      %v7419 = vshrl.u32 %v7418, 7
      %v7420 = vsub.s32 %v7417, %v7419
      %v7421 = vrot.slane %v7414, %v7420
      %v7423 = vunpack.c.l.s4 1935823168
      %v7424 = vunpack.c.0.s8 %v7423
      %v7425 = vlaneseq
      %v7426 = vshrl.u32 %v7425, 7
      %v7427 = vsub.s32 %v7424, %v7426
      %v7428 = vrot.slane %v7083, %v7427
      %v7430 = vunpack.c.l.s4 1935823168
      %v7431 = vunpack.c.0.s8 %v7430
      %v7432 = vlaneseq
      %v7433 = vshrl.u32 %v7432, 7
      %v7434 = vsub.s32 %v7431, %v7433
      %v7435 = vrot.slane %v7428, %v7434
      %v7436 = vcombine.low %v7085, %v7111
      %v7437 = vcombine.low %v7087, %v7125
      %v7439 = vunpack.c.l.s4 1935823168
      %v7440 = vunpack.c.0.s8 %v7439
      %v7441 = vlaneseq
      %v7442 = vshrl.u32 %v7441, 7
      %v7443 = vsub.s32 %v7440, %v7442
      %v7444 = vrot.slane %v7436, %v7443
      %v7446 = vunpack.c.l.s4 1935823168
      %v7447 = vunpack.c.0.s8 %v7446
      %v7448 = vlaneseq
      %v7449 = vshrl.u32 %v7448, 7
      %v7450 = vsub.s32 %v7447, %v7449
      %v7451 = vrot.slane %v7437, %v7450
      %v7452 = vcombine.low %v7444, %v7451
      %v7454 = vunpack.c.l.s4 1935823168
      %v7455 = vunpack.c.0.s8 %v7454
      %v7456 = vlaneseq
      %v7457 = vshrl.u32 %v7456, 7
      %v7458 = vsub.s32 %v7455, %v7457
      %v7459 = vrot.slane %v7452, %v7458
      %v7461 = vunpack.c.l.s4 1935823168
      %v7462 = vunpack.c.0.s8 %v7461
      %v7463 = vlaneseq
      %v7464 = vshrl.u32 %v7463, 7
      %v7465 = vsub.s32 %v7462, %v7464
      %v7466 = vrot.slane %v7133, %v7465
      %v7468 = vunpack.c.l.s4 1935823168
      %v7469 = vunpack.c.0.s8 %v7468
      %v7470 = vlaneseq
      %v7471 = vshrl.u32 %v7470, 7
      %v7472 = vsub.s32 %v7469, %v7471
      %v7473 = vrot.slane %v7466, %v7472
      %v7474 = vcombine.low %v7135, %v7132
      %v7475 = vcombine.low %v7118, %v7134
      %v7477 = vunpack.c.l.s4 1935823168
      %v7478 = vunpack.c.0.s8 %v7477
      %v7479 = vlaneseq
      %v7480 = vshrl.u32 %v7479, 7
      %v7481 = vsub.s32 %v7478, %v7480
      %v7482 = vrot.slane %v7474, %v7481
      %v7484 = vunpack.c.l.s4 1935823168
      %v7485 = vunpack.c.0.s8 %v7484
      %v7486 = vlaneseq
      %v7487 = vshrl.u32 %v7486, 7
      %v7488 = vsub.s32 %v7485, %v7487
      %v7489 = vrot.slane %v7475, %v7488
      %v7490 = vcombine.low %v7482, %v7489
      %v7492 = vunpack.c.l.s4 1935823168
      %v7493 = vunpack.c.0.s8 %v7492
      %v7494 = vlaneseq
      %v7495 = vshrl.u32 %v7494, 7
      %v7496 = vsub.s32 %v7493, %v7495
      %v7497 = vrot.slane %v7490, %v7496
      %v7499 = vunpack.c.l.s4 1935823168
      %v7500 = vunpack.c.0.s8 %v7499
      %v7501 = vlaneseq
      %v7502 = vshrl.u32 %v7501, 7
      %v7503 = vsub.s32 %v7500, %v7502
      %v7504 = vrot.slane %v7136, %v7503
      %v7506 = vunpack.c.l.s4 1935823168
      %v7507 = vunpack.c.0.s8 %v7506
      %v7508 = vlaneseq
      %v7509 = vshrl.u32 %v7508, 7
      %v7510 = vsub.s32 %v7507, %v7509
      %v7511 = vrot.slane %v7504, %v7510
      %v7512 = vcombine.low %v7160, %v7182
      %v7513 = vcombine.low %v7174, %v7184
      %v7515 = vunpack.c.l.s4 1935823168
      %v7516 = vunpack.c.0.s8 %v7515
      %v7517 = vlaneseq
      %v7518 = vshrl.u32 %v7517, 7
      %v7519 = vsub.s32 %v7516, %v7518
      %v7520 = vrot.slane %v7512, %v7519
      %v7522 = vunpack.c.l.s4 1935823168
      %v7523 = vunpack.c.0.s8 %v7522
      %v7524 = vlaneseq
      %v7525 = vshrl.u32 %v7524, 7
      %v7526 = vsub.s32 %v7523, %v7525
      %v7527 = vrot.slane %v7513, %v7526
      %v7528 = vcombine.low %v7520, %v7527
      %v7530 = vunpack.c.l.s4 1935823168
      %v7531 = vunpack.c.0.s8 %v7530
      %v7532 = vlaneseq
      %v7533 = vshrl.u32 %v7532, 7
      %v7534 = vsub.s32 %v7531, %v7533
      %v7535 = vrot.slane %v7528, %v7534
      %v7537 = vunpack.c.l.s4 1935823168
      %v7538 = vunpack.c.0.s8 %v7537
      %v7539 = vlaneseq
      %v7540 = vshrl.u32 %v7539, 7
      %v7541 = vsub.s32 %v7538, %v7540
      %v7542 = vrot.slane %v7167, %v7541
      %v7544 = vunpack.c.l.s4 1935823168
      %v7545 = vunpack.c.0.s8 %v7544
      %v7546 = vlaneseq
      %v7547 = vshrl.u32 %v7546, 7
      %v7548 = vsub.s32 %v7545, %v7547
      %v7549 = vrot.slane %v7542, %v7548
      %v7550 = vcombine.low %v7181, %v7185
      %v7551 = vcombine.low %v7183, %v7200
      %v7553 = vunpack.c.l.s4 1935823168
      %v7554 = vunpack.c.0.s8 %v7553
      %v7555 = vlaneseq
      %v7556 = vshrl.u32 %v7555, 7
      %v7557 = vsub.s32 %v7554, %v7556
      %v7558 = vrot.slane %v7550, %v7557
      %v7560 = vunpack.c.l.s4 1935823168
      %v7561 = vunpack.c.0.s8 %v7560
      %v7562 = vlaneseq
      %v7563 = vshrl.u32 %v7562, 7
      %v7564 = vsub.s32 %v7561, %v7563
      %v7565 = vrot.slane %v7551, %v7564
      %v7566 = vcombine.low %v7558, %v7565
      %v7568 = vunpack.c.l.s4 1935823168
      %v7569 = vunpack.c.0.s8 %v7568
      %v7570 = vlaneseq
      %v7571 = vshrl.u32 %v7570, 7
      %v7572 = vsub.s32 %v7569, %v7571
      %v7573 = vrot.slane %v7566, %v7572
      %v7575 = vunpack.c.l.s4 1935823168
      %v7576 = vunpack.c.0.s8 %v7575
      %v7577 = vlaneseq
      %v7578 = vshrl.u32 %v7577, 7
      %v7579 = vsub.s32 %v7576, %v7578
      %v7580 = vrot.slane %v7207, %v7579
      %v7582 = vunpack.c.l.s4 1935823168
      %v7583 = vunpack.c.0.s8 %v7582
      %v7584 = vlaneseq
      %v7585 = vshrl.u32 %v7584, 7
      %v7586 = vsub.s32 %v7583, %v7585
      %v7587 = vrot.slane %v7580, %v7586
      %7608 = vst [vmem:[%s194] sm:$0xf] %v7231
      %7609 = vst [vmem:[%s194 + $0x4] sm:$0x1] %v7245
      %7610 = vst [vmem:[%s194 + $0x8] sm:$0xf] %v7269
      %7611 = vst [vmem:[%s194 + $0xc] sm:$0x1] %v7283
      %7612 = vst [vmem:[%s194 + $0x10] sm:$0xf] %v7307
      %7613 = vst [vmem:[%s194 + $0x14] sm:$0x1] %v7321
      %7614 = vst [vmem:[%s194 + $0x18] sm:$0xf] %v7345
      %7615 = vst [vmem:[%s194 + $0x1c] sm:$0x1] %v7359
      %7616 = vst [vmem:[%s194 + $0x20] sm:$0xf] %v7383
      %7617 = vst [vmem:[%s194 + $0x24] sm:$0x1] %v7397
      %7618 = vst [vmem:[%s194 + $0x28] sm:$0xf] %v7421
      %7619 = vst [vmem:[%s194 + $0x2c] sm:$0x1] %v7435
      %7620 = vst [vmem:[%s194 + $0x30] sm:$0xf] %v7459
      %7621 = vst [vmem:[%s194 + $0x34] sm:$0x1] %v7473
      %7622 = vst [vmem:[%s194 + $0x38] sm:$0xf] %v7497
      %7623 = vst [vmem:[%s194 + $0x3c] sm:$0x1] %v7511
      %7624 = vst [vmem:[%s194 + $0x40] sm:$0xf] %v7535
      %7625 = vst [vmem:[%s194 + $0x44] sm:$0x1] %v7549
      %7626 = vst [vmem:[%s194 + $0x48] sm:$0xf] %v7573
      %7627 = vst [vmem:[%s194 + $0x4c] sm:$0x1] %v7587
      %s7628 = smul.u32 10, %s19
      %p7629 = scmp.lt.s32.totalorder %s18, 1
      %s7630 = scalar_select %p7629, %s18, 1
      %p7631 = scmp.lt.s32.totalorder %s7628, 9
      %s7632 = scalar_select %p7631, %s7628, 9
      %s7633 = smul.addr %s7632, 2
      %s7634 = smul.addr %s7630, 20
      %s7635 = sadd.s32 %s7633, %s7634
      %s7636 = smul.addr %s7635, 4
      %s7637 = scalar_lea.vmem %s3, %s7636
      // Predicated region
      $region33: #{tpu_custom_call.1} parent=31 // pred_check
        %p7638 = pneg %p114
      $region34: #{tpu_custom_call.1} parent=31 // pred_check_branch
        %7640 = sbr.rel (%p7638) target = $region36
      $region35: #{tpu_custom_call.1} parent=31 // pred_region
        %s7641 = smul.u32 10, %s19
      $region36: #{tpu_custom_call.1} parent=31 // pred_fallthru
        _
    $region32: #{tpu_custom_call.1} parent=5 // pred_fallthru
      _
    %p7642 = scmp.le.s32.totalorder 2, %s9
    // Predicated region
    $region37: #{tpu_custom_call.1} parent=5 // pred_check
      %p7643 = pneg %p7642
    $region38: #{tpu_custom_call.1} parent=5 // pred_check_branch
      %7645 = sbr.rel (%p7643) target = $region40
    $region39: #{tpu_custom_call.1} parent=5 // pred_region
      %s7646 = ssub.s32 %s9, 2
      // Predicated region
      $region41: #{tpu_custom_call.1} parent=39 // pred_check
        %p7647 = pneg %p120
      $region42: #{tpu_custom_call.1} parent=39 // pred_check_branch
        %7649 = sbr.rel (%p7647) target = $region44
      $region43: #{tpu_custom_call.1} parent=39 // pred_region
        %s7650 = smul.u32 10, %s21
        %p7651 = scmp.lt.s32.totalorder %s20, 1
        %s7652 = scalar_select %p7651, %s20, 1
        %p7653 = scmp.lt.s32.totalorder %s7650, 9
        %s7654 = scalar_select %p7653, %s7650, 9
        %s7655 = smul.addr %s7654, 2
        %s7656 = smul.addr %s7652, 20
        %s7657 = sadd.s32 %s7655, %s7656
        %s7658 = smul.addr %s7657, 4
        %s7659 = scalar_lea.vmem %s3, %s7658
      $region44: #{tpu_custom_call.1} parent=39 // pred_fallthru
        _
    $region40: #{tpu_custom_call.1} parent=5 // pred_fallthru
      _
  $region6: #{tpu_custom_call.1} parent=0 // loop_footer
    %s13 = sadd.s32 1, %s9
  $region7: #{tpu_custom_call.1} parent=0 // loop_footer_branch
    %8 = sbr.rel target = $region3
  $region8: #{tpu_custom_call.1} parent=0 // loop_exit
    _

</llo_original>
